<compile_context>
chip_gen: v5e
topology: v5e:2x2
jax: 0.10.0
libtpu: 0.0.40
codegen_flags: <defaults>
</compile_context>

<pallas_src>
import math
import functools

import jax
import jax.numpy as jnp
from jax.experimental import pallas as pl
from jax.experimental.pallas import tpu as pltpu

NEG_INF = -1e9
LN_EPS = 1e-5

# Tile caps; double-buffered bf16 input tiles + f32 accumulator stay well under the
# scoped-VMEM budget on v5e/v6e/v7x.
CAP_M, CAP_N, CAP_K = 512, 512, 512
VMEM_LIMIT = 32 * 1024 * 1024


def _gelu_exact(x):
    # exact (erf-based) GELU, matching torch.nn.functional.gelu default
    return 0.5 * x * (1.0 + jax.lax.erf(x * 0.7071067811865476))


def _round_up(x, m):
    return ((x + m - 1) // m) * m


def _tile(dim, cap, granule):
    """Return (tile, padded_dim).  Prefer tile == dim (full-dim escape, always legal)
    or a granule-aligned divisor of dim (no zero padding); fall back to cap + pad."""
    if dim <= cap:
        return dim, dim
    t = (cap // granule) * granule
    while t >= granule:
        if dim % t == 0:
            return t, dim
        t -= granule
    return cap, _round_up(dim, cap)


# ----------------------------------------------------------------------------
# Tiled linear kernels (bias / activation / residual+LayerNorm fused epilogues)
# ----------------------------------------------------------------------------
def _act(y, activation):
    if activation == "relu":
        return jnp.maximum(y, 0.0)
    if activation == "gelu":
        return _gelu_exact(y)
    return y


def _linear_kernel(*refs, activation, multi_k):
    if multi_k:
        x_ref, w_ref, b_ref, o_ref, acc_ref = refs
        k = pl.program_id(2)

        @pl.when(k == 0)
        def _():
            acc_ref[...] = jnp.zeros_like(acc_ref)

        acc_ref[...] += jnp.dot(x_ref[...], w_ref[...],
                                preferred_element_type=jnp.float32)

        @pl.when(k == pl.num_programs(2) - 1)
        def _():
            o_ref[...] = _act(acc_ref[...] + b_ref[...], activation).astype(o_ref.dtype)
    else:
        # single K step: no accumulator scratch, no init/finalize round-trip
        x_ref, w_ref, b_ref, o_ref = refs
        y = jnp.dot(x_ref[...], w_ref[...], preferred_element_type=jnp.float32)
        o_ref[...] = _act(y + b_ref[...], activation).astype(o_ref.dtype)


def _ln_finalize(acc, b, res, g, beta, eps):
    # post-norm transformer: LayerNorm(residual + (x @ w + b)), math in f32
    y = acc + b + res.astype(jnp.float32)
    mu = jnp.mean(y, axis=-1, keepdims=True)
    var = jnp.mean((y - mu) ** 2, axis=-1, keepdims=True)
    return (y - mu) * jax.lax.rsqrt(var + eps) * g + beta


def _linear_ln_kernel(*refs, eps, multi_k):
    if multi_k:
        x_ref, w_ref, b_ref, res_ref, g_ref, beta_ref, o_ref, acc_ref = refs
        k = pl.program_id(2)

        @pl.when(k == 0)
        def _():
            acc_ref[...] = jnp.zeros_like(acc_ref)

        acc_ref[...] += jnp.dot(x_ref[...], w_ref[...],
                                preferred_element_type=jnp.float32)

        @pl.when(k == pl.num_programs(2) - 1)
        def _():
            o_ref[...] = _ln_finalize(acc_ref[...], b_ref[...], res_ref[...],
                                      g_ref[...], beta_ref[...], eps).astype(o_ref.dtype)
    else:
        x_ref, w_ref, b_ref, res_ref, g_ref, beta_ref, o_ref = refs
        acc = jnp.dot(x_ref[...], w_ref[...], preferred_element_type=jnp.float32)
        o_ref[...] = _ln_finalize(acc, b_ref[...], res_ref[...],
                                  g_ref[...], beta_ref[...], eps).astype(o_ref.dtype)


def linear(x, w, b, *, activation=None, residual=None, ln_w=None, ln_b=None,
           eps=LN_EPS, out_dtype=jnp.bfloat16):
    """y = act(x @ w + b)   or   LayerNorm(residual + x @ w + b) when ln_w is given.

    x: (..., K) bf16 activations;  w: (K, N) bf16 (pre-converted at init);  b: (N,) f32.
    """
    lead = x.shape[:-1]
    K = x.shape[-1]
    N = w.shape[1]
    fuse_ln = ln_w is not None

    x2 = x.reshape(-1, K)
    M = x2.shape[0]

    tm, Mp = _tile(M, CAP_M, 8)
    tk, Kp = _tile(K, CAP_K, 128)
    if fuse_ln:
        tn, Np = N, N          # LayerNorm needs the full feature dim in one tile
    else:
        tn, Np = _tile(N, CAP_N, 128)

    if Mp != M or Kp != K:
        x2 = jnp.pad(x2, ((0, Mp - M), (0, Kp - K)))
    wp = w
    if Kp != K or Np != N:
        wp = jnp.pad(w, ((0, Kp - K), (0, Np - N)))
    bp = b if Np == N else jnp.pad(b, (0, Np - N))

    x_bf = x2.astype(jnp.bfloat16)       # no-op: activations flow as bf16
    w_bf = wp.astype(jnp.bfloat16)       # no-op: weights pre-converted at init
    b2 = bp.reshape(1, Np).astype(jnp.float32)

    grid = (Mp // tm, Np // tn, Kp // tk)
    multi_k = grid[2] > 1
    x_spec = pl.BlockSpec((tm, tk), lambda i, j, kk: (i, kk))
    w_spec = pl.BlockSpec((tk, tn), lambda i, j, kk: (kk, j))
    b_spec = pl.BlockSpec((1, tn), lambda i, j, kk: (0, j))
    out_spec = pl.BlockSpec((tm, tn), lambda i, j, kk: (i, j))
    cparams = pltpu.CompilerParams(
        dimension_semantics=("parallel", "parallel", "arbitrary"),
        vmem_limit_bytes=VMEM_LIMIT)
    scratch = [pltpu.VMEM((tm, tn), jnp.float32)] if multi_k else []

    if fuse_ln:
        assert residual is not None
        r2 = residual.reshape(-1, N).astype(jnp.bfloat16)
        if Mp != M:
            r2 = jnp.pad(r2, ((0, Mp - M), (0, 0)))
        out = pl.pallas_call(
            functools.partial(_linear_ln_kernel, eps=eps, multi_k=multi_k),
            grid=grid,
            in_specs=[x_spec, w_spec, b_spec,
                      pl.BlockSpec((tm, N), lambda i, j, kk: (i, 0)),
                      pl.BlockSpec((1, N), lambda i, j, kk: (0, 0)),
                      pl.BlockSpec((1, N), lambda i, j, kk: (0, 0))],
            out_specs=out_spec,
            out_shape=jax.ShapeDtypeStruct((Mp, Np), out_dtype),
            scratch_shapes=scratch,
            compiler_params=cparams,
        )(x_bf, w_bf, b2, r2,
          ln_w.reshape(1, N).astype(jnp.float32),
          ln_b.reshape(1, N).astype(jnp.float32))
    else:
        out = pl.pallas_call(
            functools.partial(_linear_kernel, activation=activation, multi_k=multi_k),
            grid=grid,
            in_specs=[x_spec, w_spec, b_spec],
            out_specs=out_spec,
            out_shape=jax.ShapeDtypeStruct((Mp, Np), out_dtype),
            scratch_shapes=scratch,
            compiler_params=cparams,
        )(x_bf, w_bf, b2)

    if Mp != M or Np != N:
        out = out[:M, :N]
    return out.reshape(*lead, N)


# ----------------------------------------------------------------------------
# Standalone LayerNorm (final encoder/decoder norms) — bf16 in/out, f32 math
# ----------------------------------------------------------------------------
def _layer_norm_kernel(x_ref, g_ref, b_ref, o_ref, *, eps):
    y = x_ref[...].astype(jnp.float32)
    mu = jnp.mean(y, axis=-1, keepdims=True)
    var = jnp.mean((y - mu) ** 2, axis=-1, keepdims=True)
    o_ref[...] = ((y - mu) * jax.lax.rsqrt(var + eps) * g_ref[...]
                  + b_ref[...]).astype(o_ref.dtype)


def layer_norm(x, g, b, eps=LN_EPS):
    lead = x.shape[:-1]
    D = x.shape[-1]
    x2 = x.reshape(-1, D).astype(jnp.bfloat16)
    M = x2.shape[0]
    tm, Mp = _tile(M, CAP_M, 8)
    if Mp != M:
        x2 = jnp.pad(x2, ((0, Mp - M), (0, 0)))
    out = pl.pallas_call(
        functools.partial(_layer_norm_kernel, eps=eps),
        grid=(Mp // tm,),
        in_specs=[pl.BlockSpec((tm, D), lambda i: (i, 0)),
                  pl.BlockSpec((1, D), lambda i: (0, 0)),
                  pl.BlockSpec((1, D), lambda i: (0, 0))],
        out_specs=pl.BlockSpec((tm, D), lambda i: (i, 0)),
        out_shape=jax.ShapeDtypeStruct((Mp, D), jnp.bfloat16),
        compiler_params=pltpu.CompilerParams(
            dimension_semantics=("parallel",), vmem_limit_bytes=VMEM_LIMIT),
    )(x2, g.reshape(1, D).astype(jnp.float32), b.reshape(1, D).astype(jnp.float32))
    return out[:M].reshape(*lead, D)


# ----------------------------------------------------------------------------
# Attention: lane-dense (T, d_model) layout, heads looped in-kernel and staged
# into a VMEM scratch slab; causal mask from iota, key-padding as (B,1,Tk) bias.
# ----------------------------------------------------------------------------
def _attention_kernel(*refs, nhead, causal, has_mask, q_tile):
    if has_mask:
        q_ref, k_ref, v_ref, m_ref, o_ref, o_acc = refs
    else:
        q_ref, k_ref, v_ref, o_ref, o_acc = refs
        m_ref = None

    tq, d = o_acc.shape
    Tk = k_ref.shape[1]
    dh = d // nhead

    bias = None
    if causal:
        q0 = pl.program_id(1) * q_tile
        rows = q0 + jax.lax.broadcasted_iota(jnp.int32, (tq, Tk), 0)
        cols = jax.lax.broadcasted_iota(jnp.int32, (tq, Tk), 1)
        bias = jnp.where(cols > rows, NEG_INF, 0.0)
    if has_mask:
        kb = m_ref[0]                          # (1, Tk) additive (0 / NEG_INF)
        bias = kb if bias is None else bias + kb

    for h in range(nhead):                     # static unroll over heads
        lo, hi = h * dh, (h + 1) * dh
        qh = q_ref[0, :, lo:hi]                # bf16 (tq, dh); 1/sqrt(dh) folded into Wq
        kh = k_ref[0, :, lo:hi]
        vh = v_ref[0, :, lo:hi]
        s = jax.lax.dot_general(qh, kh, (((1,), (1,)), ((), ())),
                                preferred_element_type=jnp.float32)   # (tq, Tk) f32
        if bias is not None:
            s = s + bias
        s = s - jnp.max(s, axis=-1, keepdims=True)
        p = jnp.exp(s)
        denom = jnp.sum(p, axis=-1, keepdims=True)
        oh = jnp.dot(p.astype(jnp.bfloat16), vh, preferred_element_type=jnp.float32)
        o_acc[:, lo:hi] = oh / denom           # stage per head -> bounded live ranges
    o_ref[0] = o_acc[...].astype(o_ref.dtype)  # single lane-dense store


def attention(q, k, v, *, nhead, causal=False, key_bias=None):
    """q: (B, Tq, d), k/v: (B, Tk, d) bf16; key_bias: (B, 1, Tk) additive f32 or None."""
    B, Tq, d = q.shape
    Tk = k.shape[1]
    tq, Tq_pad = _tile(Tq, CAP_M, 8)
    if Tq_pad != Tq:
        q = jnp.pad(q, ((0, 0), (0, Tq_pad - Tq), (0, 0)))
    has_mask = key_bias is not None

    q = q.astype(jnp.bfloat16)
    k = k.astype(jnp.bfloat16)
    v = v.astype(jnp.bfloat16)

    in_specs = [pl.BlockSpec((1, tq, d), lambda b, i: (b, i, 0)),
                pl.BlockSpec((1, Tk, d), lambda b, i: (b, 0, 0)),
                pl.BlockSpec((1, Tk, d), lambda b, i: (b, 0, 0))]
    args = [q, k, v]
    if has_mask:
        in_specs.append(pl.BlockSpec((1, 1, Tk), lambda b, i: (b, 0, 0)))
        args.append(key_bias)

    out = pl.pallas_call(
        functools.partial(_attention_kernel, nhead=nhead, causal=causal,
                          has_mask=has_mask, q_tile=tq),
        grid=(B, Tq_pad // tq),
        in_specs=in_specs,
        out_specs=pl.BlockSpec((1, tq, d), lambda b, i: (b, i, 0)),
        out_shape=jax.ShapeDtypeStruct((B, Tq_pad, d), jnp.bfloat16),
        scratch_shapes=[pltpu.VMEM((tq, d), jnp.float32)],
        compiler_params=pltpu.CompilerParams(
            dimension_semantics=("parallel", "parallel"),
            vmem_limit_bytes=VMEM_LIMIT),
    )(*args)
    if Tq_pad != Tq:
        out = out[:, :Tq, :]
    return out


# ----------------------------------------------------------------------------
# Conv1d(k=3, pad=1, stride s) + GELU (+ fused sinusoidal-PE add):
# wrapper stacks the 3 shifted/strided taps along channels -> one MXU matmul.
# (No strided ref indexing inside the kernel.)
# ----------------------------------------------------------------------------
def _conv_mm_kernel(*refs, has_pe):
    if has_pe:
        x_ref, w_ref, b_ref, pe_ref, o_ref = refs
    else:
        x_ref, w_ref, b_ref, o_ref = refs
        pe_ref = None
    y = jnp.dot(x_ref[0], w_ref[...], preferred_element_type=jnp.float32)
    y = _gelu_exact(y + b_ref[...])
    if has_pe:
        y = y + pe_ref[0]
    o_ref[0] = y.astype(o_ref.dtype)


def conv1d_gelu(x, w2, b, *, stride, pe=None):
    """x: (B, T, Cin); w2: (K*Cin, Cout) bf16 tap-stacked weight; b: (Cout,); padding=1."""
    B, T, Cin = x.shape
    KC, Cout = w2.shape
    K = KC // Cin
    pad = 1
    T_out = (T + 2 * pad - K) // stride + 1

    x_pad = jnp.pad(x.astype(jnp.bfloat16), ((0, 0), (pad, pad), (0, 0)))
    taps = [x_pad[:, kk::stride, :][:, :T_out, :] for kk in range(K)]
    x_taps = jnp.concatenate(taps, axis=-1)          # (B, T_out, K*Cin) bf16

    tT, Tp = _tile(T_out, CAP_M, 8)
    has_pe = pe is not None
    pe2 = pe.reshape(1, T_out, Cout).astype(jnp.float32) if has_pe else None
    if Tp != T_out:
        x_taps = jnp.pad(x_taps, ((0, 0), (0, Tp - T_out), (0, 0)))
        if has_pe:
            pe2 = jnp.pad(pe2, ((0, 0), (0, Tp - T_out), (0, 0)))

    in_specs = [pl.BlockSpec((1, tT, KC), lambda bb, tt: (bb, tt, 0)),
                pl.BlockSpec((KC, Cout), lambda bb, tt: (0, 0)),
                pl.BlockSpec((1, Cout), lambda bb, tt: (0, 0))]
    args = [x_taps, w2, b.reshape(1, Cout).astype(jnp.float32)]
    if has_pe:
        in_specs.append(pl.BlockSpec((1, tT, Cout), lambda bb, tt: (0, tt, 0)))
        args.append(pe2)

    out = pl.pallas_call(
        functools.partial(_conv_mm_kernel, has_pe=has_pe),
        grid=(B, Tp // tT),
        in_specs=in_specs,
        out_specs=pl.BlockSpec((1, tT, Cout), lambda bb, tt: (bb, tt, 0)),
        out_shape=jax.ShapeDtypeStruct((B, Tp, Cout), jnp.bfloat16),
        compiler_params=pltpu.CompilerParams(
            dimension_semantics=("parallel", "parallel"),
            vmem_limit_bytes=VMEM_LIMIT),
    )(*args)
    if Tp != T_out:
        out = out[:, :T_out, :]
    return out


# ----------------------------------------------------------------------------
# Transformer layers (post-norm, relu FFN), built on the kernels above
# ----------------------------------------------------------------------------
def encoder_layer(x, p, nhead):
    d = x.shape[-1]
    qkv = linear(x, p['sa_w_qkv'], p['sa_b_qkv'])               # fused QKV projection
    a = attention(qkv[..., :d], qkv[..., d:2 * d], qkv[..., 2 * d:], nhead=nhead)
    x = linear(a, p['sa_wo'], p['sa_bo'],
               residual=x, ln_w=p['norm1_w'], ln_b=p['norm1_b'])  # out-proj + add + LN
    h = linear(x, p['lin1_w'], p['lin1_b'], activation="relu")    # lin1 + ReLU fused
    x = linear(h, p['lin2_w'], p['lin2_b'],
               residual=x, ln_w=p['norm2_w'], ln_b=p['norm2_b'])  # lin2 + add + LN
    return x


def decoder_layer(x, mem, p, nhead, key_bias):
    d = x.shape[-1]
    qkv = linear(x, p['sa_w_qkv'], p['sa_b_qkv'])
    a = attention(qkv[..., :d], qkv[..., d:2 * d], qkv[..., 2 * d:],
                  nhead=nhead, causal=True, key_bias=key_bias)
    x = linear(a, p['sa_wo'], p['sa_bo'],
               residual=x, ln_w=p['norm1_w'], ln_b=p['norm1_b'])

    q = linear(x, p['ca_wq'], p['ca_bq'])
    kv = linear(mem, p['ca_w_kv'], p['ca_b_kv'])                 # fused KV projection
    a2 = attention(q, kv[..., :d], kv[..., d:], nhead=nhead)
    x = linear(a2, p['ca_wo'], p['ca_bo'],
               residual=x, ln_w=p['norm2_w'], ln_b=p['norm2_b'])

    h = linear(x, p['lin1_w'], p['lin1_b'], activation="relu")
    x = linear(h, p['lin2_w'], p['lin2_b'],
               residual=x, ln_w=p['norm3_w'], ln_b=p['norm3_b'])
    return x


def geowhisper_forward(params, src, input_ids, attention_mask, *, nhead):
    # audio front-end: conv1(s=1)+GELU, conv2(s=2)+GELU with sinusoidal PE fused in
    h = conv1d_gelu(src, params['conv1_w'], params['conv1_b'], stride=1)
    h = conv1d_gelu(h, params['conv2_w'], params['conv2_b'], stride=2,
                    pe=params['sin_pos'])

    # transformer encoder (no src masks)
    mem = h
    for lp in params['enc_layers']:
        mem = encoder_layer(mem, lp, nhead)
    mem = layer_norm(mem, params['enc_norm_w'], params['enc_norm_b'])

    # TODO(synk): token-embedding gather + learned-PE add stay in XLA (trivially small).
    B, Tt = input_ids.shape
    x = (params['emb_w'][input_ids] + params['learned_pos'][:Tt][None]).astype(jnp.bfloat16)

    # key-padding as a tiny (B,1,Tt) additive bias; causal mask is built in-kernel
    key_bias = jnp.where(attention_mask == 0, NEG_INF, 0.0).astype(jnp.float32)
    key_bias = key_bias.reshape(B, 1, Tt)

    for lp in params['dec_layers']:
        x = decoder_layer(x, mem, lp, nhead, key_bias)
    x = layer_norm(x, params['dec_norm_w'], params['dec_norm_b'])

    # tied output projection: logits = x @ emb_w.T + bias (emb_wT pre-transposed, bf16)
    return linear(x, params['emb_wT'], params['out_b'], out_dtype=jnp.float32)


# ----------------------------------------------------------------------------
# Deterministic parameter construction (weights pre-converted to bf16 once)
# ----------------------------------------------------------------------------
def sinusoidal_pe(length, d_model):
    pos = jnp.arange(length, dtype=jnp.float32)[:, None]
    div = jnp.exp(jnp.arange(0, d_model, 2, dtype=jnp.float32)
                  * (-math.log(10000.0) / d_model))
    pe = jnp.zeros((length, d_model), jnp.float32)
    pe = pe.at[:, 0::2].set(jnp.sin(pos * div))
    pe = pe.at[:, 1::2].set(jnp.cos(pos * div))
    return pe


def init_params(key, d_model, nhead, num_layers, max_length, audio_length,
                num_mel_bins, vocab):
    dff = d_model * 4
    scale = 1.0 / math.sqrt(d_model // nhead)     # folded into W_q (bias is zero)
    keys = iter(jax.random.split(key, 1024))

    def rnd(shape, scl=0.05):
        return scl * jax.random.normal(next(keys), shape, jnp.float32)

    def bf(x):
        return x.astype(jnp.bfloat16)

    def zeros(n):
        return jnp.zeros((n,), jnp.float32)

    def ln():
        return jnp.ones((d_model,), jnp.float32), zeros(d_model)

    def self_attn():
        wq = rnd((d_model, d_model)) * scale
        wk = rnd((d_model, d_model)); wv = rnd((d_model, d_model))
        return dict(sa_w_qkv=bf(jnp.concatenate([wq, wk, wv], axis=1)),
                    sa_b_qkv=zeros(3 * d_model),
                    sa_wo=bf(rnd((d_model, d_model))), sa_bo=zeros(d_model))

    def cross_attn():
        wk = rnd((d_model, d_model)); wv = rnd((d_model, d_model))
        return dict(ca_wq=bf(rnd((d_model, d_model)) * scale), ca_bq=zeros(d_model),
                    ca_w_kv=bf(jnp.concatenate([wk, wv], axis=1)),
                    ca_b_kv=zeros(2 * d_model),
                    ca_wo=bf(rnd((d_model, d_model))), ca_bo=zeros(d_model))

    enc_layers = []
    for _ in range(num_layers):
        n1w, n1b = ln(); n2w, n2b = ln()
        lp = dict(lin1_w=bf(rnd((d_model, dff))), lin1_b=zeros(dff),
                  lin2_w=bf(rnd((dff, d_model))), lin2_b=zeros(d_model),
                  norm1_w=n1w, norm1_b=n1b, norm2_w=n2w, norm2_b=n2b)
        lp.update(self_attn())
        enc_layers.append(lp)

    dec_layers = []
    for _ in range(num_layers):
        n1w, n1b = ln(); n2w, n2b = ln(); n3w, n3b = ln()
        lp = dict(lin1_w=bf(rnd((d_model, dff))), lin1_b=zeros(dff),
                  lin2_w=bf(rnd((dff, d_model))), lin2_b=zeros(d_model),
                  norm1_w=n1w, norm1_b=n1b, norm2_w=n2w, norm2_b=n2b,
                  norm3_w=n3w, norm3_b=n3b)
        lp.update(self_attn())
        lp.update(cross_attn())
        dec_layers.append(lp)

    enw, enb = ln(); dnw, dnb = ln()
    emb_w = rnd((vocab, d_model))

    return dict(
        # conv weights stored pre-flattened as (K*Cin, Cout) bf16 (tap-major, matches
        # the tap concatenation order in conv1d_gelu)
        conv1_w=bf(rnd((3, num_mel_bins, d_model)).reshape(3 * num_mel_bins, d_model)),
        conv1_b=zeros(d_model),
        conv2_w=bf(rnd((3, d_model, d_model)).reshape(3 * d_model, d_model)),
        conv2_b=zeros(d_model),
        sin_pos=sinusoidal_pe(audio_length // 2, d_model),
        emb_w=emb_w,                        # f32 table for the token-embedding gather
        emb_wT=bf(emb_w.T),                 # tied output projection, pre-transposed bf16
        out_b=zeros(vocab),
        learned_pos=rnd((max_length, d_model)),
        enc_layers=enc_layers, dec_layers=dec_layers,
        enc_norm_w=enw, enc_norm_b=enb, dec_norm_w=dnw, dec_norm_b=dnb)


# ----------------------------------------------------------------------------
if __name__ == "__main__":
    D_MODEL, NHEAD, NUM_LAYERS = 32, 4, 2
    MAX_LENGTH, AUDIO_LENGTH, NUM_MEL_BINS, VOCAB = 8, 16, 4, 50
    BATCH = 2

    key = jax.random.PRNGKey(0)
    k_par, k_src, k_ids = jax.random.split(key, 3)

    params = init_params(k_par, D_MODEL, NHEAD, NUM_LAYERS, MAX_LENGTH,
                         AUDIO_LENGTH, NUM_MEL_BINS, VOCAB)

    src = jax.random.normal(k_src, (BATCH, AUDIO_LENGTH, NUM_MEL_BINS), jnp.float32)
    input_ids = jax.random.randint(k_ids, (BATCH, MAX_LENGTH), 0, VOCAB)
    attention_mask = jnp.array([[1] * 8, [1] * 6 + [0] * 2], jnp.int32)

    fwd = jax.jit(functools.partial(geowhisper_forward, nhead=NHEAD))
    logits = fwd(params, src, input_ids, attention_mask)
    jax.block_until_ready(logits)

    assert logits.shape == (BATCH, MAX_LENGTH, VOCAB), logits.shape
    assert bool(jnp.all(jnp.isfinite(logits)))
    print("KERNEL_OK")
</pallas_src>

<mosaic_0001>
module attributes {stable_mosaic.version = 11 : i64} {
  func.func @_conv_mm_kernel(%arg0: i32, %arg1: i32, %arg2: memref<1x16x12xbf16, #tpu.memory_space<vmem>>, %arg3: memref<12x32xbf16, #tpu.memory_space<vmem>>, %arg4: memref<1x32xf32, #tpu.memory_space<vmem>>, %arg5: memref<1x16x32xbf16, #tpu.memory_space<vmem>>) attributes {dimension_semantics = [#tpu.dimension_semantics<parallel>, #tpu.dimension_semantics<parallel>], iteration_bounds = array<i64: 2, 1>, scalar_prefetch = 0 : i64, scratch_operands = 0 : i64, tpu.core_type = #tpu.core_type<tc>, window_params = [{transform_indices = @transform_0, window_bounds = array<i64: 1, 16, 12>}, {pipeline_mode = #tpu.pipeline_mode<synchronous>, transform_indices = @transform_1, window_bounds = array<i64: 12, 32>}, {pipeline_mode = #tpu.pipeline_mode<synchronous>, transform_indices = @transform_2, window_bounds = array<i64: 1, 32>}, {transform_indices = @transform_3, window_bounds = array<i64: 1, 16, 32>}]} {
    %c0 = arith.constant 0 : index
    %c0_0 = arith.constant 0 : index
    %c0_1 = arith.constant 0 : index
    %0 = vector.load %arg2[%c0, %c0_0, %c0_1] : memref<1x16x12xbf16, #tpu.memory_space<vmem>>, vector<1x16x12xbf16>
    %1 = vector.shape_cast %0 : vector<1x16x12xbf16> to vector<16x12xbf16>
    %c0_2 = arith.constant 0 : index
    %c0_3 = arith.constant 0 : index
    %2 = vector.load %arg3[%c0_2, %c0_3] : memref<12x32xbf16, #tpu.memory_space<vmem>>, vector<12x32xbf16>
    %cst = arith.constant dense<0.000000e+00> : vector<16x32xf32>
    %3 = tpu.matmul %1, %2, %cst {dimension_numbers = #tpu.dot_dimension_numbers<[1], [0], [0], [1], [0, 0, 1, 1], [], []>} : vector<16x12xbf16>, vector<12x32xbf16>, vector<16x32xf32> -> vector<16x32xf32>
    %c0_4 = arith.constant 0 : index
    %c0_5 = arith.constant 0 : index
    %4 = vector.load %arg4[%c0_4, %c0_5] : memref<1x32xf32, #tpu.memory_space<vmem>>, vector<1x32xf32>
    %5 = vector.broadcast %4 : vector<1x32xf32> to vector<16x32xf32>
    %6 = arith.addf %3, %5 : vector<16x32xf32>
    %cst_6 = arith.constant 5.000000e-01 : f32
    %7 = vector.broadcast %cst_6 : f32 to vector<16x32xf32>
    %8 = arith.mulf %7, %6 : vector<16x32xf32>
    %cst_7 = arith.constant 0.707106769 : f32
    %9 = vector.broadcast %cst_7 : f32 to vector<16x32xf32>
    %10 = arith.mulf %6, %9 : vector<16x32xf32>
    %11 = math.erf %10 : vector<16x32xf32>
    %cst_8 = arith.constant 1.000000e+00 : f32
    %12 = vector.broadcast %cst_8 : f32 to vector<16x32xf32>
    %13 = arith.addf %12, %11 : vector<16x32xf32>
    %14 = arith.mulf %8, %13 : vector<16x32xf32>
    %15 = arith.truncf %14 : vector<16x32xf32> to vector<16x32xbf16>
    %c0_9 = arith.constant 0 : index
    %c0_10 = arith.constant 0 : index
    %c0_11 = arith.constant 0 : index
    %16 = vector.load %arg5[%c0_9, %c0_10, %c0_11] : memref<1x16x32xbf16, #tpu.memory_space<vmem>>, vector<1x16x32xbf16>
    %17 = vector.shape_cast %16 : vector<1x16x32xbf16> to vector<16x32xbf16>
    %18 = vector.shape_cast %15 : vector<16x32xbf16> to vector<1x16x32xbf16>
    tpu.vector_store %arg5[%c0_9, %c0_10, %c0_11], %18 {strides = array<i32>} : memref<1x16x32xbf16, #tpu.memory_space<vmem>>, vector<1x16x32xbf16>,
    return
  }
  func.func @transform_0(%arg0: i32, %arg1: i32) -> (i32, i32, i32) {
    %c0_i32 = arith.constant 0 : i32
    %c0_i32_0 = arith.constant 0 : i32
    return %arg0, %arg1, %c0_i32 : i32, i32, i32
  }
  func.func @transform_1(%arg0: i32, %arg1: i32) -> (i32, i32) {
    %c0_i32 = arith.constant 0 : i32
    %c0_i32_0 = arith.constant 0 : i32
    %c0_i32_1 = arith.constant 0 : i32
    return %c0_i32, %c0_i32_0 : i32, i32
  }
  func.func @transform_2(%arg0: i32, %arg1: i32) -> (i32, i32) {
    %c0_i32 = arith.constant 0 : i32
    %c0_i32_0 = arith.constant 0 : i32
    %c0_i32_1 = arith.constant 0 : i32
    return %c0_i32, %c0_i32_0 : i32, i32
  }
  func.func @transform_3(%arg0: i32, %arg1: i32) -> (i32, i32, i32) {
    %c0_i32 = arith.constant 0 : i32
    %c0_i32_0 = arith.constant 0 : i32
    return %arg0, %arg1, %c0_i32 : i32, i32, i32
  }
}

module attributes {stable_mosaic.version = 11 : i64} {
  func.func @_conv_mm_kernel(%arg0: i32, %arg1: i32, %arg2: memref<1x8x96xbf16, #tpu.memory_space<vmem>>, %arg3: memref<96x32xbf16, #tpu.memory_space<vmem>>, %arg4: memref<1x32xf32, #tpu.memory_space<vmem>>, %arg5: memref<1x8x32xf32, #tpu.memory_space<vmem>>, %arg6: memref<1x8x32xbf16, #tpu.memory_space<vmem>>) attributes {dimension_semantics = [#tpu.dimension_semantics<parallel>, #tpu.dimension_semantics<parallel>], iteration_bounds = array<i64: 2, 1>, scalar_prefetch = 0 : i64, scratch_operands = 0 : i64, tpu.core_type = #tpu.core_type<tc>, window_params = [{transform_indices = @transform_0, window_bounds = array<i64: 1, 8, 96>}, {pipeline_mode = #tpu.pipeline_mode<synchronous>, transform_indices = @transform_1, window_bounds = array<i64: 96, 32>}, {pipeline_mode = #tpu.pipeline_mode<synchronous>, transform_indices = @transform_2, window_bounds = array<i64: 1, 32>}, {transform_indices = @transform_3, window_bounds = array<i64: 1, 8, 32>}, {transform_indices = @transform_4, window_bounds = array<i64: 1, 8, 32>}]} {
    %c0 = arith.constant 0 : index
    %c0_0 = arith.constant 0 : index
    %c0_1 = arith.constant 0 : index
    %0 = vector.load %arg2[%c0, %c0_0, %c0_1] : memref<1x8x96xbf16, #tpu.memory_space<vmem>>, vector<1x8x96xbf16>
    %1 = vector.shape_cast %0 : vector<1x8x96xbf16> to vector<8x96xbf16>
    %c0_2 = arith.constant 0 : index
    %c0_3 = arith.constant 0 : index
    %2 = vector.load %arg3[%c0_2, %c0_3] : memref<96x32xbf16, #tpu.memory_space<vmem>>, vector<96x32xbf16>
    %cst = arith.constant dense<0.000000e+00> : vector<8x32xf32>
    %3 = tpu.matmul %1, %2, %cst {dimension_numbers = #tpu.dot_dimension_numbers<[1], [0], [0], [1], [0, 0, 1, 1], [], []>} : vector<8x96xbf16>, vector<96x32xbf16>, vector<8x32xf32> -> vector<8x32xf32>
    %c0_4 = arith.constant 0 : index
    %c0_5 = arith.constant 0 : index
    %4 = vector.load %arg4[%c0_4, %c0_5] : memref<1x32xf32, #tpu.memory_space<vmem>>, vector<1x32xf32>
    %5 = vector.broadcast %4 : vector<1x32xf32> to vector<8x32xf32>
    %6 = arith.addf %3, %5 : vector<8x32xf32>
    %cst_6 = arith.constant 5.000000e-01 : f32
    %7 = vector.broadcast %cst_6 : f32 to vector<8x32xf32>
    %8 = arith.mulf %7, %6 : vector<8x32xf32>
    %cst_7 = arith.constant 0.707106769 : f32
    %9 = vector.broadcast %cst_7 : f32 to vector<8x32xf32>
    %10 = arith.mulf %6, %9 : vector<8x32xf32>
    %11 = math.erf %10 : vector<8x32xf32>
    %cst_8 = arith.constant 1.000000e+00 : f32
    %12 = vector.broadcast %cst_8 : f32 to vector<8x32xf32>
    %13 = arith.addf %12, %11 : vector<8x32xf32>
    %14 = arith.mulf %8, %13 : vector<8x32xf32>
    %c0_9 = arith.constant 0 : index
    %c0_10 = arith.constant 0 : index
    %c0_11 = arith.constant 0 : index
    %15 = vector.load %arg5[%c0_9, %c0_10, %c0_11] : memref<1x8x32xf32, #tpu.memory_space<vmem>>, vector<1x8x32xf32>
    %16 = vector.shape_cast %15 : vector<1x8x32xf32> to vector<8x32xf32>
    %17 = arith.addf %14, %16 : vector<8x32xf32>
    %18 = arith.truncf %17 : vector<8x32xf32> to vector<8x32xbf16>
    %c0_12 = arith.constant 0 : index
    %c0_13 = arith.constant 0 : index
    %c0_14 = arith.constant 0 : index
    %19 = vector.load %arg6[%c0_12, %c0_13, %c0_14] : memref<1x8x32xbf16, #tpu.memory_space<vmem>>, vector<1x8x32xbf16>
    %20 = vector.shape_cast %19 : vector<1x8x32xbf16> to vector<8x32xbf16>
    %21 = vector.shape_cast %18 : vector<8x32xbf16> to vector<1x8x32xbf16>
    tpu.vector_store %arg6[%c0_12, %c0_13, %c0_14], %21 {strides = array<i32>} : memref<1x8x32xbf16, #tpu.memory_space<vmem>>, vector<1x8x32xbf16>,
    return
  }
  func.func @transform_0(%arg0: i32, %arg1: i32) -> (i32, i32, i32) {
    %c0_i32 = arith.constant 0 : i32
    %c0_i32_0 = arith.constant 0 : i32
    return %arg0, %arg1, %c0_i32 : i32, i32, i32
  }
  func.func @transform_1(%arg0: i32, %arg1: i32) -> (i32, i32) {
    %c0_i32 = arith.constant 0 : i32
    %c0_i32_0 = arith.constant 0 : i32
    %c0_i32_1 = arith.constant 0 : i32
    return %c0_i32, %c0_i32_0 : i32, i32
  }
  func.func @transform_2(%arg0: i32, %arg1: i32) -> (i32, i32) {
    %c0_i32 = arith.constant 0 : i32
    %c0_i32_0 = arith.constant 0 : i32
    %c0_i32_1 = arith.constant 0 : i32
    return %c0_i32, %c0_i32_0 : i32, i32
  }
  func.func @transform_3(%arg0: i32, %arg1: i32) -> (i32, i32, i32) {
    %c0_i32 = arith.constant 0 : i32
    %c0_i32_0 = arith.constant 0 : i32
    %c0_i32_1 = arith.constant 0 : i32
    return %c0_i32, %arg1, %c0_i32_0 : i32, i32, i32
  }
  func.func @transform_4(%arg0: i32, %arg1: i32) -> (i32, i32, i32) {
    %c0_i32 = arith.constant 0 : i32
    %c0_i32_0 = arith.constant 0 : i32
    return %arg0, %arg1, %c0_i32 : i32, i32, i32
  }
}

module attributes {stable_mosaic.version = 11 : i64} {
  func.func @_linear_kernel(%arg0: i32, %arg1: i32, %arg2: i32, %arg3: memref<16x32xbf16, #tpu.memory_space<vmem>>, %arg4: memref<32x96xbf16, #tpu.memory_space<vmem>>, %arg5: memref<1x96xf32, #tpu.memory_space<vmem>>, %arg6: memref<16x96xbf16, #tpu.memory_space<vmem>>) attributes {dimension_semantics = [#tpu.dimension_semantics<parallel>, #tpu.dimension_semantics<parallel>, #tpu.dimension_semantics<arbitrary>], iteration_bounds = array<i64: 1, 1, 1>, scalar_prefetch = 0 : i64, scratch_operands = 0 : i64, tpu.core_type = #tpu.core_type<tc>, window_params = [{transform_indices = @transform_0, window_bounds = array<i64: 16, 32>}, {transform_indices = @transform_1, window_bounds = array<i64: 32, 96>}, {transform_indices = @transform_2, window_bounds = array<i64: 1, 96>}, {transform_indices = @transform_3, window_bounds = array<i64: 16, 96>}]} {
    %c0 = arith.constant 0 : index
    %c0_0 = arith.constant 0 : index
    %0 = vector.load %arg3[%c0, %c0_0] : memref<16x32xbf16, #tpu.memory_space<vmem>>, vector<16x32xbf16>
    %c0_1 = arith.constant 0 : index
    %c0_2 = arith.constant 0 : index
    %1 = vector.load %arg4[%c0_1, %c0_2] : memref<32x96xbf16, #tpu.memory_space<vmem>>, vector<32x96xbf16>
    %cst = arith.constant dense<0.000000e+00> : vector<16x96xf32>
    %2 = tpu.matmul %0, %1, %cst {dimension_numbers = #tpu.dot_dimension_numbers<[1], [0], [0], [1], [0, 0, 1, 1], [], []>} : vector<16x32xbf16>, vector<32x96xbf16>, vector<16x96xf32> -> vector<16x96xf32>
    %c0_3 = arith.constant 0 : index
    %c0_4 = arith.constant 0 : index
    %3 = vector.load %arg5[%c0_3, %c0_4] : memref<1x96xf32, #tpu.memory_space<vmem>>, vector<1x96xf32>
    %4 = vector.broadcast %3 : vector<1x96xf32> to vector<16x96xf32>
    %5 = arith.addf %2, %4 : vector<16x96xf32>
    %6 = arith.truncf %5 : vector<16x96xf32> to vector<16x96xbf16>
    %c0_5 = arith.constant 0 : index
    %c0_6 = arith.constant 0 : index
    %7 = vector.load %arg6[%c0_5, %c0_6] : memref<16x96xbf16, #tpu.memory_space<vmem>>, vector<16x96xbf16>
    tpu.vector_store %arg6[%c0_5, %c0_6], %6 {strides = array<i32>} : memref<16x96xbf16, #tpu.memory_space<vmem>>, vector<16x96xbf16>,
    return
  }
  func.func @transform_0(%arg0: i32, %arg1: i32, %arg2: i32) -> (i32, i32) {
    %c0_i32 = arith.constant 0 : i32
    return %arg0, %arg2 : i32, i32
  }
  func.func @transform_1(%arg0: i32, %arg1: i32, %arg2: i32) -> (i32, i32) {
    %c0_i32 = arith.constant 0 : i32
    return %arg2, %arg1 : i32, i32
  }
  func.func @transform_2(%arg0: i32, %arg1: i32, %arg2: i32) -> (i32, i32) {
    %c0_i32 = arith.constant 0 : i32
    %c0_i32_0 = arith.constant 0 : i32
    return %c0_i32, %arg1 : i32, i32
  }
  func.func @transform_3(%arg0: i32, %arg1: i32, %arg2: i32) -> (i32, i32) {
    %c0_i32 = arith.constant 0 : i32
    return %arg0, %arg1 : i32, i32
  }
}

module attributes {stable_mosaic.version = 11 : i64} {
  func.func @_attention_kernel(%arg0: i32, %arg1: i32, %arg2: memref<1x8x32xbf16, #tpu.memory_space<vmem>>, %arg3: memref<1x8x32xbf16, #tpu.memory_space<vmem>>, %arg4: memref<1x8x32xbf16, #tpu.memory_space<vmem>>, %arg5: memref<1x8x32xbf16, #tpu.memory_space<vmem>>, %arg6: memref<8x32xf32, #tpu.memory_space<vmem>>) attributes {dimension_semantics = [#tpu.dimension_semantics<parallel>, #tpu.dimension_semantics<parallel>], iteration_bounds = array<i64: 2, 1>, scalar_prefetch = 0 : i64, scratch_operands = 1 : i64, tpu.core_type = #tpu.core_type<tc>, window_params = [{transform_indices = @transform_0, window_bounds = array<i64: 1, 8, 32>}, {transform_indices = @transform_1, window_bounds = array<i64: 1, 8, 32>}, {transform_indices = @transform_2, window_bounds = array<i64: 1, 8, 32>}, {transform_indices = @transform_3, window_bounds = array<i64: 1, 8, 32>}]} {
    %c0 = arith.constant 0 : index
    %c0_0 = arith.constant 0 : index
    %c0_1 = arith.constant 0 : index
    %0 = vector.load %arg2[%c0, %c0_0, %c0_1] : memref<1x8x32xbf16, #tpu.memory_space<vmem>>, vector<1x8x8xbf16>
    %1 = vector.shape_cast %0 : vector<1x8x8xbf16> to vector<8x8xbf16>
    %c0_2 = arith.constant 0 : index
    %c0_3 = arith.constant 0 : index
    %c0_4 = arith.constant 0 : index
    %2 = vector.load %arg3[%c0_2, %c0_3, %c0_4] : memref<1x8x32xbf16, #tpu.memory_space<vmem>>, vector<1x8x8xbf16>
    %3 = vector.shape_cast %2 : vector<1x8x8xbf16> to vector<8x8xbf16>
    %c0_5 = arith.constant 0 : index
    %c0_6 = arith.constant 0 : index
    %c0_7 = arith.constant 0 : index
    %4 = vector.load %arg4[%c0_5, %c0_6, %c0_7] : memref<1x8x32xbf16, #tpu.memory_space<vmem>>, vector<1x8x8xbf16>
    %5 = vector.shape_cast %4 : vector<1x8x8xbf16> to vector<8x8xbf16>
    %cst = arith.constant dense<0.000000e+00> : vector<8x8xf32>
    %6 = tpu.matmul %1, %3, %cst {dimension_numbers = #tpu.dot_dimension_numbers<[1], [1], [0], [0], [0, 0, 1, 0], [], []>} : vector<8x8xbf16>, vector<8x8xbf16>, vector<8x8xf32> -> vector<8x8xf32>
    %cst_8 = arith.constant dense<0xFF800000> : vector<8xf32>
    %7 = vector.multi_reduction <maximumf>, %6, %cst_8 [1] : vector<8x8xf32> to vector<8xf32>
    %8 = vector.shape_cast %7 : vector<8xf32> to vector<8x1xf32>
    %9 = vector.broadcast %8 : vector<8x1xf32> to vector<8x8xf32>
    %10 = arith.subf %6, %9 : vector<8x8xf32>
    %11 = math.exp %10 : vector<8x8xf32>
    %cst_9 = arith.constant dense<0.000000e+00> : vector<8xf32>
    %12 = vector.multi_reduction <add>, %11, %cst_9 [1] : vector<8x8xf32> to vector<8xf32>
    %13 = vector.shape_cast %12 : vector<8xf32> to vector<8x1xf32>
    %14 = arith.truncf %11 : vector<8x8xf32> to vector<8x8xbf16>
    %cst_10 = arith.constant dense<0.000000e+00> : vector<8x8xf32>
    %15 = tpu.matmul %14, %5, %cst_10 {dimension_numbers = #tpu.dot_dimension_numbers<[1], [0], [0], [1], [0, 0, 1, 1], [], []>} : vector<8x8xbf16>, vector<8x8xbf16>, vector<8x8xf32> -> vector<8x8xf32>
    %16 = vector.broadcast %13 : vector<8x1xf32> to vector<8x8xf32>
    %17 = arith.divf %15, %16 : vector<8x8xf32>
    %c0_11 = arith.constant 0 : index
    %c0_12 = arith.constant 0 : index
    %18 = vector.load %arg6[%c0_11, %c0_12] : memref<8x32xf32, #tpu.memory_space<vmem>>, vector<8x8xf32>
    tpu.vector_store %arg6[%c0_11, %c0_12], %17 {strides = array<i32>} : memref<8x32xf32, #tpu.memory_space<vmem>>, vector<8x8xf32>,
    %c0_13 = arith.constant 0 : index
    %c0_14 = arith.constant 0 : index
    %c8 = arith.constant 8 : index
    %19 = vector.load %arg2[%c0_13, %c0_14, %c8] : memref<1x8x32xbf16, #tpu.memory_space<vmem>>, vector<1x8x8xbf16>
    %20 = vector.shape_cast %19 : vector<1x8x8xbf16> to vector<8x8xbf16>
    %c0_15 = arith.constant 0 : index
    %c0_16 = arith.constant 0 : index
    %c8_17 = arith.constant 8 : index
    %21 = vector.load %arg3[%c0_15, %c0_16, %c8_17] : memref<1x8x32xbf16, #tpu.memory_space<vmem>>, vector<1x8x8xbf16>
    %22 = vector.shape_cast %21 : vector<1x8x8xbf16> to vector<8x8xbf16>
    %c0_18 = arith.constant 0 : index
    %c0_19 = arith.constant 0 : index
    %c8_20 = arith.constant 8 : index
    %23 = vector.load %arg4[%c0_18, %c0_19, %c8_20] : memref<1x8x32xbf16, #tpu.memory_space<vmem>>, vector<1x8x8xbf16>
    %24 = vector.shape_cast %23 : vector<1x8x8xbf16> to vector<8x8xbf16>
    %cst_21 = arith.constant dense<0.000000e+00> : vector<8x8xf32>
    %25 = tpu.matmul %20, %22, %cst_21 {dimension_numbers = #tpu.dot_dimension_numbers<[1], [1], [0], [0], [0, 0, 1, 0], [], []>} : vector<8x8xbf16>, vector<8x8xbf16>, vector<8x8xf32> -> vector<8x8xf32>
    %cst_22 = arith.constant dense<0xFF800000> : vector<8xf32>
    %26 = vector.multi_reduction <maximumf>, %25, %cst_22 [1] : vector<8x8xf32> to vector<8xf32>
    %27 = vector.shape_cast %26 : vector<8xf32> to vector<8x1xf32>
    %28 = vector.broadcast %27 : vector<8x1xf32> to vector<8x8xf32>
    %29 = arith.subf %25, %28 : vector<8x8xf32>
    %30 = math.exp %29 : vector<8x8xf32>
    %cst_23 = arith.constant dense<0.000000e+00> : vector<8xf32>
    %31 = vector.multi_reduction <add>, %30, %cst_23 [1] : vector<8x8xf32> to vector<8xf32>
    %32 = vector.shape_cast %31 : vector<8xf32> to vector<8x1xf32>
    %33 = arith.truncf %30 : vector<8x8xf32> to vector<8x8xbf16>
    %cst_24 = arith.constant dense<0.000000e+00> : vector<8x8xf32>
    %34 = tpu.matmul %33, %24, %cst_24 {dimension_numbers = #tpu.dot_dimension_numbers<[1], [0], [0], [1], [0, 0, 1, 1], [], []>} : vector<8x8xbf16>, vector<8x8xbf16>, vector<8x8xf32> -> vector<8x8xf32>
    %35 = vector.broadcast %32 : vector<8x1xf32> to vector<8x8xf32>
    %36 = arith.divf %34, %35 : vector<8x8xf32>
    %c0_25 = arith.constant 0 : index
    %c8_26 = arith.constant 8 : index
    %37 = vector.load %arg6[%c0_25, %c8_26] : memref<8x32xf32, #tpu.memory_space<vmem>>, vector<8x8xf32>
    tpu.vector_store %arg6[%c0_25, %c8_26], %36 {strides = array<i32>} : memref<8x32xf32, #tpu.memory_space<vmem>>, vector<8x8xf32>,
    %c0_27 = arith.constant 0 : index
    %c0_28 = arith.constant 0 : index
    %c16 = arith.constant 16 : index
    %38 = vector.load %arg2[%c0_27, %c0_28, %c16] : memref<1x8x32xbf16, #tpu.memory_space<vmem>>, vector<1x8x8xbf16>
    %39 = vector.shape_cast %38 : vector<1x8x8xbf16> to vector<8x8xbf16>
    %c0_29 = arith.constant 0 : index
    %c0_30 = arith.constant 0 : index
    %c16_31 = arith.constant 16 : index
    %40 = vector.load %arg3[%c0_29, %c0_30, %c16_31] : memref<1x8x32xbf16, #tpu.memory_space<vmem>>, vector<1x8x8xbf16>
    %41 = vector.shape_cast %40 : vector<1x8x8xbf16> to vector<8x8xbf16>
    %c0_32 = arith.constant 0 : index
    %c0_33 = arith.constant 0 : index
    %c16_34 = arith.constant 16 : index
    %42 = vector.load %arg4[%c0_32, %c0_33, %c16_34] : memref<1x8x32xbf16, #tpu.memory_space<vmem>>, vector<1x8x8xbf16>
    %43 = vector.shape_cast %42 : vector<1x8x8xbf16> to vector<8x8xbf16>
    %cst_35 = arith.constant dense<0.000000e+00> : vector<8x8xf32>
    %44 = tpu.matmul %39, %41, %cst_35 {dimension_numbers = #tpu.dot_dimension_numbers<[1], [1], [0], [0], [0, 0, 1, 0], [], []>} : vector<8x8xbf16>, vector<8x8xbf16>, vector<8x8xf32> -> vector<8x8xf32>
    %cst_36 = arith.constant dense<0xFF800000> : vector<8xf32>
    %45 = vector.multi_reduction <maximumf>, %44, %cst_36 [1] : vector<8x8xf32> to vector<8xf32>
    %46 = vector.shape_cast %45 : vector<8xf32> to vector<8x1xf32>
    %47 = vector.broadcast %46 : vector<8x1xf32> to vector<8x8xf32>
    %48 = arith.subf %44, %47 : vector<8x8xf32>
    %49 = math.exp %48 : vector<8x8xf32>
    %cst_37 = arith.constant dense<0.000000e+00> : vector<8xf32>
    %50 = vector.multi_reduction <add>, %49, %cst_37 [1] : vector<8x8xf32> to vector<8xf32>
    %51 = vector.shape_cast %50 : vector<8xf32> to vector<8x1xf32>
    %52 = arith.truncf %49 : vector<8x8xf32> to vector<8x8xbf16>
    %cst_38 = arith.constant dense<0.000000e+00> : vector<8x8xf32>
    %53 = tpu.matmul %52, %43, %cst_38 {dimension_numbers = #tpu.dot_dimension_numbers<[1], [0], [0], [1], [0, 0, 1, 1], [], []>} : vector<8x8xbf16>, vector<8x8xbf16>, vector<8x8xf32> -> vector<8x8xf32>
    %54 = vector.broadcast %51 : vector<8x1xf32> to vector<8x8xf32>
    %55 = arith.divf %53, %54 : vector<8x8xf32>
    %c0_39 = arith.constant 0 : index
    %c16_40 = arith.constant 16 : index
    %56 = vector.load %arg6[%c0_39, %c16_40] : memref<8x32xf32, #tpu.memory_space<vmem>>, vector<8x8xf32>
    tpu.vector_store %arg6[%c0_39, %c16_40], %55 {strides = array<i32>} : memref<8x32xf32, #tpu.memory_space<vmem>>, vector<8x8xf32>,
    %c0_41 = arith.constant 0 : index
    %c0_42 = arith.constant 0 : index
    %c24 = arith.constant 24 : index
    %57 = vector.load %arg2[%c0_41, %c0_42, %c24] : memref<1x8x32xbf16, #tpu.memory_space<vmem>>, vector<1x8x8xbf16>
    %58 = vector.shape_cast %57 : vector<1x8x8xbf16> to vector<8x8xbf16>
    %c0_43 = arith.constant 0 : index
    %c0_44 = arith.constant 0 : index
    %c24_45 = arith.constant 24 : index
    %59 = vector.load %arg3[%c0_43, %c0_44, %c24_45] : memref<1x8x32xbf16, #tpu.memory_space<vmem>>, vector<1x8x8xbf16>
    %60 = vector.shape_cast %59 : vector<1x8x8xbf16> to vector<8x8xbf16>
    %c0_46 = arith.constant 0 : index
    %c0_47 = arith.constant 0 : index
    %c24_48 = arith.constant 24 : index
    %61 = vector.load %arg4[%c0_46, %c0_47, %c24_48] : memref<1x8x32xbf16, #tpu.memory_space<vmem>>, vector<1x8x8xbf16>
    %62 = vector.shape_cast %61 : vector<1x8x8xbf16> to vector<8x8xbf16>
    %cst_49 = arith.constant dense<0.000000e+00> : vector<8x8xf32>
    %63 = tpu.matmul %58, %60, %cst_49 {dimension_numbers = #tpu.dot_dimension_numbers<[1], [1], [0], [0], [0, 0, 1, 0], [], []>} : vector<8x8xbf16>, vector<8x8xbf16>, vector<8x8xf32> -> vector<8x8xf32>
    %cst_50 = arith.constant dense<0xFF800000> : vector<8xf32>
    %64 = vector.multi_reduction <maximumf>, %63, %cst_50 [1] : vector<8x8xf32> to vector<8xf32>
    %65 = vector.shape_cast %64 : vector<8xf32> to vector<8x1xf32>
    %66 = vector.broadcast %65 : vector<8x1xf32> to vector<8x8xf32>
    %67 = arith.subf %63, %66 : vector<8x8xf32>
    %68 = math.exp %67 : vector<8x8xf32>
    %cst_51 = arith.constant dense<0.000000e+00> : vector<8xf32>
    %69 = vector.multi_reduction <add>, %68, %cst_51 [1] : vector<8x8xf32> to vector<8xf32>
    %70 = vector.shape_cast %69 : vector<8xf32> to vector<8x1xf32>
    %71 = arith.truncf %68 : vector<8x8xf32> to vector<8x8xbf16>
    %cst_52 = arith.constant dense<0.000000e+00> : vector<8x8xf32>
    %72 = tpu.matmul %71, %62, %cst_52 {dimension_numbers = #tpu.dot_dimension_numbers<[1], [0], [0], [1], [0, 0, 1, 1], [], []>} : vector<8x8xbf16>, vector<8x8xbf16>, vector<8x8xf32> -> vector<8x8xf32>
    %73 = vector.broadcast %70 : vector<8x1xf32> to vector<8x8xf32>
    %74 = arith.divf %72, %73 : vector<8x8xf32>
    %c0_53 = arith.constant 0 : index
    %c24_54 = arith.constant 24 : index
    %75 = vector.load %arg6[%c0_53, %c24_54] : memref<8x32xf32, #tpu.memory_space<vmem>>, vector<8x8xf32>
    tpu.vector_store %arg6[%c0_53, %c24_54], %74 {strides = array<i32>} : memref<8x32xf32, #tpu.memory_space<vmem>>, vector<8x8xf32>,
    %c0_55 = arith.constant 0 : index
    %c0_56 = arith.constant 0 : index
    %76 = vector.load %arg6[%c0_55, %c0_56] : memref<8x32xf32, #tpu.memory_space<vmem>>, vector<8x32xf32>
    %77 = arith.truncf %76 : vector<8x32xf32> to vector<8x32xbf16>
    %c0_57 = arith.constant 0 : index
    %c0_58 = arith.constant 0 : index
    %c0_59 = arith.constant 0 : index
    %78 = vector.load %arg5[%c0_57, %c0_58, %c0_59] : memref<1x8x32xbf16, #tpu.memory_space<vmem>>, vector<1x8x32xbf16>
    %79 = vector.shape_cast %78 : vector<1x8x32xbf16> to vector<8x32xbf16>
    %80 = vector.shape_cast %77 : vector<8x32xbf16> to vector<1x8x32xbf16>
    tpu.vector_store %arg5[%c0_57, %c0_58, %c0_59], %80 {strides = array<i32>} : memref<1x8x32xbf16, #tpu.memory_space<vmem>>, vector<1x8x32xbf16>,
    return
  }
  func.func @transform_0(%arg0: i32, %arg1: i32) -> (i32, i32, i32) {
    %c0_i32 = arith.constant 0 : i32
    %c0_i32_0 = arith.constant 0 : i32
    return %arg0, %arg1, %c0_i32 : i32, i32, i32
  }
  func.func @transform_1(%arg0: i32, %arg1: i32) -> (i32, i32, i32) {
    %c0_i32 = arith.constant 0 : i32
    %c0_i32_0 = arith.constant 0 : i32
    %c0_i32_1 = arith.constant 0 : i32
    return %arg0, %c0_i32, %c0_i32_0 : i32, i32, i32
  }
  func.func @transform_2(%arg0: i32, %arg1: i32) -> (i32, i32, i32) {
    %c0_i32 = arith.constant 0 : i32
    %c0_i32_0 = arith.constant 0 : i32
    %c0_i32_1 = arith.constant 0 : i32
    return %arg0, %c0_i32, %c0_i32_0 : i32, i32, i32
  }
  func.func @transform_3(%arg0: i32, %arg1: i32) -> (i32, i32, i32) {
    %c0_i32 = arith.constant 0 : i32
    %c0_i32_0 = arith.constant 0 : i32
    return %arg0, %arg1, %c0_i32 : i32, i32, i32
  }
}

module attributes {stable_mosaic.version = 11 : i64} {
  func.func @_linear_ln_kernel(%arg0: i32, %arg1: i32, %arg2: i32, %arg3: memref<16x32xbf16, #tpu.memory_space<vmem>>, %arg4: memref<32x32xbf16, #tpu.memory_space<vmem>>, %arg5: memref<1x32xf32, #tpu.memory_space<vmem>>, %arg6: memref<16x32xbf16, #tpu.memory_space<vmem>>, %arg7: memref<1x32xf32, #tpu.memory_space<vmem>>, %arg8: memref<1x32xf32, #tpu.memory_space<vmem>>, %arg9: memref<16x32xbf16, #tpu.memory_space<vmem>>) attributes {dimension_semantics = [#tpu.dimension_semantics<parallel>, #tpu.dimension_semantics<parallel>, #tpu.dimension_semantics<arbitrary>], iteration_bounds = array<i64: 1, 1, 1>, scalar_prefetch = 0 : i64, scratch_operands = 0 : i64, tpu.core_type = #tpu.core_type<tc>, window_params = [{transform_indices = @transform_0, window_bounds = array<i64: 16, 32>}, {transform_indices = @transform_1, window_bounds = array<i64: 32, 32>}, {transform_indices = @transform_2, window_bounds = array<i64: 1, 32>}, {transform_indices = @transform_3, window_bounds = array<i64: 16, 32>}, {pipeline_mode = #tpu.pipeline_mode<synchronous>, transform_indices = @transform_4, window_bounds = array<i64: 1, 32>}, {pipeline_mode = #tpu.pipeline_mode<synchronous>, transform_indices = @transform_5, window_bounds = array<i64: 1, 32>}, {transform_indices = @transform_6, window_bounds = array<i64: 16, 32>}]} {
    %c0 = arith.constant 0 : index
    %c0_0 = arith.constant 0 : index
    %0 = vector.load %arg3[%c0, %c0_0] : memref<16x32xbf16, #tpu.memory_space<vmem>>, vector<16x32xbf16>
    %c0_1 = arith.constant 0 : index
    %c0_2 = arith.constant 0 : index
    %1 = vector.load %arg4[%c0_1, %c0_2] : memref<32x32xbf16, #tpu.memory_space<vmem>>, vector<32x32xbf16>
    %cst = arith.constant dense<0.000000e+00> : vector<16x32xf32>
    %2 = tpu.matmul %0, %1, %cst {dimension_numbers = #tpu.dot_dimension_numbers<[1], [0], [0], [1], [0, 0, 1, 1], [], []>} : vector<16x32xbf16>, vector<32x32xbf16>, vector<16x32xf32> -> vector<16x32xf32>
    %c0_3 = arith.constant 0 : index
    %c0_4 = arith.constant 0 : index
    %3 = vector.load %arg5[%c0_3, %c0_4] : memref<1x32xf32, #tpu.memory_space<vmem>>, vector<1x32xf32>
    %c0_5 = arith.constant 0 : index
    %c0_6 = arith.constant 0 : index
    %4 = vector.load %arg6[%c0_5, %c0_6] : memref<16x32xbf16, #tpu.memory_space<vmem>>, vector<16x32xbf16>
    %c0_7 = arith.constant 0 : index
    %c0_8 = arith.constant 0 : index
    %5 = vector.load %arg7[%c0_7, %c0_8] : memref<1x32xf32, #tpu.memory_space<vmem>>, vector<1x32xf32>
    %c0_9 = arith.constant 0 : index
    %c0_10 = arith.constant 0 : index
    %6 = vector.load %arg8[%c0_9, %c0_10] : memref<1x32xf32, #tpu.memory_space<vmem>>, vector<1x32xf32>
    %7 = vector.broadcast %3 : vector<1x32xf32> to vector<16x32xf32>
    %8 = arith.addf %2, %7 : vector<16x32xf32>
    %9 = arith.extf %4 : vector<16x32xbf16> to vector<16x32xf32>
    %10 = arith.addf %8, %9 : vector<16x32xf32>
    %cst_11 = arith.constant dense<0.000000e+00> : vector<16xf32>
    %11 = vector.multi_reduction <add>, %10, %cst_11 [1] : vector<16x32xf32> to vector<16xf32>
    %12 = vector.shape_cast %11 : vector<16xf32> to vector<16x1xf32>
    %cst_12 = arith.constant 3.200000e+01 : f32
    %13 = vector.broadcast %cst_12 : f32 to vector<16x1xf32>
    %14 = arith.divf %12, %13 : vector<16x1xf32>
    %15 = vector.broadcast %14 : vector<16x1xf32> to vector<16x32xf32>
    %16 = arith.subf %10, %15 : vector<16x32xf32>
    %17 = arith.mulf %16, %16 : vector<16x32xf32>
    %cst_13 = arith.constant dense<0.000000e+00> : vector<16xf32>
    %18 = vector.multi_reduction <add>, %17, %cst_13 [1] : vector<16x32xf32> to vector<16xf32>
    %19 = vector.shape_cast %18 : vector<16xf32> to vector<16x1xf32>
    %cst_14 = arith.constant 3.200000e+01 : f32
    %20 = vector.broadcast %cst_14 : f32 to vector<16x1xf32>
    %21 = arith.divf %19, %20 : vector<16x1xf32>
    %22 = vector.broadcast %14 : vector<16x1xf32> to vector<16x32xf32>
    %23 = arith.subf %10, %22 : vector<16x32xf32>
    %cst_15 = arith.constant 9.99999974E-6 : f32
    %24 = vector.broadcast %cst_15 : f32 to vector<16x1xf32>
    %25 = arith.addf %21, %24 : vector<16x1xf32>
    %26 = math.rsqrt %25 : vector<16x1xf32>
    %27 = vector.broadcast %26 : vector<16x1xf32> to vector<16x32xf32>
    %28 = arith.mulf %23, %27 : vector<16x32xf32>
    %29 = vector.broadcast %5 : vector<1x32xf32> to vector<16x32xf32>
    %30 = arith.mulf %28, %29 : vector<16x32xf32>
    %31 = vector.broadcast %6 : vector<1x32xf32> to vector<16x32xf32>
    %32 = arith.addf %30, %31 : vector<16x32xf32>
    %33 = arith.truncf %32 : vector<16x32xf32> to vector<16x32xbf16>
    %c0_16 = arith.constant 0 : index
    %c0_17 = arith.constant 0 : index
    %34 = vector.load %arg9[%c0_16, %c0_17] : memref<16x32xbf16, #tpu.memory_space<vmem>>, vector<16x32xbf16>
    tpu.vector_store %arg9[%c0_16, %c0_17], %33 {strides = array<i32>} : memref<16x32xbf16, #tpu.memory_space<vmem>>, vector<16x32xbf16>,
    return
  }
  func.func @transform_0(%arg0: i32, %arg1: i32, %arg2: i32) -> (i32, i32) {
    %c0_i32 = arith.constant 0 : i32
    return %arg0, %arg2 : i32, i32
  }
  func.func @transform_1(%arg0: i32, %arg1: i32, %arg2: i32) -> (i32, i32) {
    %c0_i32 = arith.constant 0 : i32
    return %arg2, %arg1 : i32, i32
  }
  func.func @transform_2(%arg0: i32, %arg1: i32, %arg2: i32) -> (i32, i32) {
    %c0_i32 = arith.constant 0 : i32
    %c0_i32_0 = arith.constant 0 : i32
    return %c0_i32, %arg1 : i32, i32
  }
  func.func @transform_3(%arg0: i32, %arg1: i32, %arg2: i32) -> (i32, i32) {
    %c0_i32 = arith.constant 0 : i32
    %c0_i32_0 = arith.constant 0 : i32
    return %arg0, %c0_i32 : i32, i32
  }
  func.func @transform_4(%arg0: i32, %arg1: i32, %arg2: i32) -> (i32, i32) {
    %c0_i32 = arith.constant 0 : i32
    %c0_i32_0 = arith.constant 0 : i32
    %c0_i32_1 = arith.constant 0 : i32
    return %c0_i32, %c0_i32_0 : i32, i32
  }
  func.func @transform_5(%arg0: i32, %arg1: i32, %arg2: i32) -> (i32, i32) {
    %c0_i32 = arith.constant 0 : i32
    %c0_i32_0 = arith.constant 0 : i32
    %c0_i32_1 = arith.constant 0 : i32
    return %c0_i32, %c0_i32_0 : i32, i32
  }
  func.func @transform_6(%arg0: i32, %arg1: i32, %arg2: i32) -> (i32, i32) {
    %c0_i32 = arith.constant 0 : i32
    return %arg0, %arg1 : i32, i32
  }
}

module attributes {stable_mosaic.version = 11 : i64} {
  func.func @_linear_kernel(%arg0: i32, %arg1: i32, %arg2: i32, %arg3: memref<16x32xbf16, #tpu.memory_space<vmem>>, %arg4: memref<32x128xbf16, #tpu.memory_space<vmem>>, %arg5: memref<1x128xf32, #tpu.memory_space<vmem>>, %arg6: memref<16x128xbf16, #tpu.memory_space<vmem>>) attributes {dimension_semantics = [#tpu.dimension_semantics<parallel>, #tpu.dimension_semantics<parallel>, #tpu.dimension_semantics<arbitrary>], iteration_bounds = array<i64: 1, 1, 1>, scalar_prefetch = 0 : i64, scratch_operands = 0 : i64, tpu.core_type = #tpu.core_type<tc>, window_params = [{transform_indices = @transform_0, window_bounds = array<i64: 16, 32>}, {transform_indices = @transform_1, window_bounds = array<i64: 32, 128>}, {transform_indices = @transform_2, window_bounds = array<i64: 1, 128>}, {transform_indices = @transform_3, window_bounds = array<i64: 16, 128>}]} {
    %c0 = arith.constant 0 : index
    %c0_0 = arith.constant 0 : index
    %0 = vector.load %arg3[%c0, %c0_0] : memref<16x32xbf16, #tpu.memory_space<vmem>>, vector<16x32xbf16>
    %c0_1 = arith.constant 0 : index
    %c0_2 = arith.constant 0 : index
    %1 = vector.load %arg4[%c0_1, %c0_2] : memref<32x128xbf16, #tpu.memory_space<vmem>>, vector<32x128xbf16>
    %cst = arith.constant dense<0.000000e+00> : vector<16x128xf32>
    %2 = tpu.matmul %0, %1, %cst {dimension_numbers = #tpu.dot_dimension_numbers<[1], [0], [0], [1], [0, 0, 1, 1], [], []>} : vector<16x32xbf16>, vector<32x128xbf16>, vector<16x128xf32> -> vector<16x128xf32>
    %c0_3 = arith.constant 0 : index
    %c0_4 = arith.constant 0 : index
    %3 = vector.load %arg5[%c0_3, %c0_4] : memref<1x128xf32, #tpu.memory_space<vmem>>, vector<1x128xf32>
    %4 = vector.broadcast %3 : vector<1x128xf32> to vector<16x128xf32>
    %5 = arith.addf %2, %4 : vector<16x128xf32>
    %cst_5 = arith.constant 0.000000e+00 : f32
    %6 = vector.broadcast %cst_5 : f32 to vector<16x128xf32>
    %7 = arith.maximumf %5, %6 : vector<16x128xf32>
    %8 = arith.truncf %7 : vector<16x128xf32> to vector<16x128xbf16>
    %c0_6 = arith.constant 0 : index
    %c0_7 = arith.constant 0 : index
    %9 = vector.load %arg6[%c0_6, %c0_7] : memref<16x128xbf16, #tpu.memory_space<vmem>>, vector<16x128xbf16>
    tpu.vector_store %arg6[%c0_6, %c0_7], %8 {strides = array<i32>} : memref<16x128xbf16, #tpu.memory_space<vmem>>, vector<16x128xbf16>,
    return
  }
  func.func @transform_0(%arg0: i32, %arg1: i32, %arg2: i32) -> (i32, i32) {
    %c0_i32 = arith.constant 0 : i32
    return %arg0, %arg2 : i32, i32
  }
  func.func @transform_1(%arg0: i32, %arg1: i32, %arg2: i32) -> (i32, i32) {
    %c0_i32 = arith.constant 0 : i32
    return %arg2, %arg1 : i32, i32
  }
  func.func @transform_2(%arg0: i32, %arg1: i32, %arg2: i32) -> (i32, i32) {
    %c0_i32 = arith.constant 0 : i32
    %c0_i32_0 = arith.constant 0 : i32
    return %c0_i32, %arg1 : i32, i32
  }
  func.func @transform_3(%arg0: i32, %arg1: i32, %arg2: i32) -> (i32, i32) {
    %c0_i32 = arith.constant 0 : i32
    return %arg0, %arg1 : i32, i32
  }
}

module attributes {stable_mosaic.version = 11 : i64} {
  func.func @_linear_ln_kernel(%arg0: i32, %arg1: i32, %arg2: i32, %arg3: memref<16x128xbf16, #tpu.memory_space<vmem>>, %arg4: memref<128x32xbf16, #tpu.memory_space<vmem>>, %arg5: memref<1x32xf32, #tpu.memory_space<vmem>>, %arg6: memref<16x32xbf16, #tpu.memory_space<vmem>>, %arg7: memref<1x32xf32, #tpu.memory_space<vmem>>, %arg8: memref<1x32xf32, #tpu.memory_space<vmem>>, %arg9: memref<16x32xbf16, #tpu.memory_space<vmem>>) attributes {dimension_semantics = [#tpu.dimension_semantics<parallel>, #tpu.dimension_semantics<parallel>, #tpu.dimension_semantics<arbitrary>], iteration_bounds = array<i64: 1, 1, 1>, scalar_prefetch = 0 : i64, scratch_operands = 0 : i64, tpu.core_type = #tpu.core_type<tc>, window_params = [{transform_indices = @transform_0, window_bounds = array<i64: 16, 128>}, {transform_indices = @transform_1, window_bounds = array<i64: 128, 32>}, {transform_indices = @transform_2, window_bounds = array<i64: 1, 32>}, {transform_indices = @transform_3, window_bounds = array<i64: 16, 32>}, {pipeline_mode = #tpu.pipeline_mode<synchronous>, transform_indices = @transform_4, window_bounds = array<i64: 1, 32>}, {pipeline_mode = #tpu.pipeline_mode<synchronous>, transform_indices = @transform_5, window_bounds = array<i64: 1, 32>}, {transform_indices = @transform_6, window_bounds = array<i64: 16, 32>}]} {
    %c0 = arith.constant 0 : index
    %c0_0 = arith.constant 0 : index
    %0 = vector.load %arg3[%c0, %c0_0] : memref<16x128xbf16, #tpu.memory_space<vmem>>, vector<16x128xbf16>
    %c0_1 = arith.constant 0 : index
    %c0_2 = arith.constant 0 : index
    %1 = vector.load %arg4[%c0_1, %c0_2] : memref<128x32xbf16, #tpu.memory_space<vmem>>, vector<128x32xbf16>
    %cst = arith.constant dense<0.000000e+00> : vector<16x32xf32>
    %2 = tpu.matmul %0, %1, %cst {dimension_numbers = #tpu.dot_dimension_numbers<[1], [0], [0], [1], [0, 0, 1, 1], [], []>} : vector<16x128xbf16>, vector<128x32xbf16>, vector<16x32xf32> -> vector<16x32xf32>
    %c0_3 = arith.constant 0 : index
    %c0_4 = arith.constant 0 : index
    %3 = vector.load %arg5[%c0_3, %c0_4] : memref<1x32xf32, #tpu.memory_space<vmem>>, vector<1x32xf32>
    %c0_5 = arith.constant 0 : index
    %c0_6 = arith.constant 0 : index
    %4 = vector.load %arg6[%c0_5, %c0_6] : memref<16x32xbf16, #tpu.memory_space<vmem>>, vector<16x32xbf16>
    %c0_7 = arith.constant 0 : index
    %c0_8 = arith.constant 0 : index
    %5 = vector.load %arg7[%c0_7, %c0_8] : memref<1x32xf32, #tpu.memory_space<vmem>>, vector<1x32xf32>
    %c0_9 = arith.constant 0 : index
    %c0_10 = arith.constant 0 : index
    %6 = vector.load %arg8[%c0_9, %c0_10] : memref<1x32xf32, #tpu.memory_space<vmem>>, vector<1x32xf32>
    %7 = vector.broadcast %3 : vector<1x32xf32> to vector<16x32xf32>
    %8 = arith.addf %2, %7 : vector<16x32xf32>
    %9 = arith.extf %4 : vector<16x32xbf16> to vector<16x32xf32>
    %10 = arith.addf %8, %9 : vector<16x32xf32>
    %cst_11 = arith.constant dense<0.000000e+00> : vector<16xf32>
    %11 = vector.multi_reduction <add>, %10, %cst_11 [1] : vector<16x32xf32> to vector<16xf32>
    %12 = vector.shape_cast %11 : vector<16xf32> to vector<16x1xf32>
    %cst_12 = arith.constant 3.200000e+01 : f32
    %13 = vector.broadcast %cst_12 : f32 to vector<16x1xf32>
    %14 = arith.divf %12, %13 : vector<16x1xf32>
    %15 = vector.broadcast %14 : vector<16x1xf32> to vector<16x32xf32>
    %16 = arith.subf %10, %15 : vector<16x32xf32>
    %17 = arith.mulf %16, %16 : vector<16x32xf32>
    %cst_13 = arith.constant dense<0.000000e+00> : vector<16xf32>
    %18 = vector.multi_reduction <add>, %17, %cst_13 [1] : vector<16x32xf32> to vector<16xf32>
    %19 = vector.shape_cast %18 : vector<16xf32> to vector<16x1xf32>
    %cst_14 = arith.constant 3.200000e+01 : f32
    %20 = vector.broadcast %cst_14 : f32 to vector<16x1xf32>
    %21 = arith.divf %19, %20 : vector<16x1xf32>
    %22 = vector.broadcast %14 : vector<16x1xf32> to vector<16x32xf32>
    %23 = arith.subf %10, %22 : vector<16x32xf32>
    %cst_15 = arith.constant 9.99999974E-6 : f32
    %24 = vector.broadcast %cst_15 : f32 to vector<16x1xf32>
    %25 = arith.addf %21, %24 : vector<16x1xf32>
    %26 = math.rsqrt %25 : vector<16x1xf32>
    %27 = vector.broadcast %26 : vector<16x1xf32> to vector<16x32xf32>
    %28 = arith.mulf %23, %27 : vector<16x32xf32>
    %29 = vector.broadcast %5 : vector<1x32xf32> to vector<16x32xf32>
    %30 = arith.mulf %28, %29 : vector<16x32xf32>
    %31 = vector.broadcast %6 : vector<1x32xf32> to vector<16x32xf32>
    %32 = arith.addf %30, %31 : vector<16x32xf32>
    %33 = arith.truncf %32 : vector<16x32xf32> to vector<16x32xbf16>
    %c0_16 = arith.constant 0 : index
    %c0_17 = arith.constant 0 : index
    %34 = vector.load %arg9[%c0_16, %c0_17] : memref<16x32xbf16, #tpu.memory_space<vmem>>, vector<16x32xbf16>
    tpu.vector_store %arg9[%c0_16, %c0_17], %33 {strides = array<i32>} : memref<16x32xbf16, #tpu.memory_space<vmem>>, vector<16x32xbf16>,
    return
  }
  func.func @transform_0(%arg0: i32, %arg1: i32, %arg2: i32) -> (i32, i32) {
    %c0_i32 = arith.constant 0 : i32
    return %arg0, %arg2 : i32, i32
  }
  func.func @transform_1(%arg0: i32, %arg1: i32, %arg2: i32) -> (i32, i32) {
    %c0_i32 = arith.constant 0 : i32
    return %arg2, %arg1 : i32, i32
  }
  func.func @transform_2(%arg0: i32, %arg1: i32, %arg2: i32) -> (i32, i32) {
    %c0_i32 = arith.constant 0 : i32
    %c0_i32_0 = arith.constant 0 : i32
    return %c0_i32, %arg1 : i32, i32
  }
  func.func @transform_3(%arg0: i32, %arg1: i32, %arg2: i32) -> (i32, i32) {
    %c0_i32 = arith.constant 0 : i32
    %c0_i32_0 = arith.constant 0 : i32
    return %arg0, %c0_i32 : i32, i32
  }
  func.func @transform_4(%arg0: i32, %arg1: i32, %arg2: i32) -> (i32, i32) {
    %c0_i32 = arith.constant 0 : i32
    %c0_i32_0 = arith.constant 0 : i32
    %c0_i32_1 = arith.constant 0 : i32
    return %c0_i32, %c0_i32_0 : i32, i32
  }
  func.func @transform_5(%arg0: i32, %arg1: i32, %arg2: i32) -> (i32, i32) {
    %c0_i32 = arith.constant 0 : i32
    %c0_i32_0 = arith.constant 0 : i32
    %c0_i32_1 = arith.constant 0 : i32
    return %c0_i32, %c0_i32_0 : i32, i32
  }
  func.func @transform_6(%arg0: i32, %arg1: i32, %arg2: i32) -> (i32, i32) {
    %c0_i32 = arith.constant 0 : i32
    return %arg0, %arg1 : i32, i32
  }
}

module attributes {stable_mosaic.version = 11 : i64} {
  func.func @_layer_norm_kernel(%arg0: i32, %arg1: memref<16x32xbf16, #tpu.memory_space<vmem>>, %arg2: memref<1x32xf32, #tpu.memory_space<vmem>>, %arg3: memref<1x32xf32, #tpu.memory_space<vmem>>, %arg4: memref<16x32xbf16, #tpu.memory_space<vmem>>) attributes {dimension_semantics = [#tpu.dimension_semantics<parallel>], iteration_bounds = array<i64: 1>, scalar_prefetch = 0 : i64, scratch_operands = 0 : i64, tpu.core_type = #tpu.core_type<tc>, window_params = [{transform_indices = @transform_0, window_bounds = array<i64: 16, 32>}, {pipeline_mode = #tpu.pipeline_mode<synchronous>, transform_indices = @transform_1, window_bounds = array<i64: 1, 32>}, {pipeline_mode = #tpu.pipeline_mode<synchronous>, transform_indices = @transform_2, window_bounds = array<i64: 1, 32>}, {transform_indices = @transform_3, window_bounds = array<i64: 16, 32>}]} {
    %c0 = arith.constant 0 : index
    %c0_0 = arith.constant 0 : index
    %0 = vector.load %arg1[%c0, %c0_0] : memref<16x32xbf16, #tpu.memory_space<vmem>>, vector<16x32xbf16>
    %1 = arith.extf %0 : vector<16x32xbf16> to vector<16x32xf32>
    %cst = arith.constant dense<0.000000e+00> : vector<16xf32>
    %2 = vector.multi_reduction <add>, %1, %cst [1] : vector<16x32xf32> to vector<16xf32>
    %3 = vector.shape_cast %2 : vector<16xf32> to vector<16x1xf32>
    %cst_1 = arith.constant 3.200000e+01 : f32
    %4 = vector.broadcast %cst_1 : f32 to vector<16x1xf32>
    %5 = arith.divf %3, %4 : vector<16x1xf32>
    %6 = vector.broadcast %5 : vector<16x1xf32> to vector<16x32xf32>
    %7 = arith.subf %1, %6 : vector<16x32xf32>
    %8 = arith.mulf %7, %7 : vector<16x32xf32>
    %cst_2 = arith.constant dense<0.000000e+00> : vector<16xf32>
    %9 = vector.multi_reduction <add>, %8, %cst_2 [1] : vector<16x32xf32> to vector<16xf32>
    %10 = vector.shape_cast %9 : vector<16xf32> to vector<16x1xf32>
    %cst_3 = arith.constant 3.200000e+01 : f32
    %11 = vector.broadcast %cst_3 : f32 to vector<16x1xf32>
    %12 = arith.divf %10, %11 : vector<16x1xf32>
    %13 = vector.broadcast %5 : vector<16x1xf32> to vector<16x32xf32>
    %14 = arith.subf %1, %13 : vector<16x32xf32>
    %cst_4 = arith.constant 9.99999974E-6 : f32
    %15 = vector.broadcast %cst_4 : f32 to vector<16x1xf32>
    %16 = arith.addf %12, %15 : vector<16x1xf32>
    %17 = math.rsqrt %16 : vector<16x1xf32>
    %18 = vector.broadcast %17 : vector<16x1xf32> to vector<16x32xf32>
    %19 = arith.mulf %14, %18 : vector<16x32xf32>
    %c0_5 = arith.constant 0 : index
    %c0_6 = arith.constant 0 : index
    %20 = vector.load %arg2[%c0_5, %c0_6] : memref<1x32xf32, #tpu.memory_space<vmem>>, vector<1x32xf32>
    %21 = vector.broadcast %20 : vector<1x32xf32> to vector<16x32xf32>
    %22 = arith.mulf %19, %21 : vector<16x32xf32>
    %c0_7 = arith.constant 0 : index
    %c0_8 = arith.constant 0 : index
    %23 = vector.load %arg3[%c0_7, %c0_8] : memref<1x32xf32, #tpu.memory_space<vmem>>, vector<1x32xf32>
    %24 = vector.broadcast %23 : vector<1x32xf32> to vector<16x32xf32>
    %25 = arith.addf %22, %24 : vector<16x32xf32>
    %26 = arith.truncf %25 : vector<16x32xf32> to vector<16x32xbf16>
    %c0_9 = arith.constant 0 : index
    %c0_10 = arith.constant 0 : index
    %27 = vector.load %arg4[%c0_9, %c0_10] : memref<16x32xbf16, #tpu.memory_space<vmem>>, vector<16x32xbf16>
    tpu.vector_store %arg4[%c0_9, %c0_10], %26 {strides = array<i32>} : memref<16x32xbf16, #tpu.memory_space<vmem>>, vector<16x32xbf16>,
    return
  }
  func.func @transform_0(%arg0: i32) -> (i32, i32) {
    %c0_i32 = arith.constant 0 : i32
    %c0_i32_0 = arith.constant 0 : i32
    return %arg0, %c0_i32 : i32, i32
  }
  func.func @transform_1(%arg0: i32) -> (i32, i32) {
    %c0_i32 = arith.constant 0 : i32
    %c0_i32_0 = arith.constant 0 : i32
    %c0_i32_1 = arith.constant 0 : i32
    return %c0_i32, %c0_i32_0 : i32, i32
  }
  func.func @transform_2(%arg0: i32) -> (i32, i32) {
    %c0_i32 = arith.constant 0 : i32
    %c0_i32_0 = arith.constant 0 : i32
    %c0_i32_1 = arith.constant 0 : i32
    return %c0_i32, %c0_i32_0 : i32, i32
  }
  func.func @transform_3(%arg0: i32) -> (i32, i32) {
    %c0_i32 = arith.constant 0 : i32
    %c0_i32_0 = arith.constant 0 : i32
    return %arg0, %c0_i32 : i32, i32
  }
}

module attributes {stable_mosaic.version = 11 : i64} {
  func.func @_linear_kernel(%arg0: i32, %arg1: i32, %arg2: i32, %arg3: memref<16x32xbf16, #tpu.memory_space<vmem>>, %arg4: memref<32x64xbf16, #tpu.memory_space<vmem>>, %arg5: memref<1x64xf32, #tpu.memory_space<vmem>>, %arg6: memref<16x64xbf16, #tpu.memory_space<vmem>>) attributes {dimension_semantics = [#tpu.dimension_semantics<parallel>, #tpu.dimension_semantics<parallel>, #tpu.dimension_semantics<arbitrary>], iteration_bounds = array<i64: 1, 1, 1>, scalar_prefetch = 0 : i64, scratch_operands = 0 : i64, tpu.core_type = #tpu.core_type<tc>, window_params = [{transform_indices = @transform_0, window_bounds = array<i64: 16, 32>}, {transform_indices = @transform_1, window_bounds = array<i64: 32, 64>}, {transform_indices = @transform_2, window_bounds = array<i64: 1, 64>}, {transform_indices = @transform_3, window_bounds = array<i64: 16, 64>}]} {
    %c0 = arith.constant 0 : index
    %c0_0 = arith.constant 0 : index
    %0 = vector.load %arg3[%c0, %c0_0] : memref<16x32xbf16, #tpu.memory_space<vmem>>, vector<16x32xbf16>
    %c0_1 = arith.constant 0 : index
    %c0_2 = arith.constant 0 : index
    %1 = vector.load %arg4[%c0_1, %c0_2] : memref<32x64xbf16, #tpu.memory_space<vmem>>, vector<32x64xbf16>
    %cst = arith.constant dense<0.000000e+00> : vector<16x64xf32>
    %2 = tpu.matmul %0, %1, %cst {dimension_numbers = #tpu.dot_dimension_numbers<[1], [0], [0], [1], [0, 0, 1, 1], [], []>} : vector<16x32xbf16>, vector<32x64xbf16>, vector<16x64xf32> -> vector<16x64xf32>
    %c0_3 = arith.constant 0 : index
    %c0_4 = arith.constant 0 : index
    %3 = vector.load %arg5[%c0_3, %c0_4] : memref<1x64xf32, #tpu.memory_space<vmem>>, vector<1x64xf32>
    %4 = vector.broadcast %3 : vector<1x64xf32> to vector<16x64xf32>
    %5 = arith.addf %2, %4 : vector<16x64xf32>
    %6 = arith.truncf %5 : vector<16x64xf32> to vector<16x64xbf16>
    %c0_5 = arith.constant 0 : index
    %c0_6 = arith.constant 0 : index
    %7 = vector.load %arg6[%c0_5, %c0_6] : memref<16x64xbf16, #tpu.memory_space<vmem>>, vector<16x64xbf16>
    tpu.vector_store %arg6[%c0_5, %c0_6], %6 {strides = array<i32>} : memref<16x64xbf16, #tpu.memory_space<vmem>>, vector<16x64xbf16>,
    return
  }
  func.func @transform_0(%arg0: i32, %arg1: i32, %arg2: i32) -> (i32, i32) {
    %c0_i32 = arith.constant 0 : i32
    return %arg0, %arg2 : i32, i32
  }
  func.func @transform_1(%arg0: i32, %arg1: i32, %arg2: i32) -> (i32, i32) {
    %c0_i32 = arith.constant 0 : i32
    return %arg2, %arg1 : i32, i32
  }
  func.func @transform_2(%arg0: i32, %arg1: i32, %arg2: i32) -> (i32, i32) {
    %c0_i32 = arith.constant 0 : i32
    %c0_i32_0 = arith.constant 0 : i32
    return %c0_i32, %arg1 : i32, i32
  }
  func.func @transform_3(%arg0: i32, %arg1: i32, %arg2: i32) -> (i32, i32) {
    %c0_i32 = arith.constant 0 : i32
    return %arg0, %arg1 : i32, i32
  }
}

module attributes {stable_mosaic.version = 11 : i64} {
  func.func @_linear_kernel(%arg0: i32, %arg1: i32, %arg2: i32, %arg3: memref<16x32xbf16, #tpu.memory_space<vmem>>, %arg4: memref<32x32xbf16, #tpu.memory_space<vmem>>, %arg5: memref<1x32xf32, #tpu.memory_space<vmem>>, %arg6: memref<16x32xbf16, #tpu.memory_space<vmem>>) attributes {dimension_semantics = [#tpu.dimension_semantics<parallel>, #tpu.dimension_semantics<parallel>, #tpu.dimension_semantics<arbitrary>], iteration_bounds = array<i64: 1, 1, 1>, scalar_prefetch = 0 : i64, scratch_operands = 0 : i64, tpu.core_type = #tpu.core_type<tc>, window_params = [{transform_indices = @transform_0, window_bounds = array<i64: 16, 32>}, {transform_indices = @transform_1, window_bounds = array<i64: 32, 32>}, {transform_indices = @transform_2, window_bounds = array<i64: 1, 32>}, {transform_indices = @transform_3, window_bounds = array<i64: 16, 32>}]} {
    %c0 = arith.constant 0 : index
    %c0_0 = arith.constant 0 : index
    %0 = vector.load %arg3[%c0, %c0_0] : memref<16x32xbf16, #tpu.memory_space<vmem>>, vector<16x32xbf16>
    %c0_1 = arith.constant 0 : index
    %c0_2 = arith.constant 0 : index
    %1 = vector.load %arg4[%c0_1, %c0_2] : memref<32x32xbf16, #tpu.memory_space<vmem>>, vector<32x32xbf16>
    %cst = arith.constant dense<0.000000e+00> : vector<16x32xf32>
    %2 = tpu.matmul %0, %1, %cst {dimension_numbers = #tpu.dot_dimension_numbers<[1], [0], [0], [1], [0, 0, 1, 1], [], []>} : vector<16x32xbf16>, vector<32x32xbf16>, vector<16x32xf32> -> vector<16x32xf32>
    %c0_3 = arith.constant 0 : index
    %c0_4 = arith.constant 0 : index
    %3 = vector.load %arg5[%c0_3, %c0_4] : memref<1x32xf32, #tpu.memory_space<vmem>>, vector<1x32xf32>
    %4 = vector.broadcast %3 : vector<1x32xf32> to vector<16x32xf32>
    %5 = arith.addf %2, %4 : vector<16x32xf32>
    %6 = arith.truncf %5 : vector<16x32xf32> to vector<16x32xbf16>
    %c0_5 = arith.constant 0 : index
    %c0_6 = arith.constant 0 : index
    %7 = vector.load %arg6[%c0_5, %c0_6] : memref<16x32xbf16, #tpu.memory_space<vmem>>, vector<16x32xbf16>
    tpu.vector_store %arg6[%c0_5, %c0_6], %6 {strides = array<i32>} : memref<16x32xbf16, #tpu.memory_space<vmem>>, vector<16x32xbf16>,
    return
  }
  func.func @transform_0(%arg0: i32, %arg1: i32, %arg2: i32) -> (i32, i32) {
    %c0_i32 = arith.constant 0 : i32
    return %arg0, %arg2 : i32, i32
  }
  func.func @transform_1(%arg0: i32, %arg1: i32, %arg2: i32) -> (i32, i32) {
    %c0_i32 = arith.constant 0 : i32
    return %arg2, %arg1 : i32, i32
  }
  func.func @transform_2(%arg0: i32, %arg1: i32, %arg2: i32) -> (i32, i32) {
    %c0_i32 = arith.constant 0 : i32
    %c0_i32_0 = arith.constant 0 : i32
    return %c0_i32, %arg1 : i32, i32
  }
  func.func @transform_3(%arg0: i32, %arg1: i32, %arg2: i32) -> (i32, i32) {
    %c0_i32 = arith.constant 0 : i32
    return %arg0, %arg1 : i32, i32
  }
}

module attributes {stable_mosaic.version = 11 : i64} {
  func.func @_linear_kernel(%arg0: i32, %arg1: i32, %arg2: i32, %arg3: memref<16x32xbf16, #tpu.memory_space<vmem>>, %arg4: memref<32x50xbf16, #tpu.memory_space<vmem>>, %arg5: memref<1x50xf32, #tpu.memory_space<vmem>>, %arg6: memref<16x50xf32, #tpu.memory_space<vmem>>) attributes {dimension_semantics = [#tpu.dimension_semantics<parallel>, #tpu.dimension_semantics<parallel>, #tpu.dimension_semantics<arbitrary>], iteration_bounds = array<i64: 1, 1, 1>, scalar_prefetch = 0 : i64, scratch_operands = 0 : i64, tpu.core_type = #tpu.core_type<tc>, window_params = [{transform_indices = @transform_0, window_bounds = array<i64: 16, 32>}, {transform_indices = @transform_1, window_bounds = array<i64: 32, 50>}, {transform_indices = @transform_2, window_bounds = array<i64: 1, 50>}, {transform_indices = @transform_3, window_bounds = array<i64: 16, 50>}]} {
    %c0 = arith.constant 0 : index
    %c0_0 = arith.constant 0 : index
    %0 = vector.load %arg3[%c0, %c0_0] : memref<16x32xbf16, #tpu.memory_space<vmem>>, vector<16x32xbf16>
    %c0_1 = arith.constant 0 : index
    %c0_2 = arith.constant 0 : index
    %1 = vector.load %arg4[%c0_1, %c0_2] : memref<32x50xbf16, #tpu.memory_space<vmem>>, vector<32x50xbf16>
    %cst = arith.constant dense<0.000000e+00> : vector<16x50xf32>
    %2 = tpu.matmul %0, %1, %cst {dimension_numbers = #tpu.dot_dimension_numbers<[1], [0], [0], [1], [0, 0, 1, 1], [], []>} : vector<16x32xbf16>, vector<32x50xbf16>, vector<16x50xf32> -> vector<16x50xf32>
    %c0_3 = arith.constant 0 : index
    %c0_4 = arith.constant 0 : index
    %3 = vector.load %arg5[%c0_3, %c0_4] : memref<1x50xf32, #tpu.memory_space<vmem>>, vector<1x50xf32>
    %4 = vector.broadcast %3 : vector<1x50xf32> to vector<16x50xf32>
    %5 = arith.addf %2, %4 : vector<16x50xf32>
    %c0_5 = arith.constant 0 : index
    %c0_6 = arith.constant 0 : index
    %6 = vector.load %arg6[%c0_5, %c0_6] : memref<16x50xf32, #tpu.memory_space<vmem>>, vector<16x50xf32>
    tpu.vector_store %arg6[%c0_5, %c0_6], %5 {strides = array<i32>} : memref<16x50xf32, #tpu.memory_space<vmem>>, vector<16x50xf32>,
    return
  }
  func.func @transform_0(%arg0: i32, %arg1: i32, %arg2: i32) -> (i32, i32) {
    %c0_i32 = arith.constant 0 : i32
    return %arg0, %arg2 : i32, i32
  }
  func.func @transform_1(%arg0: i32, %arg1: i32, %arg2: i32) -> (i32, i32) {
    %c0_i32 = arith.constant 0 : i32
    return %arg2, %arg1 : i32, i32
  }
  func.func @transform_2(%arg0: i32, %arg1: i32, %arg2: i32) -> (i32, i32) {
    %c0_i32 = arith.constant 0 : i32
    %c0_i32_0 = arith.constant 0 : i32
    return %c0_i32, %arg1 : i32, i32
  }
  func.func @transform_3(%arg0: i32, %arg1: i32, %arg2: i32) -> (i32, i32) {
    %c0_i32 = arith.constant 0 : i32
    return %arg0, %arg1 : i32, i32
  }
}

module attributes {stable_mosaic.version = 11 : i64} {
  func.func @_attention_kernel(%arg0: i32, %arg1: i32, %arg2: memref<1x8x32xbf16, #tpu.memory_space<vmem>>, %arg3: memref<1x8x32xbf16, #tpu.memory_space<vmem>>, %arg4: memref<1x8x32xbf16, #tpu.memory_space<vmem>>, %arg5: memref<1x1x8xf32, #tpu.memory_space<vmem>>, %arg6: memref<1x8x32xbf16, #tpu.memory_space<vmem>>, %arg7: memref<8x32xf32, #tpu.memory_space<vmem>>) attributes {dimension_semantics = [#tpu.dimension_semantics<parallel>, #tpu.dimension_semantics<parallel>], iteration_bounds = array<i64: 2, 1>, scalar_prefetch = 0 : i64, scratch_operands = 1 : i64, tpu.core_type = #tpu.core_type<tc>, window_params = [{transform_indices = @transform_0, window_bounds = array<i64: 1, 8, 32>}, {transform_indices = @transform_1, window_bounds = array<i64: 1, 8, 32>}, {transform_indices = @transform_2, window_bounds = array<i64: 1, 8, 32>}, {transform_indices = @transform_3, window_bounds = array<i64: 1, 1, 8>}, {transform_indices = @transform_4, window_bounds = array<i64: 1, 8, 32>}]} {
    %c8_i32 = arith.constant 8 : i32
    %0 = arith.muli %arg1, %c8_i32 : i32
    %1 = tpu.iota {dimensions = array<i32: 0>} : vector<8x8xi32>
    %2 = vector.broadcast %0 : i32 to vector<8x8xi32>
    %3 = arith.addi %2, %1 : vector<8x8xi32>
    %4 = tpu.iota {dimensions = array<i32: 1>} : vector<8x8xi32>
    %5 = arith.cmpi sgt, %4, %3 : vector<8x8xi32>
    %cst = arith.constant -1.000000e+09 : f32
    %cst_0 = arith.constant 0.000000e+00 : f32
    %6 = vector.broadcast %cst : f32 to vector<8x8xf32>
    %7 = vector.broadcast %cst_0 : f32 to vector<8x8xf32>
    %8 = arith.select %5, %6, %7 : vector<8x8xi1>, vector<8x8xf32>
    %c0 = arith.constant 0 : index
    %c0_1 = arith.constant 0 : index
    %c0_2 = arith.constant 0 : index
    %9 = vector.load %arg5[%c0, %c0_1, %c0_2] : memref<1x1x8xf32, #tpu.memory_space<vmem>>, vector<1x1x8xf32>
    %10 = vector.shape_cast %9 : vector<1x1x8xf32> to vector<1x8xf32>
    %11 = vector.broadcast %10 : vector<1x8xf32> to vector<8x8xf32>
    %12 = arith.addf %8, %11 : vector<8x8xf32>
    %c0_3 = arith.constant 0 : index
    %c0_4 = arith.constant 0 : index
    %c0_5 = arith.constant 0 : index
    %13 = vector.load %arg2[%c0_3, %c0_4, %c0_5] : memref<1x8x32xbf16, #tpu.memory_space<vmem>>, vector<1x8x8xbf16>
    %14 = vector.shape_cast %13 : vector<1x8x8xbf16> to vector<8x8xbf16>
    %c0_6 = arith.constant 0 : index
    %c0_7 = arith.constant 0 : index
    %c0_8 = arith.constant 0 : index
    %15 = vector.load %arg3[%c0_6, %c0_7, %c0_8] : memref<1x8x32xbf16, #tpu.memory_space<vmem>>, vector<1x8x8xbf16>
    %16 = vector.shape_cast %15 : vector<1x8x8xbf16> to vector<8x8xbf16>
    %c0_9 = arith.constant 0 : index
    %c0_10 = arith.constant 0 : index
    %c0_11 = arith.constant 0 : index
    %17 = vector.load %arg4[%c0_9, %c0_10, %c0_11] : memref<1x8x32xbf16, #tpu.memory_space<vmem>>, vector<1x8x8xbf16>
    %18 = vector.shape_cast %17 : vector<1x8x8xbf16> to vector<8x8xbf16>
    %cst_12 = arith.constant dense<0.000000e+00> : vector<8x8xf32>
    %19 = tpu.matmul %14, %16, %cst_12 {dimension_numbers = #tpu.dot_dimension_numbers<[1], [1], [0], [0], [0, 0, 1, 0], [], []>} : vector<8x8xbf16>, vector<8x8xbf16>, vector<8x8xf32> -> vector<8x8xf32>
    %20 = arith.addf %19, %12 : vector<8x8xf32>
    %cst_13 = arith.constant dense<0xFF800000> : vector<8xf32>
    %21 = vector.multi_reduction <maximumf>, %20, %cst_13 [1] : vector<8x8xf32> to vector<8xf32>
    %22 = vector.shape_cast %21 : vector<8xf32> to vector<8x1xf32>
    %23 = vector.broadcast %22 : vector<8x1xf32> to vector<8x8xf32>
    %24 = arith.subf %20, %23 : vector<8x8xf32>
    %25 = math.exp %24 : vector<8x8xf32>
    %cst_14 = arith.constant dense<0.000000e+00> : vector<8xf32>
    %26 = vector.multi_reduction <add>, %25, %cst_14 [1] : vector<8x8xf32> to vector<8xf32>
    %27 = vector.shape_cast %26 : vector<8xf32> to vector<8x1xf32>
    %28 = arith.truncf %25 : vector<8x8xf32> to vector<8x8xbf16>
    %cst_15 = arith.constant dense<0.000000e+00> : vector<8x8xf32>
    %29 = tpu.matmul %28, %18, %cst_15 {dimension_numbers = #tpu.dot_dimension_numbers<[1], [0], [0], [1], [0, 0, 1, 1], [], []>} : vector<8x8xbf16>, vector<8x8xbf16>, vector<8x8xf32> -> vector<8x8xf32>
    %30 = vector.broadcast %27 : vector<8x1xf32> to vector<8x8xf32>
    %31 = arith.divf %29, %30 : vector<8x8xf32>
    %c0_16 = arith.constant 0 : index
    %c0_17 = arith.constant 0 : index
    %32 = vector.load %arg7[%c0_16, %c0_17] : memref<8x32xf32, #tpu.memory_space<vmem>>, vector<8x8xf32>
    tpu.vector_store %arg7[%c0_16, %c0_17], %31 {strides = array<i32>} : memref<8x32xf32, #tpu.memory_space<vmem>>, vector<8x8xf32>,
    %c0_18 = arith.constant 0 : index
    %c0_19 = arith.constant 0 : index
    %c8 = arith.constant 8 : index
    %33 = vector.load %arg2[%c0_18, %c0_19, %c8] : memref<1x8x32xbf16, #tpu.memory_space<vmem>>, vector<1x8x8xbf16>
    %34 = vector.shape_cast %33 : vector<1x8x8xbf16> to vector<8x8xbf16>
    %c0_20 = arith.constant 0 : index
    %c0_21 = arith.constant 0 : index
    %c8_22 = arith.constant 8 : index
    %35 = vector.load %arg3[%c0_20, %c0_21, %c8_22] : memref<1x8x32xbf16, #tpu.memory_space<vmem>>, vector<1x8x8xbf16>
    %36 = vector.shape_cast %35 : vector<1x8x8xbf16> to vector<8x8xbf16>
    %c0_23 = arith.constant 0 : index
    %c0_24 = arith.constant 0 : index
    %c8_25 = arith.constant 8 : index
    %37 = vector.load %arg4[%c0_23, %c0_24, %c8_25] : memref<1x8x32xbf16, #tpu.memory_space<vmem>>, vector<1x8x8xbf16>
    %38 = vector.shape_cast %37 : vector<1x8x8xbf16> to vector<8x8xbf16>
    %cst_26 = arith.constant dense<0.000000e+00> : vector<8x8xf32>
    %39 = tpu.matmul %34, %36, %cst_26 {dimension_numbers = #tpu.dot_dimension_numbers<[1], [1], [0], [0], [0, 0, 1, 0], [], []>} : vector<8x8xbf16>, vector<8x8xbf16>, vector<8x8xf32> -> vector<8x8xf32>
    %40 = arith.addf %39, %12 : vector<8x8xf32>
    %cst_27 = arith.constant dense<0xFF800000> : vector<8xf32>
    %41 = vector.multi_reduction <maximumf>, %40, %cst_27 [1] : vector<8x8xf32> to vector<8xf32>
    %42 = vector.shape_cast %41 : vector<8xf32> to vector<8x1xf32>
    %43 = vector.broadcast %42 : vector<8x1xf32> to vector<8x8xf32>
    %44 = arith.subf %40, %43 : vector<8x8xf32>
    %45 = math.exp %44 : vector<8x8xf32>
    %cst_28 = arith.constant dense<0.000000e+00> : vector<8xf32>
    %46 = vector.multi_reduction <add>, %45, %cst_28 [1] : vector<8x8xf32> to vector<8xf32>
    %47 = vector.shape_cast %46 : vector<8xf32> to vector<8x1xf32>
    %48 = arith.truncf %45 : vector<8x8xf32> to vector<8x8xbf16>
    %cst_29 = arith.constant dense<0.000000e+00> : vector<8x8xf32>
    %49 = tpu.matmul %48, %38, %cst_29 {dimension_numbers = #tpu.dot_dimension_numbers<[1], [0], [0], [1], [0, 0, 1, 1], [], []>} : vector<8x8xbf16>, vector<8x8xbf16>, vector<8x8xf32> -> vector<8x8xf32>
    %50 = vector.broadcast %47 : vector<8x1xf32> to vector<8x8xf32>
    %51 = arith.divf %49, %50 : vector<8x8xf32>
    %c0_30 = arith.constant 0 : index
    %c8_31 = arith.constant 8 : index
    %52 = vector.load %arg7[%c0_30, %c8_31] : memref<8x32xf32, #tpu.memory_space<vmem>>, vector<8x8xf32>
    tpu.vector_store %arg7[%c0_30, %c8_31], %51 {strides = array<i32>} : memref<8x32xf32, #tpu.memory_space<vmem>>, vector<8x8xf32>,
    %c0_32 = arith.constant 0 : index
    %c0_33 = arith.constant 0 : index
    %c16 = arith.constant 16 : index
    %53 = vector.load %arg2[%c0_32, %c0_33, %c16] : memref<1x8x32xbf16, #tpu.memory_space<vmem>>, vector<1x8x8xbf16>
    %54 = vector.shape_cast %53 : vector<1x8x8xbf16> to vector<8x8xbf16>
    %c0_34 = arith.constant 0 : index
    %c0_35 = arith.constant 0 : index
    %c16_36 = arith.constant 16 : index
    %55 = vector.load %arg3[%c0_34, %c0_35, %c16_36] : memref<1x8x32xbf16, #tpu.memory_space<vmem>>, vector<1x8x8xbf16>
    %56 = vector.shape_cast %55 : vector<1x8x8xbf16> to vector<8x8xbf16>
    %c0_37 = arith.constant 0 : index
    %c0_38 = arith.constant 0 : index
    %c16_39 = arith.constant 16 : index
    %57 = vector.load %arg4[%c0_37, %c0_38, %c16_39] : memref<1x8x32xbf16, #tpu.memory_space<vmem>>, vector<1x8x8xbf16>
    %58 = vector.shape_cast %57 : vector<1x8x8xbf16> to vector<8x8xbf16>
    %cst_40 = arith.constant dense<0.000000e+00> : vector<8x8xf32>
    %59 = tpu.matmul %54, %56, %cst_40 {dimension_numbers = #tpu.dot_dimension_numbers<[1], [1], [0], [0], [0, 0, 1, 0], [], []>} : vector<8x8xbf16>, vector<8x8xbf16>, vector<8x8xf32> -> vector<8x8xf32>
    %60 = arith.addf %59, %12 : vector<8x8xf32>
    %cst_41 = arith.constant dense<0xFF800000> : vector<8xf32>
    %61 = vector.multi_reduction <maximumf>, %60, %cst_41 [1] : vector<8x8xf32> to vector<8xf32>
    %62 = vector.shape_cast %61 : vector<8xf32> to vector<8x1xf32>
    %63 = vector.broadcast %62 : vector<8x1xf32> to vector<8x8xf32>
    %64 = arith.subf %60, %63 : vector<8x8xf32>
    %65 = math.exp %64 : vector<8x8xf32>
    %cst_42 = arith.constant dense<0.000000e+00> : vector<8xf32>
    %66 = vector.multi_reduction <add>, %65, %cst_42 [1] : vector<8x8xf32> to vector<8xf32>
    %67 = vector.shape_cast %66 : vector<8xf32> to vector<8x1xf32>
    %68 = arith.truncf %65 : vector<8x8xf32> to vector<8x8xbf16>
    %cst_43 = arith.constant dense<0.000000e+00> : vector<8x8xf32>
    %69 = tpu.matmul %68, %58, %cst_43 {dimension_numbers = #tpu.dot_dimension_numbers<[1], [0], [0], [1], [0, 0, 1, 1], [], []>} : vector<8x8xbf16>, vector<8x8xbf16>, vector<8x8xf32> -> vector<8x8xf32>
    %70 = vector.broadcast %67 : vector<8x1xf32> to vector<8x8xf32>
    %71 = arith.divf %69, %70 : vector<8x8xf32>
    %c0_44 = arith.constant 0 : index
    %c16_45 = arith.constant 16 : index
    %72 = vector.load %arg7[%c0_44, %c16_45] : memref<8x32xf32, #tpu.memory_space<vmem>>, vector<8x8xf32>
    tpu.vector_store %arg7[%c0_44, %c16_45], %71 {strides = array<i32>} : memref<8x32xf32, #tpu.memory_space<vmem>>, vector<8x8xf32>,
    %c0_46 = arith.constant 0 : index
    %c0_47 = arith.constant 0 : index
    %c24 = arith.constant 24 : index
    %73 = vector.load %arg2[%c0_46, %c0_47, %c24] : memref<1x8x32xbf16, #tpu.memory_space<vmem>>, vector<1x8x8xbf16>
    %74 = vector.shape_cast %73 : vector<1x8x8xbf16> to vector<8x8xbf16>
    %c0_48 = arith.constant 0 : index
    %c0_49 = arith.constant 0 : index
    %c24_50 = arith.constant 24 : index
    %75 = vector.load %arg3[%c0_48, %c0_49, %c24_50] : memref<1x8x32xbf16, #tpu.memory_space<vmem>>, vector<1x8x8xbf16>
    %76 = vector.shape_cast %75 : vector<1x8x8xbf16> to vector<8x8xbf16>
    %c0_51 = arith.constant 0 : index
    %c0_52 = arith.constant 0 : index
    %c24_53 = arith.constant 24 : index
    %77 = vector.load %arg4[%c0_51, %c0_52, %c24_53] : memref<1x8x32xbf16, #tpu.memory_space<vmem>>, vector<1x8x8xbf16>
    %78 = vector.shape_cast %77 : vector<1x8x8xbf16> to vector<8x8xbf16>
    %cst_54 = arith.constant dense<0.000000e+00> : vector<8x8xf32>
    %79 = tpu.matmul %74, %76, %cst_54 {dimension_numbers = #tpu.dot_dimension_numbers<[1], [1], [0], [0], [0, 0, 1, 0], [], []>} : vector<8x8xbf16>, vector<8x8xbf16>, vector<8x8xf32> -> vector<8x8xf32>
    %80 = arith.addf %79, %12 : vector<8x8xf32>
    %cst_55 = arith.constant dense<0xFF800000> : vector<8xf32>
    %81 = vector.multi_reduction <maximumf>, %80, %cst_55 [1] : vector<8x8xf32> to vector<8xf32>
    %82 = vector.shape_cast %81 : vector<8xf32> to vector<8x1xf32>
    %83 = vector.broadcast %82 : vector<8x1xf32> to vector<8x8xf32>
    %84 = arith.subf %80, %83 : vector<8x8xf32>
    %85 = math.exp %84 : vector<8x8xf32>
    %cst_56 = arith.constant dense<0.000000e+00> : vector<8xf32>
    %86 = vector.multi_reduction <add>, %85, %cst_56 [1] : vector<8x8xf32> to vector<8xf32>
    %87 = vector.shape_cast %86 : vector<8xf32> to vector<8x1xf32>
    %88 = arith.truncf %85 : vector<8x8xf32> to vector<8x8xbf16>
    %cst_57 = arith.constant dense<0.000000e+00> : vector<8x8xf32>
    %89 = tpu.matmul %88, %78, %cst_57 {dimension_numbers = #tpu.dot_dimension_numbers<[1], [0], [0], [1], [0, 0, 1, 1], [], []>} : vector<8x8xbf16>, vector<8x8xbf16>, vector<8x8xf32> -> vector<8x8xf32>
    %90 = vector.broadcast %87 : vector<8x1xf32> to vector<8x8xf32>
    %91 = arith.divf %89, %90 : vector<8x8xf32>
    %c0_58 = arith.constant 0 : index
    %c24_59 = arith.constant 24 : index
    %92 = vector.load %arg7[%c0_58, %c24_59] : memref<8x32xf32, #tpu.memory_space<vmem>>, vector<8x8xf32>
    tpu.vector_store %arg7[%c0_58, %c24_59], %91 {strides = array<i32>} : memref<8x32xf32, #tpu.memory_space<vmem>>, vector<8x8xf32>,
    %c0_60 = arith.constant 0 : index
    %c0_61 = arith.constant 0 : index
    %93 = vector.load %arg7[%c0_60, %c0_61] : memref<8x32xf32, #tpu.memory_space<vmem>>, vector<8x32xf32>
    %94 = arith.truncf %93 : vector<8x32xf32> to vector<8x32xbf16>
    %c0_62 = arith.constant 0 : index
    %c0_63 = arith.constant 0 : index
    %c0_64 = arith.constant 0 : index
    %95 = vector.load %arg6[%c0_62, %c0_63, %c0_64] : memref<1x8x32xbf16, #tpu.memory_space<vmem>>, vector<1x8x32xbf16>
    %96 = vector.shape_cast %95 : vector<1x8x32xbf16> to vector<8x32xbf16>
    %97 = vector.shape_cast %94 : vector<8x32xbf16> to vector<1x8x32xbf16>
    tpu.vector_store %arg6[%c0_62, %c0_63, %c0_64], %97 {strides = array<i32>} : memref<1x8x32xbf16, #tpu.memory_space<vmem>>, vector<1x8x32xbf16>,
    return
  }
  func.func @transform_0(%arg0: i32, %arg1: i32) -> (i32, i32, i32) {
    %c0_i32 = arith.constant 0 : i32
    %c0_i32_0 = arith.constant 0 : i32
    return %arg0, %arg1, %c0_i32 : i32, i32, i32
  }
  func.func @transform_1(%arg0: i32, %arg1: i32) -> (i32, i32, i32) {
    %c0_i32 = arith.constant 0 : i32
    %c0_i32_0 = arith.constant 0 : i32
    %c0_i32_1 = arith.constant 0 : i32
    return %arg0, %c0_i32, %c0_i32_0 : i32, i32, i32
  }
  func.func @transform_2(%arg0: i32, %arg1: i32) -> (i32, i32, i32) {
    %c0_i32 = arith.constant 0 : i32
    %c0_i32_0 = arith.constant 0 : i32
    %c0_i32_1 = arith.constant 0 : i32
    return %arg0, %c0_i32, %c0_i32_0 : i32, i32, i32
  }
  func.func @transform_3(%arg0: i32, %arg1: i32) -> (i32, i32, i32) {
    %c0_i32 = arith.constant 0 : i32
    %c0_i32_0 = arith.constant 0 : i32
    %c0_i32_1 = arith.constant 0 : i32
    return %arg0, %c0_i32, %c0_i32_0 : i32, i32, i32
  }
  func.func @transform_4(%arg0: i32, %arg1: i32) -> (i32, i32, i32) {
    %c0_i32 = arith.constant 0 : i32
    %c0_i32_0 = arith.constant 0 : i32
    return %arg0, %arg1, %c0_i32 : i32, i32, i32
  }
}

</mosaic_0001>

<llo_original>
// kernel: geowhisper_forward.35
$region0: #{geowhisper_forward.35}
  #allocation0 [shape = 'u32[]', space=smem, size = 0x4, offset = 0x4, fixed_abs, tag = 'smem constant byte address 0x4 - core index']
  #allocation1 [shape = 'u32[72,128]{1,0:T(1,128)}', space=vmem, size = 0x9000, scoped, tag = 'internal scratch']
  %s0 = inlined_call_operand.vmem [shape: bf16[16,32], index: 0, kind: input, shape index: {}]
  %s1 = inlined_call_operand.vmem [shape: bf16[32,96], index: 1, kind: input, shape index: {}]
  %s2 = inlined_call_operand.vmem [shape: f32[1,96], index: 2, kind: input, shape index: {}]
  %s3 = inlined_call_operand.vmem [shape: bf16[16,96], index: 3, kind: output, shape index: {}]
  %s4 = sld [smem:[#allocation0]]
  $region22: #{geowhisper_forward.35} parent=0
    _
  %s6 = ssub.s32 1, %s4
  %s7 = scalar_select 0, %s6, %s4
  // Predicated region
  $region2: #{geowhisper_forward.35} parent=0 // pred_check
    _
  $region3: #{geowhisper_forward.35} parent=0 // pred_check_branch
    %9 = sbr.rel (0) target = $region5
  $region4: #{geowhisper_forward.35} parent=0 // pred_region
    _
  $region5: #{geowhisper_forward.35} parent=0 // pred_fallthru
    _
  // Predicated region
  $region6: #{geowhisper_forward.35} parent=0 // pred_check
    _
  $region7: #{geowhisper_forward.35} parent=0 // pred_check_branch
    %11 = sbr.rel (0) target = $region9
  $region8: #{geowhisper_forward.35} parent=0 // pred_region
    _
  $region9: #{geowhisper_forward.35} parent=0 // pred_fallthru
    _
  // Predicated region
  $region10: #{geowhisper_forward.35} parent=0 // pred_check
    _
  $region11: #{geowhisper_forward.35} parent=0 // pred_check_branch
    %13 = sbr.rel (0) target = $region13
  $region12: #{geowhisper_forward.35} parent=0 // pred_region
    _
  $region13: #{geowhisper_forward.35} parent=0 // pred_fallthru
    _
  %v15 = vld [vmem:[%s0] sm:$0xf]
  %v16 = vld [vmem:[%s0 + $0x4] sm:$0xf]
  %v17 = vld [vmem:[%s1] sm:$0xf]
  %v18 = vld [vmem:[%s1 + $0x4] sm:$0xf]
  %v19 = vld [vmem:[%s1 + $0x8] sm:$0xf]
  %v20 = vld [vmem:[%s1 + $0xc] sm:$0xf]
  %v21 = vld [vmem:[%s2] sm:$0x1]
  %v23 = vperm.slane %v21, 0
  %v27 = vunpack.c.l.b16 %v15
  %v28 = vunpack.c.l.b16 %v16
  %v29 = vpack.c.b16 %v28, %v27
  %v34 = vunpack.c.l.b16 %v17
  %v35 = vunpack.c.l.b16 %v18
  %v36 = vunpack.c.l.b16 %v19
  %v37 = vunpack.c.l.b16 %v20
  %v38 = vpack.c.b16 %v35, %v34
  %v39 = vpack.c.b16 %v37, %v36
  %vm42 = vcmask 261120
  %v44 = vsel %vm42, %v29, 0
  %46 = vmatpush.bf16.msra.mxu0 0
  %47 = vmatpush.bf16.msra.mxu0 0
  %48 = vmatpush.bf16.msra.mxu0 0
  %49 = vmatpush.bf16.msra.mxu0 0
  %50 = vmatpush.bf16.msra.mxu0 0
  %51 = vmatpush.bf16.msra.mxu0 0
  %52 = vmatpush.bf16.msra.mxu0 %v39
  %53 = vmatpush.bf16.msra.mxu0 %v38
  %54 = vmatmul.bf16.gmra.mxu0 %v44
  %v55 = vpop.f32.mrf.mxu0
  %v56 = vadd.f32 %v23, %v55
  %v57 = vpop.f32.mrf.mxu0
  %v58 = vadd.f32 %v23, %v57
  %59 = vdwg.mxu0
  %v60 = vpack.c.bf16 %v56, %v56
  %v61 = vpack.c.bf16 %v58, %v58
  %vm62 = vcmask 781312
  %63 = vst.msk [vmem:[%s3] sm:$0xf] %vm62, %v60
  %64 = vst.msk [vmem:[%s3 + $0x4] sm:$0xf] %vm62, %v61
  // Predicated region
  $region14: #{geowhisper_forward.35} parent=0 // pred_check
    _
  $region15: #{geowhisper_forward.35} parent=0 // pred_check_branch
    %66 = sbr.rel (0) target = $region17
  $region16: #{geowhisper_forward.35} parent=0 // pred_region
    _
  $region17: #{geowhisper_forward.35} parent=0 // pred_fallthru
    _
  // Predicated region
  $region18: #{geowhisper_forward.35} parent=0 // pred_check
    _
  $region19: #{geowhisper_forward.35} parent=0 // pred_check_branch
    %68 = sbr.rel (0) target = $region21
  $region20: #{geowhisper_forward.35} parent=0 // pred_region
    _
  $region21: #{geowhisper_forward.35} parent=0 // pred_fallthru
    _

// kernel: geowhisper_forward.33
$region0: #{geowhisper_forward.33}
  #allocation0 [shape = 'u32[]', space=smem, size = 0x4, offset = 0x4, fixed_abs, tag = 'smem constant byte address 0x4 - core index']
  #allocation1 [shape = 'u32[72,128]{1,0:T(1,128)}', space=vmem, size = 0x9000, scoped, tag = 'internal scratch']
  %s0 = inlined_call_operand.vmem [shape: bf16[2,16,12], index: 0, kind: input, shape index: {}]
  %s1 = inlined_call_operand.vmem [shape: bf16[12,32], index: 1, kind: input, shape index: {}]
  %s2 = inlined_call_operand.vmem [shape: f32[1,32], index: 2, kind: input, shape index: {}]
  %s3 = inlined_call_operand.vmem [shape: bf16[2,16,32], index: 3, kind: output, shape index: {}]
  %s4 = sld [smem:[#allocation0]]
  $region45: #{geowhisper_forward.33} parent=0
    _
  %s6 = ssub.s32 1, %s4
  %s7 = scalar_select 0, %s6, %s4
  loop: start=0, step=1, limit=4
  $region2: #{geowhisper_forward.33} parent=0 // loop_pre_header
    _
  $region3: #{geowhisper_forward.33} parent=0 // loop_header
    %s9 = sphi 0, %s13
    %p10 = scmp.ge.s32.totalorder %s9, 4
    %s16 = sphi 0, %s28
    %s17 = sphi 0, %s24
    %s18 = sphi 0, %s16
    %s19 = sphi 0, %s17
    %s20 = sphi 0, %s18
    %s21 = sphi 0, %s19
    %s33 = sphi 0, %s35
    %s36 = sphi 0, %s33
    %s37 = sphi 0, %s36
    %s53 = sphi 0, %s37
    %s57 = sphi 0, %s57
    %s59 = sphi 0, %s57
    %s60 = sphi 0, %s59
    %s74 = sphi 0, %s60
    %s78 = sphi 0, %s78
    %s80 = sphi 0, %s78
    %s81 = sphi 0, %s80
    %s95 = sphi 0, %s81
    %s103 = sphi 0, %s105
    %s106 = sphi 0, %s103
    %s107 = sphi 0, %s106
    %s123 = sphi 0, %s107
  $region4: #{geowhisper_forward.33} parent=0 // loop_header_branch
    %12 = sbr.rel (%p10) target = $region8
  $region5: #{geowhisper_forward.33} parent=0 // loop_body
    %s14 = ssub.s32 %s9, 1
    %s15 = ssub.s32 %s9, 2
    %s22 = sadd.s32 1, %s17
    %p23 = scmp.ge.s32.totalorder %s22, 1
    %s24 = scalar_select %p23, 0, %s22
    %s25 = sadd.s32 1, %s16
    %s26 = scalar_select %p23, %s25, %s16
    %p27 = scmp.ge.s32.totalorder %s26, 2
    %s28 = scalar_select %p27, 0, %s26
    %s29 = ssub.s32 %s16, %s28
    %s30 = ssub.s32 %s17, %s24
    %s31 = sor.u32 %s29, %s30
    %p32 = scmp.eq.s32.totalorder %s31, 0
    %s34 = sadd.s32 %s33, 1
    %s35 = scalar_select %p32, %s33, %s34
    %p38 = pneg %p32
    %p39 = scmp.eq.s32.totalorder %s9, 1
    %p40 = por %p38, %p39
    %p41 = scmp.ne.s32.totalorder %s33, %s36
    %p42 = scmp.eq.s32.totalorder %s9, 0
    %p43 = por %p41, %p42
    %p44 = scmp.ne.s32.totalorder %s33, %s36
    %p45 = scmp.eq.s32.totalorder %s14, 1
    %p46 = por %p44, %p45
    %p47 = scmp.ne.s32.totalorder %s36, %s37
    %p48 = scmp.eq.s32.totalorder %s14, 0
    %p49 = por %p47, %p48
    %p50 = scmp.ne.s32.totalorder %s36, %s37
    %p51 = scmp.eq.s32.totalorder %s15, 1
    %p52 = por %p50, %p51
    %p54 = scmp.ne.s32.totalorder %s37, %s53
    %p55 = scmp.eq.s32.totalorder %s15, 0
    %p56 = por %p54, %p55
    %s58 = sadd.s32 %s57, 1
    %p61 = scmp.eq.s32.totalorder %s9, 1
    %p62 = scmp.ne.s32.totalorder %s57, %s59
    %p63 = scmp.eq.s32.totalorder %s9, 0
    %p64 = por %p62, %p63
    %p65 = scmp.ne.s32.totalorder %s57, %s59
    %p66 = scmp.eq.s32.totalorder %s14, 1
    %p67 = por %p65, %p66
    %p68 = scmp.ne.s32.totalorder %s59, %s60
    %p69 = scmp.eq.s32.totalorder %s14, 0
    %p70 = por %p68, %p69
    %p71 = scmp.ne.s32.totalorder %s59, %s60
    %p72 = scmp.eq.s32.totalorder %s15, 1
    %p73 = por %p71, %p72
    %p75 = scmp.ne.s32.totalorder %s60, %s74
    %p76 = scmp.eq.s32.totalorder %s15, 0
    %p77 = por %p75, %p76
    %s79 = sadd.s32 %s78, 1
    %p82 = scmp.eq.s32.totalorder %s9, 1
    %p83 = scmp.ne.s32.totalorder %s78, %s80
    %p84 = scmp.eq.s32.totalorder %s9, 0
    %p85 = por %p83, %p84
    %p86 = scmp.ne.s32.totalorder %s78, %s80
    %p87 = scmp.eq.s32.totalorder %s14, 1
    %p88 = por %p86, %p87
    %p89 = scmp.ne.s32.totalorder %s80, %s81
    %p90 = scmp.eq.s32.totalorder %s14, 0
    %p91 = por %p89, %p90
    %p92 = scmp.ne.s32.totalorder %s80, %s81
    %p93 = scmp.eq.s32.totalorder %s15, 1
    %p94 = por %p92, %p93
    %p96 = scmp.ne.s32.totalorder %s81, %s95
    %p97 = scmp.eq.s32.totalorder %s15, 0
    %p98 = por %p96, %p97
    %s99 = ssub.s32 %s16, %s28
    %s100 = ssub.s32 %s17, %s24
    %s101 = sor.u32 %s99, %s100
    %p102 = scmp.eq.s32.totalorder %s101, 0
    %s104 = sadd.s32 %s103, 1
    %s105 = scalar_select %p102, %s103, %s104
    %p108 = pneg %p102
    %p109 = scmp.eq.s32.totalorder %s9, 1
    %p110 = por %p108, %p109
    %p111 = scmp.ne.s32.totalorder %s103, %s106
    %p112 = scmp.eq.s32.totalorder %s9, 0
    %p113 = por %p111, %p112
    %p114 = scmp.ne.s32.totalorder %s103, %s106
    %p115 = scmp.eq.s32.totalorder %s14, 1
    %p116 = por %p114, %p115
    %p117 = scmp.ne.s32.totalorder %s106, %s107
    %p118 = scmp.eq.s32.totalorder %s14, 0
    %p119 = por %p117, %p118
    %p120 = scmp.ne.s32.totalorder %s106, %s107
    %p121 = scmp.eq.s32.totalorder %s15, 1
    %p122 = por %p120, %p121
    %p124 = scmp.ne.s32.totalorder %s107, %s123
    %p125 = scmp.eq.s32.totalorder %s15, 0
    %p126 = por %p124, %p125
    %p127 = scmp.le.s32.totalorder 1, %s9
    %p128 = scmp.lt.s32.totalorder %s9, 3
    %p129 = pnand %p127, %p128
    %p130 = pneg %p129
    // Predicated region
    $region9: #{geowhisper_forward.33} parent=5 // pred_check
      _
    $region10: #{geowhisper_forward.33} parent=5 // pred_check_branch
      %132 = sbr.rel (%p129) target = $region12
    $region11: #{geowhisper_forward.33} parent=5 // pred_region
      %s133 = ssub.s32 %s9, 1
      // Predicated region
      $region13: #{geowhisper_forward.33} parent=11 // pred_check
        %p134 = pneg %p70
      $region14: #{geowhisper_forward.33} parent=11 // pred_check_branch
        %136 = sbr.rel (%p134) target = $region16
      $region15: #{geowhisper_forward.33} parent=11 // pred_region
        _
      $region16: #{geowhisper_forward.33} parent=11 // pred_fallthru
        _
      // Predicated region
      $region17: #{geowhisper_forward.33} parent=11 // pred_check
        %p137 = pneg %p91
      $region18: #{geowhisper_forward.33} parent=11 // pred_check_branch
        %139 = sbr.rel (%p137) target = $region20
      $region19: #{geowhisper_forward.33} parent=11 // pred_region
        _
      $region20: #{geowhisper_forward.33} parent=11 // pred_fallthru
        _
    $region12: #{geowhisper_forward.33} parent=5 // pred_fallthru
      _
    %p140 = scmp.lt.s32.totalorder %s9, 2
    // Predicated region
    $region21: #{geowhisper_forward.33} parent=5 // pred_check
      %p141 = pneg %p140
    $region22: #{geowhisper_forward.33} parent=5 // pred_check_branch
      %143 = sbr.rel (%p141) target = $region24
    $region23: #{geowhisper_forward.33} parent=5 // pred_region
      // Predicated region
      $region25: #{geowhisper_forward.33} parent=23 // pred_check
        %p144 = pneg %p43
      $region26: #{geowhisper_forward.33} parent=23 // pred_check_branch
        %146 = sbr.rel (%p144) target = $region28
      $region27: #{geowhisper_forward.33} parent=23 // pred_region
        %s147 = smul.u32 2, %s17
        %p148 = scmp.lt.s32.totalorder %s16, 1
        %s149 = scalar_select %p148, %s16, 1
        %p150 = scmp.lt.s32.totalorder %s147, 1
        %s151 = scalar_select %p150, %s147, 1
        %s152 = smul.addr %s149, 2
        %s153 = sadd.s32 %s151, %s152
        %s154 = smul.addr %s153, 4
        %s155 = scalar_lea.vmem %s0, %s154
        %s156 = smul.u32 2, %s17
      $region28: #{geowhisper_forward.33} parent=23 // pred_fallthru
        _
    $region24: #{geowhisper_forward.33} parent=5 // pred_fallthru
      _
    %p157 = scmp.le.s32.totalorder 1, %s9
    %p158 = scmp.lt.s32.totalorder %s9, 3
    %p159 = pnand %p157, %p158
    %p160 = pneg %p159
    // Predicated region
    $region29: #{geowhisper_forward.33} parent=5 // pred_check
      _
    $region30: #{geowhisper_forward.33} parent=5 // pred_check_branch
      %162 = sbr.rel (%p159) target = $region32
    $region31: #{geowhisper_forward.33} parent=5 // pred_region
      %s163 = ssub.s32 %s9, 1
      %s164 = smul.u32 2, %s19
      %p165 = scmp.lt.s32.totalorder %s18, 1
      %s166 = scalar_select %p165, %s18, 1
      %p167 = scmp.lt.s32.totalorder %s164, 1
      %s168 = scalar_select %p167, %s164, 1
      %s169 = smul.addr %s166, 2
      %s170 = sadd.s32 %s168, %s169
      %s171 = smul.addr %s170, 4
      %s172 = scalar_lea.vmem %s0, %s171
      %p173 = pneg %p49
      %p174 = pneg %p46
      %p175 = pneg %p70
      %p176 = pneg %p67
      %p177 = pneg %p91
      %p178 = pneg %p88
      %p179 = pneg %p119
      %p180 = pneg %p116
      %s181 = smul.u32 2, %s19
      %p182 = scmp.lt.s32.totalorder %s18, 1
      %s183 = scalar_select %p182, %s18, 1
      %p184 = scmp.lt.s32.totalorder %s181, 1
      %s185 = scalar_select %p184, %s181, 1
      %s186 = smul.addr %s183, 2
      %s187 = sadd.s32 %s185, %s186
      %s188 = smul.addr %s187, 4
      %s189 = scalar_lea.vmem %s3, %s188
      %s190 = smul.u32 2, %s19
      %p191 = scmp.lt.s32.totalorder %s18, 1
      %s192 = scalar_select %p191, %s18, 1
      %p193 = scmp.lt.s32.totalorder %s190, 1
      %s194 = scalar_select %p193, %s190, 1
      %s195 = smul.addr %s192, 2
      %s196 = sadd.s32 %s194, %s195
      %s197 = smul.addr %s196, 4
      %s198 = scalar_lea.vmem %s0, %s197
      %s199 = smul.u32 2, %s19
      %s200 = smul.u32 2, %s19
      %p201 = scmp.lt.s32.totalorder %s18, 1
      %s202 = scalar_select %p201, %s18, 1
      %p203 = scmp.lt.s32.totalorder %s200, 1
      %s204 = scalar_select %p203, %s200, 1
      %s205 = smul.addr %s202, 2
      %s206 = sadd.s32 %s204, %s205
      %s207 = smul.addr %s206, 4
      %s208 = scalar_lea.vmem %s3, %s207
      %s209 = smul.u32 2, %s19
      %v211 = vld [vmem:[%s198] sm:$0xf]
      %v212 = vld [vmem:[%s198 + $0x4] sm:$0xf]
      %v213 = vld [vmem:[%s1] sm:$0xf]
      %v214 = vld [vmem:[%s1 + $0x4] sm:$0x3]
      %v215 = vld [vmem:[%s2] sm:$0x1]
      %v217 = vperm.slane %v215, 0
      %v221 = vunpack.c.l.b16 %v211
      %v222 = vunpack.c.l.b16 %v212
      %v223 = vpack.c.b16 %v222, %v221
      %v226 = vunpack.c.l.b16 %v213
      %v227 = vunpack.c.l.b16 %v214
      %v228 = vpack.c.b16 %v227, %v226
      %vm229 = vcmask 97280
      %v231 = vsel %vm229, %v223, 0
      %vm233 = vcmask 1045504
      %v235 = vsel %vm233, %v228, 0
      %237 = vmatpush.bf16.msra.mxu0 0
      %238 = vmatpush.bf16.msra.mxu0 0
      %239 = vmatpush.bf16.msra.mxu0 0
      %240 = vmatpush.bf16.msra.mxu0 0
      %241 = vmatpush.bf16.msra.mxu0 0
      %242 = vmatpush.bf16.msra.mxu0 0
      %243 = vmatpush.bf16.msra.mxu0 0
      %244 = vmatpush.bf16.msra.mxu0 %v235
      %245 = vmatmul.bf16.gmra.mxu0 %v231
      %v246 = vpop.f32.mrf.mxu0
      %v247 = vadd.f32 %v217, %v246
      %v248 = vpop.f32.mrf.mxu0
      %v249 = vadd.f32 %v217, %v248
      %250 = vdwg.mxu0
      %v251 = vmul.f32 %v247, 0.5
      %v252 = vmul.f32 %v249, 0.5
      %v253 = vmul.f32 %v247, 0.70710677
      %v254 = vmul.f32 %v249, 0.70710677
      %v255 = vmul.f32 %v253, %v253
      %v256 = vmin.f32 16.0, %v255
      %v257 = vmul.f32 %v256, 2.1237322e-06
      %v258 = vadd.f32 %v257, 0.00028619796
      %v259 = vmul.f32 %v256, %v258
      %v260 = vadd.f32 %v259, 0.0036580483
      %v261 = vmul.f32 %v256, %v260
      %v262 = vadd.f32 %v261, 0.05243302
      %v263 = vmul.f32 %v256, %v262
      %v264 = vadd.f32 %v263, 0.18741608
      %v265 = vmul.f32 %v256, %v264
      %v266 = vadd.f32 %v265, 1.1283791
      %v267 = vmul.f32 %v253, %v266
      %v268 = vmul.f32 %v256, 3.8918573e-05
      %v269 = vadd.f32 %v268, 0.001143296
      %v270 = vmul.f32 %v256, %v269
      %v271 = vadd.f32 %v270, 0.014752088
      %v272 = vmul.f32 %v256, %v271
      %v273 = vadd.f32 %v272, 0.112945676
      %v274 = vmul.f32 %v256, %v273
      %v275 = vadd.f32 %v274, 0.4994258
      %v276 = vmul.f32 %v256, %v275
      %v277 = vadd.f32 %v276, 1.0
      %v278 = vrcp.pop %v277
      %v279 = vmul.f32 %v277, %v278
      %v280 = vsub.f32 1.0, %v279
      %v281 = vmul.f32 %v278, %v280
      %v282 = vadd.f32 %v278, %v281
      %vm283 = vweird.f32 %v277
      %vm284 = vweird.f32 %v278
      %vm285 = vmor %vm283, %vm284
      %v286 = vsel %vm285, %v278, %v282
      %v287 = vand.u32 2147483647, %v277
      %vm288 = vcmp.eq.f32.partialorder %v287, 8.507059e+37
      %v289 = vand.u32 %v277, 2147483648
      %v290 = vor.u32 1.1754944e-38, %v289
      %v291 = vsel %vm288, %v290, %v286
      %v292 = vmul.f32 %v267, %v291
      %v293 = vmin.f32 %v292, 1.0
      %v294 = vmax.f32 %v293, -1.0
      %v295 = vmul.f32 %v254, %v254
      %v296 = vmin.f32 16.0, %v295
      %v297 = vmul.f32 %v296, 2.1237322e-06
      %v298 = vadd.f32 %v297, 0.00028619796
      %v299 = vmul.f32 %v296, %v298
      %v300 = vadd.f32 %v299, 0.0036580483
      %v301 = vmul.f32 %v296, %v300
      %v302 = vadd.f32 %v301, 0.05243302
      %v303 = vmul.f32 %v296, %v302
      %v304 = vadd.f32 %v303, 0.18741608
      %v305 = vmul.f32 %v296, %v304
      %v306 = vadd.f32 %v305, 1.1283791
      %v307 = vmul.f32 %v254, %v306
      %v308 = vmul.f32 %v296, 3.8918573e-05
      %v309 = vadd.f32 %v308, 0.001143296
      %v310 = vmul.f32 %v296, %v309
      %v311 = vadd.f32 %v310, 0.014752088
      %v312 = vmul.f32 %v296, %v311
      %v313 = vadd.f32 %v312, 0.112945676
      %v314 = vmul.f32 %v296, %v313
      %v315 = vadd.f32 %v314, 0.4994258
      %v316 = vmul.f32 %v296, %v315
      %v317 = vadd.f32 %v316, 1.0
      %v318 = vrcp.pop %v317
      %v319 = vmul.f32 %v317, %v318
      %v320 = vsub.f32 1.0, %v319
      %v321 = vmul.f32 %v318, %v320
      %v322 = vadd.f32 %v318, %v321
      %vm323 = vweird.f32 %v317
      %vm324 = vweird.f32 %v318
      %vm325 = vmor %vm323, %vm324
      %v326 = vsel %vm325, %v318, %v322
      %v327 = vand.u32 2147483647, %v317
      %vm328 = vcmp.eq.f32.partialorder %v327, 8.507059e+37
      %v329 = vand.u32 %v317, 2147483648
      %v330 = vor.u32 1.1754944e-38, %v329
      %v331 = vsel %vm328, %v330, %v326
      %v332 = vmul.f32 %v307, %v331
      %v333 = vmin.f32 %v332, 1.0
      %v334 = vmax.f32 %v333, -1.0
      %v335 = vadd.f32 %v294, 1.0
      %v336 = vadd.f32 %v334, 1.0
      %v337 = vmul.f32 %v251, %v335
      %v338 = vmul.f32 %v252, %v336
      %v339 = vpack.c.bf16 %v337, %v337
      %v340 = vpack.c.bf16 %v338, %v338
      %vm341 = vcmask 257024
      %342 = vst.msk [vmem:[%s208] sm:$0xf] %vm341, %v339
      %343 = vst.msk [vmem:[%s208 + $0x4] sm:$0xf] %vm341, %v340
      %s344 = smul.u32 2, %s19
      %p345 = scmp.lt.s32.totalorder %s18, 1
      %s346 = scalar_select %p345, %s18, 1
      %p347 = scmp.lt.s32.totalorder %s344, 1
      %s348 = scalar_select %p347, %s344, 1
      %s349 = smul.addr %s346, 2
      %s350 = sadd.s32 %s348, %s349
      %s351 = smul.addr %s350, 4
      %s352 = scalar_lea.vmem %s3, %s351
      // Predicated region
      $region33: #{geowhisper_forward.33} parent=31 // pred_check
        %p353 = pneg %p116
      $region34: #{geowhisper_forward.33} parent=31 // pred_check_branch
        %355 = sbr.rel (%p353) target = $region36
      $region35: #{geowhisper_forward.33} parent=31 // pred_region
        %s356 = smul.u32 2, %s19
      $region36: #{geowhisper_forward.33} parent=31 // pred_fallthru
        _
    $region32: #{geowhisper_forward.33} parent=5 // pred_fallthru
      _
    %p357 = scmp.le.s32.totalorder 2, %s9
    // Predicated region
    $region37: #{geowhisper_forward.33} parent=5 // pred_check
      %p358 = pneg %p357
    $region38: #{geowhisper_forward.33} parent=5 // pred_check_branch
      %360 = sbr.rel (%p358) target = $region40
    $region39: #{geowhisper_forward.33} parent=5 // pred_region
      %s361 = ssub.s32 %s9, 2
      // Predicated region
      $region41: #{geowhisper_forward.33} parent=39 // pred_check
        %p362 = pneg %p122
      $region42: #{geowhisper_forward.33} parent=39 // pred_check_branch
        %364 = sbr.rel (%p362) target = $region44
      $region43: #{geowhisper_forward.33} parent=39 // pred_region
        %s365 = smul.u32 2, %s21
        %p366 = scmp.lt.s32.totalorder %s20, 1
        %s367 = scalar_select %p366, %s20, 1
        %p368 = scmp.lt.s32.totalorder %s365, 1
        %s369 = scalar_select %p368, %s365, 1
        %s370 = smul.addr %s367, 2
        %s371 = sadd.s32 %s369, %s370
        %s372 = smul.addr %s371, 4
        %s373 = scalar_lea.vmem %s3, %s372
      $region44: #{geowhisper_forward.33} parent=39 // pred_fallthru
        _
    $region40: #{geowhisper_forward.33} parent=5 // pred_fallthru
      _
  $region6: #{geowhisper_forward.33} parent=0 // loop_footer
    %s13 = sadd.s32 1, %s9
  $region7: #{geowhisper_forward.33} parent=0 // loop_footer_branch
    %8 = sbr.rel target = $region3
  $region8: #{geowhisper_forward.33} parent=0 // loop_exit
    _

// kernel: geowhisper_forward.34
$region0: #{geowhisper_forward.34}
  #allocation0 [shape = 'u32[]', space=smem, size = 0x4, offset = 0x4, fixed_abs, tag = 'smem constant byte address 0x4 - core index']
  #allocation1 [shape = 'u32[72,128]{1,0:T(1,128)}', space=vmem, size = 0x9000, scoped, tag = 'internal scratch']
  %s0 = inlined_call_operand.vmem [shape: bf16[2,8,96], index: 0, kind: input, shape index: {}]
  %s1 = inlined_call_operand.vmem [shape: bf16[96,32], index: 1, kind: input, shape index: {}]
  %s2 = inlined_call_operand.vmem [shape: f32[1,32], index: 2, kind: input, shape index: {}]
  %s3 = inlined_call_operand.vmem [shape: f32[1,8,32], index: 3, kind: input, shape index: {}]
  %s4 = inlined_call_operand.vmem [shape: bf16[2,8,32], index: 4, kind: output, shape index: {}]
  %s5 = sld [smem:[#allocation0]]
  $region49: #{geowhisper_forward.34} parent=0
    _
  %s7 = ssub.s32 1, %s5
  %s8 = scalar_select 0, %s7, %s5
  loop: start=0, step=1, limit=4
  $region2: #{geowhisper_forward.34} parent=0 // loop_pre_header
    _
  $region3: #{geowhisper_forward.34} parent=0 // loop_header
    %s10 = sphi 0, %s14
    %p11 = scmp.ge.s32.totalorder %s10, 4
    %s17 = sphi 0, %s29
    %s18 = sphi 0, %s25
    %s19 = sphi 0, %s17
    %s20 = sphi 0, %s18
    %s21 = sphi 0, %s19
    %s22 = sphi 0, %s20
    %s34 = sphi 0, %s36
    %s37 = sphi 0, %s34
    %s38 = sphi 0, %s37
    %s54 = sphi 0, %s38
    %s58 = sphi 0, %s58
    %s60 = sphi 0, %s58
    %s61 = sphi 0, %s60
    %s75 = sphi 0, %s61
    %s79 = sphi 0, %s79
    %s81 = sphi 0, %s79
    %s82 = sphi 0, %s81
    %s96 = sphi 0, %s82
    %s102 = sphi 0, %s104
    %s105 = sphi 0, %s102
    %s106 = sphi 0, %s105
    %s122 = sphi 0, %s106
    %s130 = sphi 0, %s132
    %s133 = sphi 0, %s130
    %s134 = sphi 0, %s133
    %s150 = sphi 0, %s134
  $region4: #{geowhisper_forward.34} parent=0 // loop_header_branch
    %13 = sbr.rel (%p11) target = $region8
  $region5: #{geowhisper_forward.34} parent=0 // loop_body
    %s15 = ssub.s32 %s10, 1
    %s16 = ssub.s32 %s10, 2
    %s23 = sadd.s32 1, %s18
    %p24 = scmp.ge.s32.totalorder %s23, 1
    %s25 = scalar_select %p24, 0, %s23
    %s26 = sadd.s32 1, %s17
    %s27 = scalar_select %p24, %s26, %s17
    %p28 = scmp.ge.s32.totalorder %s27, 2
    %s29 = scalar_select %p28, 0, %s27
    %s30 = ssub.s32 %s17, %s29
    %s31 = ssub.s32 %s18, %s25
    %s32 = sor.u32 %s30, %s31
    %p33 = scmp.eq.s32.totalorder %s32, 0
    %s35 = sadd.s32 %s34, 1
    %s36 = scalar_select %p33, %s34, %s35
    %p39 = pneg %p33
    %p40 = scmp.eq.s32.totalorder %s10, 1
    %p41 = por %p39, %p40
    %p42 = scmp.ne.s32.totalorder %s34, %s37
    %p43 = scmp.eq.s32.totalorder %s10, 0
    %p44 = por %p42, %p43
    %p45 = scmp.ne.s32.totalorder %s34, %s37
    %p46 = scmp.eq.s32.totalorder %s15, 1
    %p47 = por %p45, %p46
    %p48 = scmp.ne.s32.totalorder %s37, %s38
    %p49 = scmp.eq.s32.totalorder %s15, 0
    %p50 = por %p48, %p49
    %p51 = scmp.ne.s32.totalorder %s37, %s38
    %p52 = scmp.eq.s32.totalorder %s16, 1
    %p53 = por %p51, %p52
    %p55 = scmp.ne.s32.totalorder %s38, %s54
    %p56 = scmp.eq.s32.totalorder %s16, 0
    %p57 = por %p55, %p56
    %s59 = sadd.s32 %s58, 1
    %p62 = scmp.eq.s32.totalorder %s10, 1
    %p63 = scmp.ne.s32.totalorder %s58, %s60
    %p64 = scmp.eq.s32.totalorder %s10, 0
    %p65 = por %p63, %p64
    %p66 = scmp.ne.s32.totalorder %s58, %s60
    %p67 = scmp.eq.s32.totalorder %s15, 1
    %p68 = por %p66, %p67
    %p69 = scmp.ne.s32.totalorder %s60, %s61
    %p70 = scmp.eq.s32.totalorder %s15, 0
    %p71 = por %p69, %p70
    %p72 = scmp.ne.s32.totalorder %s60, %s61
    %p73 = scmp.eq.s32.totalorder %s16, 1
    %p74 = por %p72, %p73
    %p76 = scmp.ne.s32.totalorder %s61, %s75
    %p77 = scmp.eq.s32.totalorder %s16, 0
    %p78 = por %p76, %p77
    %s80 = sadd.s32 %s79, 1
    %p83 = scmp.eq.s32.totalorder %s10, 1
    %p84 = scmp.ne.s32.totalorder %s79, %s81
    %p85 = scmp.eq.s32.totalorder %s10, 0
    %p86 = por %p84, %p85
    %p87 = scmp.ne.s32.totalorder %s79, %s81
    %p88 = scmp.eq.s32.totalorder %s15, 1
    %p89 = por %p87, %p88
    %p90 = scmp.ne.s32.totalorder %s81, %s82
    %p91 = scmp.eq.s32.totalorder %s15, 0
    %p92 = por %p90, %p91
    %p93 = scmp.ne.s32.totalorder %s81, %s82
    %p94 = scmp.eq.s32.totalorder %s16, 1
    %p95 = por %p93, %p94
    %p97 = scmp.ne.s32.totalorder %s82, %s96
    %p98 = scmp.eq.s32.totalorder %s16, 0
    %p99 = por %p97, %p98
    %s100 = ssub.s32 %s18, %s25
    %p101 = scmp.eq.s32.totalorder %s100, 0
    %s103 = sadd.s32 %s102, 1
    %s104 = scalar_select %p101, %s102, %s103
    %p107 = pneg %p101
    %p108 = scmp.eq.s32.totalorder %s10, 1
    %p109 = por %p107, %p108
    %p110 = scmp.ne.s32.totalorder %s102, %s105
    %p111 = scmp.eq.s32.totalorder %s10, 0
    %p112 = por %p110, %p111
    %p113 = scmp.ne.s32.totalorder %s102, %s105
    %p114 = scmp.eq.s32.totalorder %s15, 1
    %p115 = por %p113, %p114
    %p116 = scmp.ne.s32.totalorder %s105, %s106
    %p117 = scmp.eq.s32.totalorder %s15, 0
    %p118 = por %p116, %p117
    %p119 = scmp.ne.s32.totalorder %s105, %s106
    %p120 = scmp.eq.s32.totalorder %s16, 1
    %p121 = por %p119, %p120
    %p123 = scmp.ne.s32.totalorder %s106, %s122
    %p124 = scmp.eq.s32.totalorder %s16, 0
    %p125 = por %p123, %p124
    %s126 = ssub.s32 %s17, %s29
    %s127 = ssub.s32 %s18, %s25
    %s128 = sor.u32 %s126, %s127
    %p129 = scmp.eq.s32.totalorder %s128, 0
    %s131 = sadd.s32 %s130, 1
    %s132 = scalar_select %p129, %s130, %s131
    %p135 = pneg %p129
    %p136 = scmp.eq.s32.totalorder %s10, 1
    %p137 = por %p135, %p136
    %p138 = scmp.ne.s32.totalorder %s130, %s133
    %p139 = scmp.eq.s32.totalorder %s10, 0
    %p140 = por %p138, %p139
    %p141 = scmp.ne.s32.totalorder %s130, %s133
    %p142 = scmp.eq.s32.totalorder %s15, 1
    %p143 = por %p141, %p142
    %p144 = scmp.ne.s32.totalorder %s133, %s134
    %p145 = scmp.eq.s32.totalorder %s15, 0
    %p146 = por %p144, %p145
    %p147 = scmp.ne.s32.totalorder %s133, %s134
    %p148 = scmp.eq.s32.totalorder %s16, 1
    %p149 = por %p147, %p148
    %p151 = scmp.ne.s32.totalorder %s134, %s150
    %p152 = scmp.eq.s32.totalorder %s16, 0
    %p153 = por %p151, %p152
    %p154 = scmp.le.s32.totalorder 1, %s10
    %p155 = scmp.lt.s32.totalorder %s10, 3
    %p156 = pnand %p154, %p155
    %p157 = pneg %p156
    // Predicated region
    $region9: #{geowhisper_forward.34} parent=5 // pred_check
      _
    $region10: #{geowhisper_forward.34} parent=5 // pred_check_branch
      %159 = sbr.rel (%p156) target = $region12
    $region11: #{geowhisper_forward.34} parent=5 // pred_region
      %s160 = ssub.s32 %s10, 1
      // Predicated region
      $region13: #{geowhisper_forward.34} parent=11 // pred_check
        %p161 = pneg %p71
      $region14: #{geowhisper_forward.34} parent=11 // pred_check_branch
        %163 = sbr.rel (%p161) target = $region16
      $region15: #{geowhisper_forward.34} parent=11 // pred_region
        _
      $region16: #{geowhisper_forward.34} parent=11 // pred_fallthru
        _
      // Predicated region
      $region17: #{geowhisper_forward.34} parent=11 // pred_check
        %p164 = pneg %p92
      $region18: #{geowhisper_forward.34} parent=11 // pred_check_branch
        %166 = sbr.rel (%p164) target = $region20
      $region19: #{geowhisper_forward.34} parent=11 // pred_region
        _
      $region20: #{geowhisper_forward.34} parent=11 // pred_fallthru
        _
      // Predicated region
      $region21: #{geowhisper_forward.34} parent=11 // pred_check
        %p167 = pneg %p118
      $region22: #{geowhisper_forward.34} parent=11 // pred_check_branch
        %169 = sbr.rel (%p167) target = $region24
      $region23: #{geowhisper_forward.34} parent=11 // pred_region
        %p170 = scmp.lt.s32.totalorder %s20, 0
        %s171 = scalar_select %p170, %s20, 0
        %s172 = smul.addr %s171, 8
        %s173 = scalar_lea.vmem %s3, %s172
      $region24: #{geowhisper_forward.34} parent=11 // pred_fallthru
        _
    $region12: #{geowhisper_forward.34} parent=5 // pred_fallthru
      _
    %p174 = scmp.lt.s32.totalorder %s10, 2
    // Predicated region
    $region25: #{geowhisper_forward.34} parent=5 // pred_check
      %p175 = pneg %p174
    $region26: #{geowhisper_forward.34} parent=5 // pred_check_branch
      %177 = sbr.rel (%p175) target = $region28
    $region27: #{geowhisper_forward.34} parent=5 // pred_region
      // Predicated region
      $region29: #{geowhisper_forward.34} parent=27 // pred_check
        %p178 = pneg %p44
      $region30: #{geowhisper_forward.34} parent=27 // pred_check_branch
        %180 = sbr.rel (%p178) target = $region32
      $region31: #{geowhisper_forward.34} parent=27 // pred_region
        %p181 = scmp.lt.s32.totalorder %s17, 1
        %s182 = scalar_select %p181, %s17, 1
        %p183 = scmp.lt.s32.totalorder %s18, 0
        %s184 = scalar_select %p183, %s18, 0
        %s185 = sadd.s32 %s184, %s182
        %s186 = smul.addr %s185, 4
        %s187 = scalar_lea.vmem %s0, %s186
      $region32: #{geowhisper_forward.34} parent=27 // pred_fallthru
        _
    $region28: #{geowhisper_forward.34} parent=5 // pred_fallthru
      _
    %p188 = scmp.le.s32.totalorder 1, %s10
    %p189 = scmp.lt.s32.totalorder %s10, 3
    %p190 = pnand %p188, %p189
    %p191 = pneg %p190
    // Predicated region
    $region33: #{geowhisper_forward.34} parent=5 // pred_check
      _
    $region34: #{geowhisper_forward.34} parent=5 // pred_check_branch
      %193 = sbr.rel (%p190) target = $region36
    $region35: #{geowhisper_forward.34} parent=5 // pred_region
      %s194 = ssub.s32 %s10, 1
      %p195 = scmp.lt.s32.totalorder %s19, 1
      %s196 = scalar_select %p195, %s19, 1
      %p197 = scmp.lt.s32.totalorder %s20, 0
      %s198 = scalar_select %p197, %s20, 0
      %s199 = sadd.s32 %s198, %s196
      %s200 = smul.addr %s199, 4
      %s201 = scalar_lea.vmem %s0, %s200
      %p202 = pneg %p50
      %p203 = pneg %p47
      %p204 = pneg %p71
      %p205 = pneg %p68
      %p206 = pneg %p92
      %p207 = pneg %p89
      %p208 = scmp.lt.s32.totalorder %s20, 0
      %s209 = scalar_select %p208, %s20, 0
      %s210 = smul.addr %s209, 8
      %s211 = scalar_lea.vmem %s3, %s210
      %p212 = pneg %p118
      %p213 = pneg %p115
      %p214 = pneg %p146
      %p215 = pneg %p143
      %p216 = scmp.lt.s32.totalorder %s19, 1
      %s217 = scalar_select %p216, %s19, 1
      %p218 = scmp.lt.s32.totalorder %s20, 0
      %s219 = scalar_select %p218, %s20, 0
      %s220 = sadd.s32 %s219, %s217
      %s221 = smul.addr %s220, 4
      %s222 = scalar_lea.vmem %s4, %s221
      %p223 = scmp.lt.s32.totalorder %s19, 1
      %s224 = scalar_select %p223, %s19, 1
      %p225 = scmp.lt.s32.totalorder %s20, 0
      %s226 = scalar_select %p225, %s20, 0
      %s227 = sadd.s32 %s226, %s224
      %s228 = smul.addr %s227, 4
      %s229 = scalar_lea.vmem %s0, %s228
      %p230 = scmp.lt.s32.totalorder %s20, 0
      %s231 = scalar_select %p230, %s20, 0
      %s232 = smul.addr %s231, 8
      %s233 = scalar_lea.vmem %s3, %s232
      %p234 = scmp.lt.s32.totalorder %s19, 1
      %s235 = scalar_select %p234, %s19, 1
      %p236 = scmp.lt.s32.totalorder %s20, 0
      %s237 = scalar_select %p236, %s20, 0
      %s238 = sadd.s32 %s237, %s235
      %s239 = smul.addr %s238, 4
      %s240 = scalar_lea.vmem %s4, %s239
      %v242 = vld [vmem:[%s229] sm:$0xf]
      %v243 = vld [vmem:[%s1] sm:$0xf]
      %v244 = vld [vmem:[%s1 + $0x4] sm:$0xf]
      %v245 = vld [vmem:[%s1 + $0x8] sm:$0xf]
      %v246 = vld [vmem:[%s1 + $0xc] sm:$0xf]
      %v247 = vld [vmem:[%s1 + $0x10] sm:$0xf]
      %v248 = vld [vmem:[%s1 + $0x14] sm:$0xf]
      %v249 = vld [vmem:[%s1 + $0x18] sm:$0xf]
      %v250 = vld [vmem:[%s1 + $0x1c] sm:$0xf]
      %v251 = vld [vmem:[%s1 + $0x20] sm:$0xf]
      %v252 = vld [vmem:[%s1 + $0x24] sm:$0xf]
      %v253 = vld [vmem:[%s1 + $0x28] sm:$0xf]
      %v254 = vld [vmem:[%s1 + $0x2c] sm:$0xf]
      %v255 = vld [vmem:[%s2] sm:$0x1]
      %v257 = vperm.slane %v255, 0
      %v271 = vunpack.c.l.b16 %v243
      %v272 = vunpack.c.l.b16 %v244
      %v273 = vunpack.c.l.b16 %v245
      %v274 = vunpack.c.l.b16 %v246
      %v275 = vunpack.c.l.b16 %v247
      %v276 = vunpack.c.l.b16 %v248
      %v277 = vunpack.c.l.b16 %v249
      %v278 = vunpack.c.l.b16 %v250
      %v279 = vunpack.c.l.b16 %v251
      %v280 = vunpack.c.l.b16 %v252
      %v281 = vunpack.c.l.b16 %v253
      %v282 = vunpack.c.l.b16 %v254
      %v283 = vpack.c.b16 %v272, %v271
      %v284 = vpack.c.b16 %v274, %v273
      %v285 = vpack.c.b16 %v276, %v275
      %v286 = vpack.c.b16 %v278, %v277
      %v287 = vpack.c.b16 %v280, %v279
      %v288 = vpack.c.b16 %v282, %v281
      %vm295 = vcmask 785408
      %v297 = vsel %vm295, %v242, 0
      %299 = vmatpush.bf16.msra.mxu0 0
      %300 = vmatpush.bf16.msra.mxu0 0
      %301 = vmatpush.bf16.msra.mxu0 %v288
      %302 = vmatpush.bf16.msra.mxu0 %v287
      %303 = vmatpush.bf16.msra.mxu0 %v286
      %304 = vmatpush.bf16.msra.mxu0 %v285
      %305 = vmatpush.bf16.msra.mxu0 %v284
      %306 = vmatpush.bf16.msra.mxu0 %v283
      %307 = vmatmul.bf16.gmra.mxu0 %v297
      %v308 = vpop.f32.mrf.mxu0
      %v309 = vadd.f32 %v257, %v308
      %v310 = vpop.f32.mrf.mxu0
      %311 = vdwg.mxu0
      %v312 = vmul.f32 %v309, 0.5
      %v313 = vmul.f32 %v309, 0.70710677
      %v314 = vmul.f32 %v313, %v313
      %v315 = vmin.f32 16.0, %v314
      %v316 = vmul.f32 %v315, 2.1237322e-06
      %v317 = vadd.f32 %v316, 0.00028619796
      %v318 = vmul.f32 %v315, %v317
      %v319 = vadd.f32 %v318, 0.0036580483
      %v320 = vmul.f32 %v315, %v319
      %v321 = vadd.f32 %v320, 0.05243302
      %v322 = vmul.f32 %v315, %v321
      %v323 = vadd.f32 %v322, 0.18741608
      %v324 = vmul.f32 %v315, %v323
      %v325 = vadd.f32 %v324, 1.1283791
      %v326 = vmul.f32 %v313, %v325
      %v327 = vmul.f32 %v315, 3.8918573e-05
      %v328 = vadd.f32 %v327, 0.001143296
      %v329 = vmul.f32 %v315, %v328
      %v330 = vadd.f32 %v329, 0.014752088
      %v331 = vmul.f32 %v315, %v330
      %v332 = vadd.f32 %v331, 0.112945676
      %v333 = vmul.f32 %v315, %v332
      %v334 = vadd.f32 %v333, 0.4994258
      %v335 = vmul.f32 %v315, %v334
      %v336 = vadd.f32 %v335, 1.0
      %v337 = vrcp.pop %v336
      %v338 = vmul.f32 %v336, %v337
      %v339 = vsub.f32 1.0, %v338
      %v340 = vmul.f32 %v337, %v339
      %v341 = vadd.f32 %v337, %v340
      %vm342 = vweird.f32 %v336
      %vm343 = vweird.f32 %v337
      %vm344 = vmor %vm342, %vm343
      %v345 = vsel %vm344, %v337, %v341
      %v346 = vand.u32 2147483647, %v336
      %vm347 = vcmp.eq.f32.partialorder %v346, 8.507059e+37
      %v348 = vand.u32 %v336, 2147483648
      %v349 = vor.u32 1.1754944e-38, %v348
      %v350 = vsel %vm347, %v349, %v345
      %v351 = vmul.f32 %v326, %v350
      %v352 = vmin.f32 %v351, 1.0
      %v353 = vmax.f32 %v352, -1.0
      %v354 = vadd.f32 %v353, 1.0
      %v355 = vmul.f32 %v312, %v354
      %v356 = vld [vmem:[%s233] sm:$0xff]
      %v357 = vadd.f32 %v355, %v356
      %v358 = vpack.c.bf16 %v357, %v357
      %vm359 = vcmask 257024
      %360 = vst.msk [vmem:[%s240] sm:$0xf] %vm359, %v358
      %p361 = scmp.lt.s32.totalorder %s19, 1
      %s362 = scalar_select %p361, %s19, 1
      %p363 = scmp.lt.s32.totalorder %s20, 0
      %s364 = scalar_select %p363, %s20, 0
      %s365 = sadd.s32 %s364, %s362
      %s366 = smul.addr %s365, 4
      %s367 = scalar_lea.vmem %s4, %s366
      // Predicated region
      $region37: #{geowhisper_forward.34} parent=35 // pred_check
        %p368 = pneg %p143
      $region38: #{geowhisper_forward.34} parent=35 // pred_check_branch
        %370 = sbr.rel (%p368) target = $region40
      $region39: #{geowhisper_forward.34} parent=35 // pred_region
        _
      $region40: #{geowhisper_forward.34} parent=35 // pred_fallthru
        _
    $region36: #{geowhisper_forward.34} parent=5 // pred_fallthru
      _
    %p371 = scmp.le.s32.totalorder 2, %s10
    // Predicated region
    $region41: #{geowhisper_forward.34} parent=5 // pred_check
      %p372 = pneg %p371
    $region42: #{geowhisper_forward.34} parent=5 // pred_check_branch
      %374 = sbr.rel (%p372) target = $region44
    $region43: #{geowhisper_forward.34} parent=5 // pred_region
      %s375 = ssub.s32 %s10, 2
      // Predicated region
      $region45: #{geowhisper_forward.34} parent=43 // pred_check
        %p376 = pneg %p149
      $region46: #{geowhisper_forward.34} parent=43 // pred_check_branch
        %378 = sbr.rel (%p376) target = $region48
      $region47: #{geowhisper_forward.34} parent=43 // pred_region
        %p379 = scmp.lt.s32.totalorder %s21, 1
        %s380 = scalar_select %p379, %s21, 1
        %p381 = scmp.lt.s32.totalorder %s22, 0
        %s382 = scalar_select %p381, %s22, 0
        %s383 = sadd.s32 %s382, %s380
        %s384 = smul.addr %s383, 4
        %s385 = scalar_lea.vmem %s4, %s384
      $region48: #{geowhisper_forward.34} parent=43 // pred_fallthru
        _
    $region44: #{geowhisper_forward.34} parent=5 // pred_fallthru
      _
  $region6: #{geowhisper_forward.34} parent=0 // loop_footer
    %s14 = sadd.s32 1, %s10
  $region7: #{geowhisper_forward.34} parent=0 // loop_footer_branch
    %9 = sbr.rel target = $region3
  $region8: #{geowhisper_forward.34} parent=0 // loop_exit
    _

// kernel: geowhisper_forward.36
$region0: #{geowhisper_forward.36}
  #allocation0 [shape = 'u32[]', space=smem, size = 0x4, offset = 0x4, fixed_abs, tag = 'smem constant byte address 0x4 - core index']
  #allocation1 [shape = 'u32[72,128]{1,0:T(1,128)}', space=vmem, size = 0x9000, scoped, tag = 'internal scratch']
  #allocation2 [shape = 'f32[8,32]{1,0:T(8,128)}', space=vmem, size = 0x1000, scoped, tag = 'scratch operand']
  %s0 = inlined_call_operand.vmem [shape: bf16[2,8,32], index: 0, kind: input, shape index: {}]
  %s1 = inlined_call_operand.vmem [shape: bf16[2,8,32], index: 1, kind: input, shape index: {}]
  %s2 = inlined_call_operand.vmem [shape: bf16[2,8,32], index: 2, kind: input, shape index: {}]
  %s3 = inlined_call_operand.vmem [shape: bf16[2,8,32], index: 3, kind: output, shape index: {}]
  %s4 = sld [smem:[#allocation0]]
  $region45: #{geowhisper_forward.36} parent=0
    _
  %s6 = ssub.s32 1, %s4
  %s7 = scalar_select 0, %s6, %s4
  loop: start=0, step=1, limit=4
  $region2: #{geowhisper_forward.36} parent=0 // loop_pre_header
    _
  $region3: #{geowhisper_forward.36} parent=0 // loop_header
    %s9 = sphi 0, %s13
    %p10 = scmp.ge.s32.totalorder %s9, 4
    %s16 = sphi 0, %s28
    %s17 = sphi 0, %s24
    %s18 = sphi 0, %s16
    %s19 = sphi 0, %s17
    %s20 = sphi 0, %s18
    %s21 = sphi 0, %s19
    %s33 = sphi 0, %s35
    %s36 = sphi 0, %s33
    %s37 = sphi 0, %s36
    %s53 = sphi 0, %s37
    %s59 = sphi 0, %s61
    %s62 = sphi 0, %s59
    %s63 = sphi 0, %s62
    %s79 = sphi 0, %s63
    %s85 = sphi 0, %s87
    %s88 = sphi 0, %s85
    %s89 = sphi 0, %s88
    %s105 = sphi 0, %s89
    %s113 = sphi 0, %s115
    %s116 = sphi 0, %s113
    %s117 = sphi 0, %s116
    %s133 = sphi 0, %s117
  $region4: #{geowhisper_forward.36} parent=0 // loop_header_branch
    %12 = sbr.rel (%p10) target = $region8
  $region5: #{geowhisper_forward.36} parent=0 // loop_body
    %s14 = ssub.s32 %s9, 1
    %s15 = ssub.s32 %s9, 2
    %s22 = sadd.s32 1, %s17
    %p23 = scmp.ge.s32.totalorder %s22, 1
    %s24 = scalar_select %p23, 0, %s22
    %s25 = sadd.s32 1, %s16
    %s26 = scalar_select %p23, %s25, %s16
    %p27 = scmp.ge.s32.totalorder %s26, 2
    %s28 = scalar_select %p27, 0, %s26
    %s29 = ssub.s32 %s16, %s28
    %s30 = ssub.s32 %s17, %s24
    %s31 = sor.u32 %s29, %s30
    %p32 = scmp.eq.s32.totalorder %s31, 0
    %s34 = sadd.s32 %s33, 1
    %s35 = scalar_select %p32, %s33, %s34
    %p38 = pneg %p32
    %p39 = scmp.eq.s32.totalorder %s9, 1
    %p40 = por %p38, %p39
    %p41 = scmp.ne.s32.totalorder %s33, %s36
    %p42 = scmp.eq.s32.totalorder %s9, 0
    %p43 = por %p41, %p42
    %p44 = scmp.ne.s32.totalorder %s33, %s36
    %p45 = scmp.eq.s32.totalorder %s14, 1
    %p46 = por %p44, %p45
    %p47 = scmp.ne.s32.totalorder %s36, %s37
    %p48 = scmp.eq.s32.totalorder %s14, 0
    %p49 = por %p47, %p48
    %p50 = scmp.ne.s32.totalorder %s36, %s37
    %p51 = scmp.eq.s32.totalorder %s15, 1
    %p52 = por %p50, %p51
    %p54 = scmp.ne.s32.totalorder %s37, %s53
    %p55 = scmp.eq.s32.totalorder %s15, 0
    %p56 = por %p54, %p55
    %s57 = ssub.s32 %s16, %s28
    %p58 = scmp.eq.s32.totalorder %s57, 0
    %s60 = sadd.s32 %s59, 1
    %s61 = scalar_select %p58, %s59, %s60
    %p64 = pneg %p58
    %p65 = scmp.eq.s32.totalorder %s9, 1
    %p66 = por %p64, %p65
    %p67 = scmp.ne.s32.totalorder %s59, %s62
    %p68 = scmp.eq.s32.totalorder %s9, 0
    %p69 = por %p67, %p68
    %p70 = scmp.ne.s32.totalorder %s59, %s62
    %p71 = scmp.eq.s32.totalorder %s14, 1
    %p72 = por %p70, %p71
    %p73 = scmp.ne.s32.totalorder %s62, %s63
    %p74 = scmp.eq.s32.totalorder %s14, 0
    %p75 = por %p73, %p74
    %p76 = scmp.ne.s32.totalorder %s62, %s63
    %p77 = scmp.eq.s32.totalorder %s15, 1
    %p78 = por %p76, %p77
    %p80 = scmp.ne.s32.totalorder %s63, %s79
    %p81 = scmp.eq.s32.totalorder %s15, 0
    %p82 = por %p80, %p81
    %s83 = ssub.s32 %s16, %s28
    %p84 = scmp.eq.s32.totalorder %s83, 0
    %s86 = sadd.s32 %s85, 1
    %s87 = scalar_select %p84, %s85, %s86
    %p90 = pneg %p84
    %p91 = scmp.eq.s32.totalorder %s9, 1
    %p92 = por %p90, %p91
    %p93 = scmp.ne.s32.totalorder %s85, %s88
    %p94 = scmp.eq.s32.totalorder %s9, 0
    %p95 = por %p93, %p94
    %p96 = scmp.ne.s32.totalorder %s85, %s88
    %p97 = scmp.eq.s32.totalorder %s14, 1
    %p98 = por %p96, %p97
    %p99 = scmp.ne.s32.totalorder %s88, %s89
    %p100 = scmp.eq.s32.totalorder %s14, 0
    %p101 = por %p99, %p100
    %p102 = scmp.ne.s32.totalorder %s88, %s89
    %p103 = scmp.eq.s32.totalorder %s15, 1
    %p104 = por %p102, %p103
    %p106 = scmp.ne.s32.totalorder %s89, %s105
    %p107 = scmp.eq.s32.totalorder %s15, 0
    %p108 = por %p106, %p107
    %s109 = ssub.s32 %s16, %s28
    %s110 = ssub.s32 %s17, %s24
    %s111 = sor.u32 %s109, %s110
    %p112 = scmp.eq.s32.totalorder %s111, 0
    %s114 = sadd.s32 %s113, 1
    %s115 = scalar_select %p112, %s113, %s114
    %p118 = pneg %p112
    %p119 = scmp.eq.s32.totalorder %s9, 1
    %p120 = por %p118, %p119
    %p121 = scmp.ne.s32.totalorder %s113, %s116
    %p122 = scmp.eq.s32.totalorder %s9, 0
    %p123 = por %p121, %p122
    %p124 = scmp.ne.s32.totalorder %s113, %s116
    %p125 = scmp.eq.s32.totalorder %s14, 1
    %p126 = por %p124, %p125
    %p127 = scmp.ne.s32.totalorder %s116, %s117
    %p128 = scmp.eq.s32.totalorder %s14, 0
    %p129 = por %p127, %p128
    %p130 = scmp.ne.s32.totalorder %s116, %s117
    %p131 = scmp.eq.s32.totalorder %s15, 1
    %p132 = por %p130, %p131
    %p134 = scmp.ne.s32.totalorder %s117, %s133
    %p135 = scmp.eq.s32.totalorder %s15, 0
    %p136 = por %p134, %p135
    %p137 = scmp.le.s32.totalorder 1, %s9
    %p138 = scmp.lt.s32.totalorder %s9, 3
    %p139 = pnand %p137, %p138
    %p140 = pneg %p139
    // Predicated region
    $region9: #{geowhisper_forward.36} parent=5 // pred_check
      _
    $region10: #{geowhisper_forward.36} parent=5 // pred_check_branch
      %142 = sbr.rel (%p139) target = $region12
    $region11: #{geowhisper_forward.36} parent=5 // pred_region
      %s143 = ssub.s32 %s9, 1
    $region12: #{geowhisper_forward.36} parent=5 // pred_fallthru
      _
    %p144 = scmp.lt.s32.totalorder %s9, 2
    // Predicated region
    $region13: #{geowhisper_forward.36} parent=5 // pred_check
      %p145 = pneg %p144
    $region14: #{geowhisper_forward.36} parent=5 // pred_check_branch
      %147 = sbr.rel (%p145) target = $region16
    $region15: #{geowhisper_forward.36} parent=5 // pred_region
      // Predicated region
      $region17: #{geowhisper_forward.36} parent=15 // pred_check
        %p148 = pneg %p43
      $region18: #{geowhisper_forward.36} parent=15 // pred_check_branch
        %150 = sbr.rel (%p148) target = $region20
      $region19: #{geowhisper_forward.36} parent=15 // pred_region
        %p151 = scmp.lt.s32.totalorder %s16, 1
        %s152 = scalar_select %p151, %s16, 1
        %p153 = scmp.lt.s32.totalorder %s17, 0
        %s154 = scalar_select %p153, %s17, 0
        %s155 = sadd.s32 %s154, %s152
        %s156 = smul.addr %s155, 4
        %s157 = scalar_lea.vmem %s0, %s156
      $region20: #{geowhisper_forward.36} parent=15 // pred_fallthru
        _
      // Predicated region
      $region21: #{geowhisper_forward.36} parent=15 // pred_check
        %p158 = pneg %p69
      $region22: #{geowhisper_forward.36} parent=15 // pred_check_branch
        %160 = sbr.rel (%p158) target = $region24
      $region23: #{geowhisper_forward.36} parent=15 // pred_region
        %p161 = scmp.lt.s32.totalorder %s16, 1
        %s162 = scalar_select %p161, %s16, 1
        %s163 = smul.addr %s162, 4
        %s164 = scalar_lea.vmem %s1, %s163
      $region24: #{geowhisper_forward.36} parent=15 // pred_fallthru
        _
      // Predicated region
      $region25: #{geowhisper_forward.36} parent=15 // pred_check
        %p165 = pneg %p95
      $region26: #{geowhisper_forward.36} parent=15 // pred_check_branch
        %167 = sbr.rel (%p165) target = $region28
      $region27: #{geowhisper_forward.36} parent=15 // pred_region
        %p168 = scmp.lt.s32.totalorder %s16, 1
        %s169 = scalar_select %p168, %s16, 1
        %s170 = smul.addr %s169, 4
        %s171 = scalar_lea.vmem %s2, %s170
      $region28: #{geowhisper_forward.36} parent=15 // pred_fallthru
        _
    $region16: #{geowhisper_forward.36} parent=5 // pred_fallthru
      _
    %p172 = scmp.le.s32.totalorder 1, %s9
    %p173 = scmp.lt.s32.totalorder %s9, 3
    %p174 = pnand %p172, %p173
    %p175 = pneg %p174
    // Predicated region
    $region29: #{geowhisper_forward.36} parent=5 // pred_check
      _
    $region30: #{geowhisper_forward.36} parent=5 // pred_check_branch
      %177 = sbr.rel (%p174) target = $region32
    $region31: #{geowhisper_forward.36} parent=5 // pred_region
      %s178 = ssub.s32 %s9, 1
      %p179 = scmp.lt.s32.totalorder %s18, 1
      %s180 = scalar_select %p179, %s18, 1
      %p181 = scmp.lt.s32.totalorder %s19, 0
      %s182 = scalar_select %p181, %s19, 0
      %s183 = sadd.s32 %s182, %s180
      %s184 = smul.addr %s183, 4
      %s185 = scalar_lea.vmem %s0, %s184
      %p186 = pneg %p49
      %p187 = pneg %p46
      %p188 = scmp.lt.s32.totalorder %s18, 1
      %s189 = scalar_select %p188, %s18, 1
      %s190 = smul.addr %s189, 4
      %s191 = scalar_lea.vmem %s1, %s190
      %p192 = pneg %p75
      %p193 = pneg %p72
      %p194 = scmp.lt.s32.totalorder %s18, 1
      %s195 = scalar_select %p194, %s18, 1
      %s196 = smul.addr %s195, 4
      %s197 = scalar_lea.vmem %s2, %s196
      %p198 = pneg %p101
      %p199 = pneg %p98
      %p200 = pneg %p129
      %p201 = pneg %p126
      %p202 = scmp.lt.s32.totalorder %s18, 1
      %s203 = scalar_select %p202, %s18, 1
      %p204 = scmp.lt.s32.totalorder %s19, 0
      %s205 = scalar_select %p204, %s19, 0
      %s206 = sadd.s32 %s205, %s203
      %s207 = smul.addr %s206, 4
      %s208 = scalar_lea.vmem %s3, %s207
      %p209 = scmp.lt.s32.totalorder %s18, 1
      %s210 = scalar_select %p209, %s18, 1
      %p211 = scmp.lt.s32.totalorder %s19, 0
      %s212 = scalar_select %p211, %s19, 0
      %s213 = sadd.s32 %s212, %s210
      %s214 = smul.addr %s213, 4
      %s215 = scalar_lea.vmem %s0, %s214
      %p216 = scmp.lt.s32.totalorder %s18, 1
      %s217 = scalar_select %p216, %s18, 1
      %s218 = smul.addr %s217, 4
      %s219 = scalar_lea.vmem %s1, %s218
      %p220 = scmp.lt.s32.totalorder %s18, 1
      %s221 = scalar_select %p220, %s18, 1
      %s222 = smul.addr %s221, 4
      %s223 = scalar_lea.vmem %s2, %s222
      %p224 = scmp.lt.s32.totalorder %s18, 1
      %s225 = scalar_select %p224, %s18, 1
      %p226 = scmp.lt.s32.totalorder %s19, 0
      %s227 = scalar_select %p226, %s19, 0
      %s228 = sadd.s32 %s227, %s225
      %s229 = smul.addr %s228, 4
      %s230 = scalar_lea.vmem %s3, %s229
      %v232 = vld [vmem:[%s215] sm:$0xf]
      %v233 = vld [vmem:[%s219] sm:$0xf]
      %v234 = vld [vmem:[%s223] sm:$0xf]
      %vm235 = vcmask 64512
      %v237 = vsel %vm235, %v232, 0
      %v240 = vsel %vm235, %v233, 0
      %242 = vmatpush.bf16.xpose.msra.mxu0 0
      %243 = vmatpush.bf16.xpose.msra.mxu0 0
      %244 = vmatpush.bf16.xpose.msra.mxu0 0
      %245 = vmatpush.bf16.xpose.msra.mxu0 0
      %246 = vmatpush.bf16.xpose.msra.mxu0 0
      %247 = vmatpush.bf16.xpose.msra.mxu0 0
      %248 = vmatpush.bf16.xpose.msra.mxu0 0
      %249 = vmatpush.bf16.xpose.msra.mxu0 %v240
      %250 = vmatmul.bf16.gmra.mxu0 %v237
      %v251 = vpop.f32.mrf.mxu0
      %v252 = vadd.f32 0.0, %v251
      %v253 = vpop.f32.mrf.mxu0
      %254 = vdwg.mxu0
      %v255 = vsel %vm235, %v252, -inf
      %256 = vmax.xlane.f32.xlu0 %v255
      %v257 = vpop.xlane.xlu0 %256
      %v258 = vsub.f32 %v252, %v257
      %v259 = vmul.f32 %v258, 1.442695
      %v260 = vpow.pop %v259
      %v261 = vsel %vm235, %v260, 0.0
      %262 = vadd.xlane.f32.xlu0 %v261
      %v263 = vpop.xlane.xlu0 %262
      %v264 = vpack.c.bf16 %v260, %v260
      %v266 = vsel %vm235, %v264, 0
      %vm268 = vcmask 1043456
      %v270 = vsel %vm268, %v234, 0
      %272 = vmatpush.bf16.msra.mxu0 0
      %273 = vmatpush.bf16.msra.mxu0 0
      %274 = vmatpush.bf16.msra.mxu0 0
      %275 = vmatpush.bf16.msra.mxu0 0
      %276 = vmatpush.bf16.msra.mxu0 0
      %277 = vmatpush.bf16.msra.mxu0 0
      %278 = vmatpush.bf16.msra.mxu0 0
      %279 = vmatpush.bf16.msra.mxu0 %v270
      %280 = vmatmul.bf16.gmra.mxu0 %v266
      %v281 = vpop.f32.mrf.mxu0
      %v282 = vadd.f32 0.0, %v281
      %v283 = vpop.f32.mrf.mxu0
      %284 = vdwg.mxu0
      %v285 = vrcp.pop %v263
      %v286 = vmul.f32 %v263, %v285
      %v287 = vsub.f32 1.0, %v286
      %v288 = vmul.f32 %v285, %v287
      %v289 = vadd.f32 %v285, %v288
      %vm290 = vweird.f32 %v263
      %vm291 = vweird.f32 %v285
      %vm292 = vmor %vm290, %vm291
      %v293 = vsel %vm292, %v285, %v289
      %v294 = vand.u32 2147483647, %v263
      %vm295 = vcmp.eq.f32.partialorder %v294, 8.507059e+37
      %v296 = vand.u32 %v263, 2147483648
      %v297 = vor.u32 1.1754944e-38, %v296
      %v298 = vsel %vm295, %v297, %v293
      %v299 = vmul.f32 %v282, %v298
      %300 = vst.msk [vmem:[#allocation2] sm:$0xff] %vm235, %v299
      %v301 = vld [vmem:[%s215] sm:$0xf]
      %v302 = vld [vmem:[%s219] sm:$0xf]
      %v303 = vld [vmem:[%s223] sm:$0xf]
      %v305 = vunpack.c.l.b16 %v301
      %v306 = vpack.c.b16 %v305, %v305
      %307 = vrot.lane.b32.xlu0 %v306, 120
      %v308 = vpop.permute.xlu0 %307
      %v310 = vunpack.c.l.b16 %v302
      %v311 = vpack.c.b16 %v310, %v310
      %312 = vrot.lane.b32.xlu0 %v311, 120
      %v313 = vpop.permute.xlu0 %312
      %v315 = vsel %vm235, %v308, 0
      %v318 = vsel %vm235, %v313, 0
      %320 = vmatpush.bf16.xpose.msra.mxu0 0
      %321 = vmatpush.bf16.xpose.msra.mxu0 0
      %322 = vmatpush.bf16.xpose.msra.mxu0 0
      %323 = vmatpush.bf16.xpose.msra.mxu0 0
      %324 = vmatpush.bf16.xpose.msra.mxu0 0
      %325 = vmatpush.bf16.xpose.msra.mxu0 0
      %326 = vmatpush.bf16.xpose.msra.mxu0 0
      %327 = vmatpush.bf16.xpose.msra.mxu0 %v318
      %328 = vmatmul.bf16.gmra.mxu0 %v315
      %v329 = vpop.f32.mrf.mxu0
      %v330 = vadd.f32 0.0, %v329
      %v331 = vpop.f32.mrf.mxu0
      %332 = vdwg.mxu0
      %v333 = vsel %vm235, %v330, -inf
      %334 = vmax.xlane.f32.xlu0 %v333
      %v335 = vpop.xlane.xlu0 %334
      %v336 = vsub.f32 %v330, %v335
      %v337 = vmul.f32 %v336, 1.442695
      %v338 = vpow.pop %v337
      %v339 = vsel %vm235, %v338, 0.0
      %340 = vadd.xlane.f32.xlu0 %v339
      %v341 = vpop.xlane.xlu0 %340
      %v342 = vpack.c.bf16 %v338, %v338
      %v344 = vunpack.c.l.b16 %v303
      %v345 = vpack.c.b16 %v344, %v344
      %346 = vrot.lane.b32.xlu0 %v345, 120
      %v347 = vpop.permute.xlu0 %346
      %v349 = vsel %vm235, %v342, 0
      %v352 = vsel %vm268, %v347, 0
      %354 = vmatpush.bf16.msra.mxu0 0
      %355 = vmatpush.bf16.msra.mxu0 0
      %356 = vmatpush.bf16.msra.mxu0 0
      %357 = vmatpush.bf16.msra.mxu0 0
      %358 = vmatpush.bf16.msra.mxu0 0
      %359 = vmatpush.bf16.msra.mxu0 0
      %360 = vmatpush.bf16.msra.mxu0 0
      %361 = vmatpush.bf16.msra.mxu0 %v352
      %362 = vmatmul.bf16.gmra.mxu0 %v349
      %v363 = vpop.f32.mrf.mxu0
      %v364 = vadd.f32 0.0, %v363
      %v365 = vpop.f32.mrf.mxu0
      %366 = vdwg.mxu0
      %v367 = vrcp.pop %v341
      %v368 = vmul.f32 %v341, %v367
      %v369 = vsub.f32 1.0, %v368
      %v370 = vmul.f32 %v367, %v369
      %v371 = vadd.f32 %v367, %v370
      %vm372 = vweird.f32 %v341
      %vm373 = vweird.f32 %v367
      %vm374 = vmor %vm372, %vm373
      %v375 = vsel %vm374, %v367, %v371
      %v376 = vand.u32 2147483647, %v341
      %vm377 = vcmp.eq.f32.partialorder %v376, 8.507059e+37
      %v378 = vand.u32 %v341, 2147483648
      %v379 = vor.u32 1.1754944e-38, %v378
      %v380 = vsel %vm377, %v379, %v375
      %v381 = vmul.f32 %v364, %v380
      %383 = vrot.lane.b32.xlu0 %v381, 8
      %v384 = vpop.permute.xlu0 %383
      %vm386 = vcmask 130112
      %387 = vst.msk [vmem:[#allocation2] sm:$0xff] %vm386, %v384
      %v388 = vld [vmem:[%s215] sm:$0xf]
      %v389 = vld [vmem:[%s219] sm:$0xf]
      %v390 = vld [vmem:[%s223] sm:$0xf]
      %v392 = vunpack.c.l.b16 %v388
      %v393 = vpack.c.b16 %v392, %v392
      %394 = vrot.lane.b32.xlu0 %v393, 112
      %v395 = vpop.permute.xlu0 %394
      %v397 = vunpack.c.l.b16 %v389
      %v398 = vpack.c.b16 %v397, %v397
      %399 = vrot.lane.b32.xlu0 %v398, 112
      %v400 = vpop.permute.xlu0 %399
      %v402 = vsel %vm235, %v395, 0
      %v405 = vsel %vm235, %v400, 0
      %407 = vmatpush.bf16.xpose.msra.mxu0 0
      %408 = vmatpush.bf16.xpose.msra.mxu0 0
      %409 = vmatpush.bf16.xpose.msra.mxu0 0
      %410 = vmatpush.bf16.xpose.msra.mxu0 0
      %411 = vmatpush.bf16.xpose.msra.mxu0 0
      %412 = vmatpush.bf16.xpose.msra.mxu0 0
      %413 = vmatpush.bf16.xpose.msra.mxu0 0
      %414 = vmatpush.bf16.xpose.msra.mxu0 %v405
      %415 = vmatmul.bf16.gmra.mxu0 %v402
      %v416 = vpop.f32.mrf.mxu0
      %v417 = vadd.f32 0.0, %v416
      %v418 = vpop.f32.mrf.mxu0
      %419 = vdwg.mxu0
      %v420 = vsel %vm235, %v417, -inf
      %421 = vmax.xlane.f32.xlu0 %v420
      %v422 = vpop.xlane.xlu0 %421
      %v423 = vsub.f32 %v417, %v422
      %v424 = vmul.f32 %v423, 1.442695
      %v425 = vpow.pop %v424
      %v426 = vsel %vm235, %v425, 0.0
      %427 = vadd.xlane.f32.xlu0 %v426
      %v428 = vpop.xlane.xlu0 %427
      %v429 = vpack.c.bf16 %v425, %v425
      %v431 = vunpack.c.l.b16 %v390
      %v432 = vpack.c.b16 %v431, %v431
      %433 = vrot.lane.b32.xlu0 %v432, 112
      %v434 = vpop.permute.xlu0 %433
      %v436 = vsel %vm235, %v429, 0
      %v439 = vsel %vm268, %v434, 0
      %441 = vmatpush.bf16.msra.mxu0 0
      %442 = vmatpush.bf16.msra.mxu0 0
      %443 = vmatpush.bf16.msra.mxu0 0
      %444 = vmatpush.bf16.msra.mxu0 0
      %445 = vmatpush.bf16.msra.mxu0 0
      %446 = vmatpush.bf16.msra.mxu0 0
      %447 = vmatpush.bf16.msra.mxu0 0
      %448 = vmatpush.bf16.msra.mxu0 %v439
      %449 = vmatmul.bf16.gmra.mxu0 %v436
      %v450 = vpop.f32.mrf.mxu0
      %v451 = vadd.f32 0.0, %v450
      %v452 = vpop.f32.mrf.mxu0
      %453 = vdwg.mxu0
      %v454 = vrcp.pop %v428
      %v455 = vmul.f32 %v428, %v454
      %v456 = vsub.f32 1.0, %v455
      %v457 = vmul.f32 %v454, %v456
      %v458 = vadd.f32 %v454, %v457
      %vm459 = vweird.f32 %v428
      %vm460 = vweird.f32 %v454
      %vm461 = vmor %vm459, %vm460
      %v462 = vsel %vm461, %v454, %v458
      %v463 = vand.u32 2147483647, %v428
      %vm464 = vcmp.eq.f32.partialorder %v463, 8.507059e+37
      %v465 = vand.u32 %v428, 2147483648
      %v466 = vor.u32 1.1754944e-38, %v465
      %v467 = vsel %vm464, %v466, %v462
      %v468 = vmul.f32 %v451, %v467
      %470 = vrot.lane.b32.xlu0 %v468, 16
      %v471 = vpop.permute.xlu0 %470
      %vm473 = vcmask 195712
      %474 = vst.msk [vmem:[#allocation2] sm:$0xff] %vm473, %v471
      %v475 = vld [vmem:[%s215] sm:$0xf]
      %v476 = vld [vmem:[%s219] sm:$0xf]
      %v477 = vld [vmem:[%s223] sm:$0xf]
      %v479 = vunpack.c.l.b16 %v475
      %v480 = vpack.c.b16 %v479, %v479
      %481 = vrot.lane.b32.xlu0 %v480, 104
      %v482 = vpop.permute.xlu0 %481
      %v484 = vunpack.c.l.b16 %v476
      %v485 = vpack.c.b16 %v484, %v484
      %486 = vrot.lane.b32.xlu0 %v485, 104
      %v487 = vpop.permute.xlu0 %486
      %v489 = vsel %vm235, %v482, 0
      %v492 = vsel %vm235, %v487, 0
      %494 = vmatpush.bf16.xpose.msra.mxu0 0
      %495 = vmatpush.bf16.xpose.msra.mxu0 0
      %496 = vmatpush.bf16.xpose.msra.mxu0 0
      %497 = vmatpush.bf16.xpose.msra.mxu0 0
      %498 = vmatpush.bf16.xpose.msra.mxu0 0
      %499 = vmatpush.bf16.xpose.msra.mxu0 0
      %500 = vmatpush.bf16.xpose.msra.mxu0 0
      %501 = vmatpush.bf16.xpose.msra.mxu0 %v492
      %502 = vmatmul.bf16.gmra.mxu0 %v489
      %v503 = vpop.f32.mrf.mxu0
      %v504 = vadd.f32 0.0, %v503
      %v505 = vpop.f32.mrf.mxu0
      %506 = vdwg.mxu0
      %v507 = vsel %vm235, %v504, -inf
      %508 = vmax.xlane.f32.xlu0 %v507
      %v509 = vpop.xlane.xlu0 %508
      %v510 = vsub.f32 %v504, %v509
      %v511 = vmul.f32 %v510, 1.442695
      %v512 = vpow.pop %v511
      %v513 = vsel %vm235, %v512, 0.0
      %514 = vadd.xlane.f32.xlu0 %v513
      %v515 = vpop.xlane.xlu0 %514
      %v516 = vpack.c.bf16 %v512, %v512
      %v518 = vunpack.c.l.b16 %v477
      %v519 = vpack.c.b16 %v518, %v518
      %520 = vrot.lane.b32.xlu0 %v519, 104
      %v521 = vpop.permute.xlu0 %520
      %v523 = vsel %vm235, %v516, 0
      %v526 = vsel %vm268, %v521, 0
      %528 = vmatpush.bf16.msra.mxu0 0
      %529 = vmatpush.bf16.msra.mxu0 0
      %530 = vmatpush.bf16.msra.mxu0 0
      %531 = vmatpush.bf16.msra.mxu0 0
      %532 = vmatpush.bf16.msra.mxu0 0
      %533 = vmatpush.bf16.msra.mxu0 0
      %534 = vmatpush.bf16.msra.mxu0 0
      %535 = vmatpush.bf16.msra.mxu0 %v526
      %536 = vmatmul.bf16.gmra.mxu0 %v523
      %v537 = vpop.f32.mrf.mxu0
      %v538 = vadd.f32 0.0, %v537
      %v539 = vpop.f32.mrf.mxu0
      %540 = vdwg.mxu0
      %v541 = vrcp.pop %v515
      %v542 = vmul.f32 %v515, %v541
      %v543 = vsub.f32 1.0, %v542
      %v544 = vmul.f32 %v541, %v543
      %v545 = vadd.f32 %v541, %v544
      %vm546 = vweird.f32 %v515
      %vm547 = vweird.f32 %v541
      %vm548 = vmor %vm546, %vm547
      %v549 = vsel %vm548, %v541, %v545
      %v550 = vand.u32 2147483647, %v515
      %vm551 = vcmp.eq.f32.partialorder %v550, 8.507059e+37
      %v552 = vand.u32 %v515, 2147483648
      %v553 = vor.u32 1.1754944e-38, %v552
      %v554 = vsel %vm551, %v553, %v549
      %v555 = vmul.f32 %v538, %v554
      %557 = vrot.lane.b32.xlu0 %v555, 24
      %v558 = vpop.permute.xlu0 %557
      %vm560 = vcmask 261312
      %561 = vst.msk [vmem:[#allocation2] sm:$0xff] %vm560, %v558
      %v562 = vld [vmem:[#allocation2] sm:$0xff]
      %v563 = vpack.c.bf16 %v562, %v562
      %vm564 = vcmask 257024
      %565 = vst.msk [vmem:[%s230] sm:$0xf] %vm564, %v563
      %p566 = scmp.lt.s32.totalorder %s18, 1
      %s567 = scalar_select %p566, %s18, 1
      %p568 = scmp.lt.s32.totalorder %s19, 0
      %s569 = scalar_select %p568, %s19, 0
      %s570 = sadd.s32 %s569, %s567
      %s571 = smul.addr %s570, 4
      %s572 = scalar_lea.vmem %s3, %s571
      // Predicated region
      $region33: #{geowhisper_forward.36} parent=31 // pred_check
        %p573 = pneg %p126
      $region34: #{geowhisper_forward.36} parent=31 // pred_check_branch
        %575 = sbr.rel (%p573) target = $region36
      $region35: #{geowhisper_forward.36} parent=31 // pred_region
        _
      $region36: #{geowhisper_forward.36} parent=31 // pred_fallthru
        _
    $region32: #{geowhisper_forward.36} parent=5 // pred_fallthru
      _
    %p576 = scmp.le.s32.totalorder 2, %s9
    // Predicated region
    $region37: #{geowhisper_forward.36} parent=5 // pred_check
      %p577 = pneg %p576
    $region38: #{geowhisper_forward.36} parent=5 // pred_check_branch
      %579 = sbr.rel (%p577) target = $region40
    $region39: #{geowhisper_forward.36} parent=5 // pred_region
      %s580 = ssub.s32 %s9, 2
      // Predicated region
      $region41: #{geowhisper_forward.36} parent=39 // pred_check
        %p581 = pneg %p132
      $region42: #{geowhisper_forward.36} parent=39 // pred_check_branch
        %583 = sbr.rel (%p581) target = $region44
      $region43: #{geowhisper_forward.36} parent=39 // pred_region
        %p584 = scmp.lt.s32.totalorder %s20, 1
        %s585 = scalar_select %p584, %s20, 1
        %p586 = scmp.lt.s32.totalorder %s21, 0
        %s587 = scalar_select %p586, %s21, 0
        %s588 = sadd.s32 %s587, %s585
        %s589 = smul.addr %s588, 4
        %s590 = scalar_lea.vmem %s3, %s589
      $region44: #{geowhisper_forward.36} parent=39 // pred_fallthru
        _
    $region40: #{geowhisper_forward.36} parent=5 // pred_fallthru
      _
  $region6: #{geowhisper_forward.36} parent=0 // loop_footer
    %s13 = sadd.s32 1, %s9
  $region7: #{geowhisper_forward.36} parent=0 // loop_footer_branch
    %8 = sbr.rel target = $region3
  $region8: #{geowhisper_forward.36} parent=0 // loop_exit
    _

// kernel: geowhisper_forward.38
$region0: #{geowhisper_forward.38}
  #allocation0 [shape = 'u32[]', space=smem, size = 0x4, offset = 0x4, fixed_abs, tag = 'smem constant byte address 0x4 - core index']
  #allocation1 [shape = 'u32[72,128]{1,0:T(1,128)}', space=vmem, size = 0x9000, scoped, tag = 'internal scratch']
  %s0 = inlined_call_operand.vmem [shape: bf16[16,32], index: 0, kind: input, shape index: {}]
  %s1 = inlined_call_operand.vmem [shape: bf16[32,128], index: 1, kind: input, shape index: {}]
  %s2 = inlined_call_operand.vmem [shape: f32[1,128], index: 2, kind: input, shape index: {}]
  %s3 = inlined_call_operand.vmem [shape: bf16[16,128], index: 3, kind: output, shape index: {}]
  %s4 = sld [smem:[#allocation0]]
  $region22: #{geowhisper_forward.38} parent=0
    _
  %s6 = ssub.s32 1, %s4
  %s7 = scalar_select 0, %s6, %s4
  // Predicated region
  $region2: #{geowhisper_forward.38} parent=0 // pred_check
    _
  $region3: #{geowhisper_forward.38} parent=0 // pred_check_branch
    %9 = sbr.rel (0) target = $region5
  $region4: #{geowhisper_forward.38} parent=0 // pred_region
    _
  $region5: #{geowhisper_forward.38} parent=0 // pred_fallthru
    _
  // Predicated region
  $region6: #{geowhisper_forward.38} parent=0 // pred_check
    _
  $region7: #{geowhisper_forward.38} parent=0 // pred_check_branch
    %11 = sbr.rel (0) target = $region9
  $region8: #{geowhisper_forward.38} parent=0 // pred_region
    _
  $region9: #{geowhisper_forward.38} parent=0 // pred_fallthru
    _
  // Predicated region
  $region10: #{geowhisper_forward.38} parent=0 // pred_check
    _
  $region11: #{geowhisper_forward.38} parent=0 // pred_check_branch
    %13 = sbr.rel (0) target = $region13
  $region12: #{geowhisper_forward.38} parent=0 // pred_region
    _
  $region13: #{geowhisper_forward.38} parent=0 // pred_fallthru
    _
  %v15 = vld [vmem:[%s0] sm:$0xf]
  %v16 = vld [vmem:[%s0 + $0x4] sm:$0xf]
  %v17 = vld [vmem:[%s1] sm:$0xf]
  %v18 = vld [vmem:[%s1 + $0x4] sm:$0xf]
  %v19 = vld [vmem:[%s1 + $0x8] sm:$0xf]
  %v20 = vld [vmem:[%s1 + $0xc] sm:$0xf]
  %v21 = vld [vmem:[%s2] sm:$0x1]
  %v23 = vperm.slane %v21, 0
  %v27 = vunpack.c.l.b16 %v15
  %v28 = vunpack.c.l.b16 %v16
  %v29 = vpack.c.b16 %v28, %v27
  %v34 = vunpack.c.l.b16 %v17
  %v35 = vunpack.c.l.b16 %v18
  %v36 = vunpack.c.l.b16 %v19
  %v37 = vunpack.c.l.b16 %v20
  %v38 = vpack.c.b16 %v35, %v34
  %v39 = vpack.c.b16 %v37, %v36
  %vm42 = vcmask 261120
  %v44 = vsel %vm42, %v29, 0
  %46 = vmatpush.bf16.msra.mxu0 0
  %47 = vmatpush.bf16.msra.mxu0 0
  %48 = vmatpush.bf16.msra.mxu0 0
  %49 = vmatpush.bf16.msra.mxu0 0
  %50 = vmatpush.bf16.msra.mxu0 0
  %51 = vmatpush.bf16.msra.mxu0 0
  %52 = vmatpush.bf16.msra.mxu0 %v39
  %53 = vmatpush.bf16.msra.mxu0 %v38
  %54 = vmatmul.bf16.gmra.mxu0 %v44
  %v55 = vpop.f32.mrf.mxu0
  %v56 = vadd.f32 %v23, %v55
  %v57 = vpop.f32.mrf.mxu0
  %v58 = vadd.f32 %v23, %v57
  %59 = vdwg.mxu0
  %v60 = vmax.f32 %v56, 0.0
  %v61 = vmax.f32 %v58, 0.0
  %v62 = vpack.c.bf16 %v60, %v60
  %v63 = vpack.c.bf16 %v61, %v61
  %64 = vst [vmem:[%s3] sm:$0xf] %v62
  %65 = vst [vmem:[%s3 + $0x4] sm:$0xf] %v63
  // Predicated region
  $region14: #{geowhisper_forward.38} parent=0 // pred_check
    _
  $region15: #{geowhisper_forward.38} parent=0 // pred_check_branch
    %67 = sbr.rel (0) target = $region17
  $region16: #{geowhisper_forward.38} parent=0 // pred_region
    _
  $region17: #{geowhisper_forward.38} parent=0 // pred_fallthru
    _
  // Predicated region
  $region18: #{geowhisper_forward.38} parent=0 // pred_check
    _
  $region19: #{geowhisper_forward.38} parent=0 // pred_check_branch
    %69 = sbr.rel (0) target = $region21
  $region20: #{geowhisper_forward.38} parent=0 // pred_region
    _
  $region21: #{geowhisper_forward.38} parent=0 // pred_fallthru
    _

// kernel: geowhisper_forward.37
$region0: #{geowhisper_forward.37}
  #allocation0 [shape = 'u32[]', space=smem, size = 0x4, offset = 0x4, fixed_abs, tag = 'smem constant byte address 0x4 - core index']
  #allocation1 [shape = 'u32[72,128]{1,0:T(1,128)}', space=vmem, size = 0x9000, scoped, tag = 'internal scratch']
  %s0 = inlined_call_operand.vmem [shape: bf16[16,32], index: 0, kind: input, shape index: {}]
  %s1 = inlined_call_operand.vmem [shape: bf16[32,32], index: 1, kind: input, shape index: {}]
  %s2 = inlined_call_operand.vmem [shape: f32[1,32], index: 2, kind: input, shape index: {}]
  %s3 = inlined_call_operand.vmem [shape: bf16[16,32], index: 3, kind: input, shape index: {}]
  %s4 = inlined_call_operand.vmem [shape: f32[1,32], index: 4, kind: input, shape index: {}]
  %s5 = inlined_call_operand.vmem [shape: f32[1,32], index: 5, kind: input, shape index: {}]
  %s6 = inlined_call_operand.vmem [shape: bf16[16,32], index: 6, kind: output, shape index: {}]
  %s7 = sld [smem:[#allocation0]]
  $region34: #{geowhisper_forward.37} parent=0
    _
  %s9 = ssub.s32 1, %s7
  %s10 = scalar_select 0, %s9, %s7
  // Predicated region
  $region2: #{geowhisper_forward.37} parent=0 // pred_check
    _
  $region3: #{geowhisper_forward.37} parent=0 // pred_check_branch
    %12 = sbr.rel (0) target = $region5
  $region4: #{geowhisper_forward.37} parent=0 // pred_region
    _
  $region5: #{geowhisper_forward.37} parent=0 // pred_fallthru
    _
  // Predicated region
  $region6: #{geowhisper_forward.37} parent=0 // pred_check
    _
  $region7: #{geowhisper_forward.37} parent=0 // pred_check_branch
    %14 = sbr.rel (0) target = $region9
  $region8: #{geowhisper_forward.37} parent=0 // pred_region
    _
  $region9: #{geowhisper_forward.37} parent=0 // pred_fallthru
    _
  // Predicated region
  $region10: #{geowhisper_forward.37} parent=0 // pred_check
    _
  $region11: #{geowhisper_forward.37} parent=0 // pred_check_branch
    %16 = sbr.rel (0) target = $region13
  $region12: #{geowhisper_forward.37} parent=0 // pred_region
    _
  $region13: #{geowhisper_forward.37} parent=0 // pred_fallthru
    _
  // Predicated region
  $region14: #{geowhisper_forward.37} parent=0 // pred_check
    _
  $region15: #{geowhisper_forward.37} parent=0 // pred_check_branch
    %18 = sbr.rel (0) target = $region17
  $region16: #{geowhisper_forward.37} parent=0 // pred_region
    _
  $region17: #{geowhisper_forward.37} parent=0 // pred_fallthru
    _
  // Predicated region
  $region18: #{geowhisper_forward.37} parent=0 // pred_check
    _
  $region19: #{geowhisper_forward.37} parent=0 // pred_check_branch
    %20 = sbr.rel (0) target = $region21
  $region20: #{geowhisper_forward.37} parent=0 // pred_region
    _
  $region21: #{geowhisper_forward.37} parent=0 // pred_fallthru
    _
  // Predicated region
  $region22: #{geowhisper_forward.37} parent=0 // pred_check
    _
  $region23: #{geowhisper_forward.37} parent=0 // pred_check_branch
    %22 = sbr.rel (0) target = $region25
  $region24: #{geowhisper_forward.37} parent=0 // pred_region
    _
  $region25: #{geowhisper_forward.37} parent=0 // pred_fallthru
    _
  %v24 = vld [vmem:[%s0] sm:$0xf]
  %v25 = vld [vmem:[%s0 + $0x4] sm:$0xf]
  %v26 = vld [vmem:[%s1] sm:$0xf]
  %v27 = vld [vmem:[%s1 + $0x4] sm:$0xf]
  %v28 = vld [vmem:[%s1 + $0x8] sm:$0xf]
  %v29 = vld [vmem:[%s1 + $0xc] sm:$0xf]
  %v30 = vld [vmem:[%s2] sm:$0x1]
  %v31 = vld [vmem:[%s3] sm:$0xf]
  %v32 = vld [vmem:[%s3 + $0x4] sm:$0xf]
  %v33 = vld [vmem:[%s4] sm:$0x1]
  %v34 = vld [vmem:[%s5] sm:$0x1]
  %v36 = vperm.slane %v30, 0
  %v40 = vunpack.c.l.b16 %v24
  %v41 = vunpack.c.l.b16 %v25
  %v42 = vpack.c.b16 %v41, %v40
  %v47 = vunpack.c.l.b16 %v26
  %v48 = vunpack.c.l.b16 %v27
  %v49 = vunpack.c.l.b16 %v28
  %v50 = vunpack.c.l.b16 %v29
  %v51 = vpack.c.b16 %v48, %v47
  %v52 = vpack.c.b16 %v50, %v49
  %vm55 = vcmask 261120
  %v57 = vsel %vm55, %v42, 0
  %59 = vmatpush.bf16.msra.mxu0 0
  %60 = vmatpush.bf16.msra.mxu0 0
  %61 = vmatpush.bf16.msra.mxu0 0
  %62 = vmatpush.bf16.msra.mxu0 0
  %63 = vmatpush.bf16.msra.mxu0 0
  %64 = vmatpush.bf16.msra.mxu0 0
  %65 = vmatpush.bf16.msra.mxu0 %v52
  %66 = vmatpush.bf16.msra.mxu0 %v51
  %67 = vmatmul.bf16.gmra.mxu0 %v57
  %v68 = vpop.f32.mrf.mxu0
  %v69 = vadd.f32 %v36, %v68
  %v70 = vpop.f32.mrf.mxu0
  %v71 = vadd.f32 %v36, %v70
  %72 = vdwg.mxu0
  %v73 = vunpack.c.l.bf16 %v31
  %v74 = vunpack.c.l.bf16 %v32
  %v75 = vadd.f32 %v69, %v73
  %v76 = vadd.f32 %v71, %v74
  %v77 = vsel %vm55, %v75, 0.0
  %78 = vadd.xlane.f32.xlu0 %v77
  %v79 = vpop.xlane.xlu0 %78
  %v80 = vsel %vm55, %v76, 0.0
  %81 = vadd.xlane.f32.xlu0 %v80
  %v82 = vpop.xlane.xlu0 %81
  %v83 = vrcp.pop 32.0
  %v84 = vmul.f32 32.0, %v83
  %v85 = vsub.f32 1.0, %v84
  %v86 = vmul.f32 %v83, %v85
  %v87 = vadd.f32 %v83, %v86
  %vm88 = vweird.f32 %v83
  %v89 = vsel %vm88, %v83, %v87
  %v90 = vmul.f32 %v79, %v89
  %v91 = vmul.f32 %v82, %v89
  %v92 = vsub.f32 %v75, %v90
  %v93 = vsub.f32 %v76, %v91
  %v94 = vmul.f32 %v92, %v92
  %v95 = vmul.f32 %v93, %v93
  %v96 = vsel %vm55, %v94, 0.0
  %97 = vadd.xlane.f32.xlu0 %v96
  %v98 = vpop.xlane.xlu0 %97
  %v99 = vsel %vm55, %v95, 0.0
  %100 = vadd.xlane.f32.xlu0 %v99
  %v101 = vpop.xlane.xlu0 %100
  %v102 = vmul.f32 %v98, %v89
  %v103 = vmul.f32 %v101, %v89
  %v104 = vadd.f32 %v102, 1e-05
  %v105 = vadd.f32 %v103, 1e-05
  %v106 = vrsqrt.pop %v104
  %v107 = vmul.f32 %v106, %v104
  %v108 = vmul.f32 %v107, %v106
  %v109 = vmul.f32 0.5, %v108
  %v110 = vsub.f32 1.5, %v109
  %v111 = vmul.f32 %v106, %v110
  %vm112 = vweird.f32 %v104
  %vm113 = vweird.f32 %v106
  %vm114 = vmor %vm112, %vm113
  %v115 = vsel %vm114, %v106, %v111
  %v116 = vrsqrt.pop %v105
  %v117 = vmul.f32 %v116, %v105
  %v118 = vmul.f32 %v117, %v116
  %v119 = vmul.f32 0.5, %v118
  %v120 = vsub.f32 1.5, %v119
  %v121 = vmul.f32 %v116, %v120
  %vm122 = vweird.f32 %v105
  %vm123 = vweird.f32 %v116
  %vm124 = vmor %vm122, %vm123
  %v125 = vsel %vm124, %v116, %v121
  %v126 = vmul.f32 %v92, %v115
  %v127 = vmul.f32 %v93, %v125
  %v129 = vperm.slane %v33, 0
  %v131 = vmul.f32 %v126, %v129
  %v132 = vmul.f32 %v127, %v129
  %v134 = vperm.slane %v34, 0
  %v136 = vadd.f32 %v131, %v134
  %v137 = vadd.f32 %v132, %v134
  %v138 = vpack.c.bf16 %v136, %v136
  %v139 = vpack.c.bf16 %v137, %v137
  %vm140 = vcmask 257024
  %141 = vst.msk [vmem:[%s6] sm:$0xf] %vm140, %v138
  %142 = vst.msk [vmem:[%s6 + $0x4] sm:$0xf] %vm140, %v139
  // Predicated region
  $region26: #{geowhisper_forward.37} parent=0 // pred_check
    _
  $region27: #{geowhisper_forward.37} parent=0 // pred_check_branch
    %144 = sbr.rel (0) target = $region29
  $region28: #{geowhisper_forward.37} parent=0 // pred_region
    _
  $region29: #{geowhisper_forward.37} parent=0 // pred_fallthru
    _
  // Predicated region
  $region30: #{geowhisper_forward.37} parent=0 // pred_check
    _
  $region31: #{geowhisper_forward.37} parent=0 // pred_check_branch
    %146 = sbr.rel (0) target = $region33
  $region32: #{geowhisper_forward.37} parent=0 // pred_region
    _
  $region33: #{geowhisper_forward.37} parent=0 // pred_fallthru
    _

// kernel: geowhisper_forward.45
$region0: #{geowhisper_forward.45}
  #allocation0 [shape = 'u32[]', space=smem, size = 0x4, offset = 0x4, fixed_abs, tag = 'smem constant byte address 0x4 - core index']
  #allocation1 [shape = 'u32[72,128]{1,0:T(1,128)}', space=vmem, size = 0x9000, scoped, tag = 'internal scratch']
  %s0 = inlined_call_operand.vmem [shape: bf16[16,32], index: 0, kind: input, shape index: {}]
  %s1 = inlined_call_operand.vmem [shape: f32[1,32], index: 1, kind: input, shape index: {}]
  %s2 = inlined_call_operand.vmem [shape: f32[1,32], index: 2, kind: input, shape index: {}]
  %s3 = inlined_call_operand.vmem [shape: bf16[16,32], index: 3, kind: output, shape index: {}]
  %s4 = sld [smem:[#allocation0]]
  $region22: #{geowhisper_forward.45} parent=0
    _
  %s6 = ssub.s32 1, %s4
  %s7 = scalar_select 0, %s6, %s4
  // Predicated region
  $region2: #{geowhisper_forward.45} parent=0 // pred_check
    _
  $region3: #{geowhisper_forward.45} parent=0 // pred_check_branch
    %9 = sbr.rel (0) target = $region5
  $region4: #{geowhisper_forward.45} parent=0 // pred_region
    _
  $region5: #{geowhisper_forward.45} parent=0 // pred_fallthru
    _
  // Predicated region
  $region6: #{geowhisper_forward.45} parent=0 // pred_check
    _
  $region7: #{geowhisper_forward.45} parent=0 // pred_check_branch
    %11 = sbr.rel (0) target = $region9
  $region8: #{geowhisper_forward.45} parent=0 // pred_region
    _
  $region9: #{geowhisper_forward.45} parent=0 // pred_fallthru
    _
  // Predicated region
  $region10: #{geowhisper_forward.45} parent=0 // pred_check
    _
  $region11: #{geowhisper_forward.45} parent=0 // pred_check_branch
    %13 = sbr.rel (0) target = $region13
  $region12: #{geowhisper_forward.45} parent=0 // pred_region
    _
  $region13: #{geowhisper_forward.45} parent=0 // pred_fallthru
    _
  %v14 = vld [vmem:[%s0] sm:$0xf]
  %v15 = vld [vmem:[%s0 + $0x4] sm:$0xf]
  %v16 = vunpack.c.l.bf16 %v14
  %v17 = vunpack.c.l.bf16 %v15
  %vm18 = vcmask 261120
  %v19 = vsel %vm18, %v16, 0.0
  %20 = vadd.xlane.f32.xlu0 %v19
  %v21 = vpop.xlane.xlu0 %20
  %v22 = vsel %vm18, %v17, 0.0
  %23 = vadd.xlane.f32.xlu0 %v22
  %v24 = vpop.xlane.xlu0 %23
  %v25 = vrcp.pop 32.0
  %v26 = vmul.f32 32.0, %v25
  %v27 = vsub.f32 1.0, %v26
  %v28 = vmul.f32 %v25, %v27
  %v29 = vadd.f32 %v25, %v28
  %vm30 = vweird.f32 %v25
  %v31 = vsel %vm30, %v25, %v29
  %v32 = vmul.f32 %v21, %v31
  %v33 = vmul.f32 %v24, %v31
  %v34 = vsub.f32 %v16, %v32
  %v35 = vsub.f32 %v17, %v33
  %v36 = vmul.f32 %v34, %v34
  %v37 = vmul.f32 %v35, %v35
  %v38 = vsel %vm18, %v36, 0.0
  %39 = vadd.xlane.f32.xlu0 %v38
  %v40 = vpop.xlane.xlu0 %39
  %v41 = vsel %vm18, %v37, 0.0
  %42 = vadd.xlane.f32.xlu0 %v41
  %v43 = vpop.xlane.xlu0 %42
  %v44 = vmul.f32 %v40, %v31
  %v45 = vmul.f32 %v43, %v31
  %v46 = vadd.f32 %v44, 1e-05
  %v47 = vadd.f32 %v45, 1e-05
  %v48 = vrsqrt.pop %v46
  %v49 = vmul.f32 %v48, %v46
  %v50 = vmul.f32 %v49, %v48
  %v51 = vmul.f32 0.5, %v50
  %v52 = vsub.f32 1.5, %v51
  %v53 = vmul.f32 %v48, %v52
  %vm54 = vweird.f32 %v46
  %vm55 = vweird.f32 %v48
  %vm56 = vmor %vm54, %vm55
  %v57 = vsel %vm56, %v48, %v53
  %v58 = vrsqrt.pop %v47
  %v59 = vmul.f32 %v58, %v47
  %v60 = vmul.f32 %v59, %v58
  %v61 = vmul.f32 0.5, %v60
  %v62 = vsub.f32 1.5, %v61
  %v63 = vmul.f32 %v58, %v62
  %vm64 = vweird.f32 %v47
  %vm65 = vweird.f32 %v58
  %vm66 = vmor %vm64, %vm65
  %v67 = vsel %vm66, %v58, %v63
  %v68 = vmul.f32 %v34, %v57
  %v69 = vmul.f32 %v35, %v67
  %v70 = vld [vmem:[%s1] sm:$0x1]
  %v72 = vperm.slane %v70, 0
  %v74 = vmul.f32 %v68, %v72
  %v75 = vmul.f32 %v69, %v72
  %v76 = vld [vmem:[%s2] sm:$0x1]
  %v78 = vperm.slane %v76, 0
  %v80 = vadd.f32 %v74, %v78
  %v81 = vadd.f32 %v75, %v78
  %v82 = vpack.c.bf16 %v80, %v80
  %v83 = vpack.c.bf16 %v81, %v81
  %vm84 = vcmask 257024
  %85 = vst.msk [vmem:[%s3] sm:$0xf] %vm84, %v82
  %86 = vst.msk [vmem:[%s3 + $0x4] sm:$0xf] %vm84, %v83
  // Predicated region
  $region14: #{geowhisper_forward.45} parent=0 // pred_check
    _
  $region15: #{geowhisper_forward.45} parent=0 // pred_check_branch
    %88 = sbr.rel (0) target = $region17
  $region16: #{geowhisper_forward.45} parent=0 // pred_region
    _
  $region17: #{geowhisper_forward.45} parent=0 // pred_fallthru
    _
  // Predicated region
  $region18: #{geowhisper_forward.45} parent=0 // pred_check
    _
  $region19: #{geowhisper_forward.45} parent=0 // pred_check_branch
    %90 = sbr.rel (0) target = $region21
  $region20: #{geowhisper_forward.45} parent=0 // pred_region
    _
  $region21: #{geowhisper_forward.45} parent=0 // pred_fallthru
    _

// kernel: geowhisper_forward.39
$region0: #{geowhisper_forward.39}
  #allocation0 [shape = 'u32[]', space=smem, size = 0x4, offset = 0x4, fixed_abs, tag = 'smem constant byte address 0x4 - core index']
  #allocation1 [shape = 'u32[72,128]{1,0:T(1,128)}', space=vmem, size = 0x9000, scoped, tag = 'internal scratch']
  %s0 = inlined_call_operand.vmem [shape: bf16[16,128], index: 0, kind: input, shape index: {}]
  %s1 = inlined_call_operand.vmem [shape: bf16[128,32], index: 1, kind: input, shape index: {}]
  %s2 = inlined_call_operand.vmem [shape: f32[1,32], index: 2, kind: input, shape index: {}]
  %s3 = inlined_call_operand.vmem [shape: bf16[16,32], index: 3, kind: input, shape index: {}]
  %s4 = inlined_call_operand.vmem [shape: f32[1,32], index: 4, kind: input, shape index: {}]
  %s5 = inlined_call_operand.vmem [shape: f32[1,32], index: 5, kind: input, shape index: {}]
  %s6 = inlined_call_operand.vmem [shape: bf16[16,32], index: 6, kind: output, shape index: {}]
  %s7 = sld [smem:[#allocation0]]
  $region34: #{geowhisper_forward.39} parent=0
    _
  %s9 = ssub.s32 1, %s7
  %s10 = scalar_select 0, %s9, %s7
  // Predicated region
  $region2: #{geowhisper_forward.39} parent=0 // pred_check
    _
  $region3: #{geowhisper_forward.39} parent=0 // pred_check_branch
    %12 = sbr.rel (0) target = $region5
  $region4: #{geowhisper_forward.39} parent=0 // pred_region
    _
  $region5: #{geowhisper_forward.39} parent=0 // pred_fallthru
    _
  // Predicated region
  $region6: #{geowhisper_forward.39} parent=0 // pred_check
    _
  $region7: #{geowhisper_forward.39} parent=0 // pred_check_branch
    %14 = sbr.rel (0) target = $region9
  $region8: #{geowhisper_forward.39} parent=0 // pred_region
    _
  $region9: #{geowhisper_forward.39} parent=0 // pred_fallthru
    _
  // Predicated region
  $region10: #{geowhisper_forward.39} parent=0 // pred_check
    _
  $region11: #{geowhisper_forward.39} parent=0 // pred_check_branch
    %16 = sbr.rel (0) target = $region13
  $region12: #{geowhisper_forward.39} parent=0 // pred_region
    _
  $region13: #{geowhisper_forward.39} parent=0 // pred_fallthru
    _
  // Predicated region
  $region14: #{geowhisper_forward.39} parent=0 // pred_check
    _
  $region15: #{geowhisper_forward.39} parent=0 // pred_check_branch
    %18 = sbr.rel (0) target = $region17
  $region16: #{geowhisper_forward.39} parent=0 // pred_region
    _
  $region17: #{geowhisper_forward.39} parent=0 // pred_fallthru
    _
  // Predicated region
  $region18: #{geowhisper_forward.39} parent=0 // pred_check
    _
  $region19: #{geowhisper_forward.39} parent=0 // pred_check_branch
    %20 = sbr.rel (0) target = $region21
  $region20: #{geowhisper_forward.39} parent=0 // pred_region
    _
  $region21: #{geowhisper_forward.39} parent=0 // pred_fallthru
    _
  // Predicated region
  $region22: #{geowhisper_forward.39} parent=0 // pred_check
    _
  $region23: #{geowhisper_forward.39} parent=0 // pred_check_branch
    %22 = sbr.rel (0) target = $region25
  $region24: #{geowhisper_forward.39} parent=0 // pred_region
    _
  $region25: #{geowhisper_forward.39} parent=0 // pred_fallthru
    _
  %v23 = vld [vmem:[%s0] sm:$0xf]
  %v24 = vld [vmem:[%s0 + $0x4] sm:$0xf]
  %v25 = vld [vmem:[%s1] sm:$0xf]
  %v26 = vld [vmem:[%s1 + $0x4] sm:$0xf]
  %v27 = vld [vmem:[%s1 + $0x8] sm:$0xf]
  %v28 = vld [vmem:[%s1 + $0xc] sm:$0xf]
  %v29 = vld [vmem:[%s1 + $0x10] sm:$0xf]
  %v30 = vld [vmem:[%s1 + $0x14] sm:$0xf]
  %v31 = vld [vmem:[%s1 + $0x18] sm:$0xf]
  %v32 = vld [vmem:[%s1 + $0x1c] sm:$0xf]
  %v33 = vld [vmem:[%s1 + $0x20] sm:$0xf]
  %v34 = vld [vmem:[%s1 + $0x24] sm:$0xf]
  %v35 = vld [vmem:[%s1 + $0x28] sm:$0xf]
  %v36 = vld [vmem:[%s1 + $0x2c] sm:$0xf]
  %v37 = vld [vmem:[%s1 + $0x30] sm:$0xf]
  %v38 = vld [vmem:[%s1 + $0x34] sm:$0xf]
  %v39 = vld [vmem:[%s1 + $0x38] sm:$0xf]
  %v40 = vld [vmem:[%s1 + $0x3c] sm:$0xf]
  %v41 = vld [vmem:[%s2] sm:$0x1]
  %v42 = vld [vmem:[%s3] sm:$0xf]
  %v43 = vld [vmem:[%s3 + $0x4] sm:$0xf]
  %v44 = vld [vmem:[%s4] sm:$0x1]
  %v45 = vld [vmem:[%s5] sm:$0x1]
  %v47 = vperm.slane %v41, 0
  %v51 = vunpack.c.l.b16 %v23
  %v52 = vunpack.c.l.b16 %v24
  %v53 = vpack.c.b16 %v52, %v51
  %v71 = vunpack.c.l.b16 %v25
  %v72 = vunpack.c.l.b16 %v26
  %v73 = vunpack.c.l.b16 %v27
  %v74 = vunpack.c.l.b16 %v28
  %v75 = vunpack.c.l.b16 %v29
  %v76 = vunpack.c.l.b16 %v30
  %v77 = vunpack.c.l.b16 %v31
  %v78 = vunpack.c.l.b16 %v32
  %v79 = vunpack.c.l.b16 %v33
  %v80 = vunpack.c.l.b16 %v34
  %v81 = vunpack.c.l.b16 %v35
  %v82 = vunpack.c.l.b16 %v36
  %v83 = vunpack.c.l.b16 %v37
  %v84 = vunpack.c.l.b16 %v38
  %v85 = vunpack.c.l.b16 %v39
  %v86 = vunpack.c.l.b16 %v40
  %v87 = vpack.c.b16 %v72, %v71
  %v88 = vpack.c.b16 %v74, %v73
  %v89 = vpack.c.b16 %v76, %v75
  %v90 = vpack.c.b16 %v78, %v77
  %v91 = vpack.c.b16 %v80, %v79
  %v92 = vpack.c.b16 %v82, %v81
  %v93 = vpack.c.b16 %v84, %v83
  %v94 = vpack.c.b16 %v86, %v85
  %103 = vmatpush.bf16.msra.mxu0 %v94
  %104 = vmatpush.bf16.msra.mxu0 %v93
  %105 = vmatpush.bf16.msra.mxu0 %v92
  %106 = vmatpush.bf16.msra.mxu0 %v91
  %107 = vmatpush.bf16.msra.mxu0 %v90
  %108 = vmatpush.bf16.msra.mxu0 %v89
  %109 = vmatpush.bf16.msra.mxu0 %v88
  %110 = vmatpush.bf16.msra.mxu0 %v87
  %111 = vmatmul.bf16.gmra.mxu0 %v53
  %v112 = vpop.f32.mrf.mxu0
  %v113 = vadd.f32 %v47, %v112
  %v114 = vpop.f32.mrf.mxu0
  %v115 = vadd.f32 %v47, %v114
  %116 = vdwg.mxu0
  %v117 = vunpack.c.l.bf16 %v42
  %v118 = vunpack.c.l.bf16 %v43
  %v119 = vadd.f32 %v113, %v117
  %v120 = vadd.f32 %v115, %v118
  %vm121 = vcmask 261120
  %v122 = vsel %vm121, %v119, 0.0
  %123 = vadd.xlane.f32.xlu0 %v122
  %v124 = vpop.xlane.xlu0 %123
  %v125 = vsel %vm121, %v120, 0.0
  %126 = vadd.xlane.f32.xlu0 %v125
  %v127 = vpop.xlane.xlu0 %126
  %v128 = vrcp.pop 32.0
  %v129 = vmul.f32 32.0, %v128
  %v130 = vsub.f32 1.0, %v129
  %v131 = vmul.f32 %v128, %v130
  %v132 = vadd.f32 %v128, %v131
  %vm133 = vweird.f32 %v128
  %v134 = vsel %vm133, %v128, %v132
  %v135 = vmul.f32 %v124, %v134
  %v136 = vmul.f32 %v127, %v134
  %v137 = vsub.f32 %v119, %v135
  %v138 = vsub.f32 %v120, %v136
  %v139 = vmul.f32 %v137, %v137
  %v140 = vmul.f32 %v138, %v138
  %v141 = vsel %vm121, %v139, 0.0
  %142 = vadd.xlane.f32.xlu0 %v141
  %v143 = vpop.xlane.xlu0 %142
  %v144 = vsel %vm121, %v140, 0.0
  %145 = vadd.xlane.f32.xlu0 %v144
  %v146 = vpop.xlane.xlu0 %145
  %v147 = vmul.f32 %v143, %v134
  %v148 = vmul.f32 %v146, %v134
  %v149 = vadd.f32 %v147, 1e-05
  %v150 = vadd.f32 %v148, 1e-05
  %v151 = vrsqrt.pop %v149
  %v152 = vmul.f32 %v151, %v149
  %v153 = vmul.f32 %v152, %v151
  %v154 = vmul.f32 0.5, %v153
  %v155 = vsub.f32 1.5, %v154
  %v156 = vmul.f32 %v151, %v155
  %vm157 = vweird.f32 %v149
  %vm158 = vweird.f32 %v151
  %vm159 = vmor %vm157, %vm158
  %v160 = vsel %vm159, %v151, %v156
  %v161 = vrsqrt.pop %v150
  %v162 = vmul.f32 %v161, %v150
  %v163 = vmul.f32 %v162, %v161
  %v164 = vmul.f32 0.5, %v163
  %v165 = vsub.f32 1.5, %v164
  %v166 = vmul.f32 %v161, %v165
  %vm167 = vweird.f32 %v150
  %vm168 = vweird.f32 %v161
  %vm169 = vmor %vm167, %vm168
  %v170 = vsel %vm169, %v161, %v166
  %v171 = vmul.f32 %v137, %v160
  %v172 = vmul.f32 %v138, %v170
  %v174 = vperm.slane %v44, 0
  %v176 = vmul.f32 %v171, %v174
  %v177 = vmul.f32 %v172, %v174
  %v179 = vperm.slane %v45, 0
  %v181 = vadd.f32 %v176, %v179
  %v182 = vadd.f32 %v177, %v179
  %v183 = vpack.c.bf16 %v181, %v181
  %v184 = vpack.c.bf16 %v182, %v182
  %vm185 = vcmask 257024
  %186 = vst.msk [vmem:[%s6] sm:$0xf] %vm185, %v183
  %187 = vst.msk [vmem:[%s6 + $0x4] sm:$0xf] %vm185, %v184
  // Predicated region
  $region26: #{geowhisper_forward.39} parent=0 // pred_check
    _
  $region27: #{geowhisper_forward.39} parent=0 // pred_check_branch
    %189 = sbr.rel (0) target = $region29
  $region28: #{geowhisper_forward.39} parent=0 // pred_region
    _
  $region29: #{geowhisper_forward.39} parent=0 // pred_fallthru
    _
  // Predicated region
  $region30: #{geowhisper_forward.39} parent=0 // pred_check
    _
  $region31: #{geowhisper_forward.39} parent=0 // pred_check_branch
    %191 = sbr.rel (0) target = $region33
  $region32: #{geowhisper_forward.39} parent=0 // pred_region
    _
  $region33: #{geowhisper_forward.39} parent=0 // pred_fallthru
    _

// kernel: geowhisper_forward.50
$region0: #{geowhisper_forward.50}
  #allocation0 [shape = 'u32[]', space=smem, size = 0x4, offset = 0x4, fixed_abs, tag = 'smem constant byte address 0x4 - core index']
  #allocation1 [shape = 'u32[72,128]{1,0:T(1,128)}', space=vmem, size = 0x9000, scoped, tag = 'internal scratch']
  %s0 = inlined_call_operand.vmem [shape: bf16[16,32], index: 0, kind: input, shape index: {}]
  %s1 = inlined_call_operand.vmem [shape: bf16[32,64], index: 1, kind: input, shape index: {}]
  %s2 = inlined_call_operand.vmem [shape: f32[1,64], index: 2, kind: input, shape index: {}]
  %s3 = inlined_call_operand.vmem [shape: bf16[16,64], index: 3, kind: output, shape index: {}]
  %s4 = sld [smem:[#allocation0]]
  $region22: #{geowhisper_forward.50} parent=0
    _
  %s6 = ssub.s32 1, %s4
  %s7 = scalar_select 0, %s6, %s4
  // Predicated region
  $region2: #{geowhisper_forward.50} parent=0 // pred_check
    _
  $region3: #{geowhisper_forward.50} parent=0 // pred_check_branch
    %9 = sbr.rel (0) target = $region5
  $region4: #{geowhisper_forward.50} parent=0 // pred_region
    _
  $region5: #{geowhisper_forward.50} parent=0 // pred_fallthru
    _
  // Predicated region
  $region6: #{geowhisper_forward.50} parent=0 // pred_check
    _
  $region7: #{geowhisper_forward.50} parent=0 // pred_check_branch
    %11 = sbr.rel (0) target = $region9
  $region8: #{geowhisper_forward.50} parent=0 // pred_region
    _
  $region9: #{geowhisper_forward.50} parent=0 // pred_fallthru
    _
  // Predicated region
  $region10: #{geowhisper_forward.50} parent=0 // pred_check
    _
  $region11: #{geowhisper_forward.50} parent=0 // pred_check_branch
    %13 = sbr.rel (0) target = $region13
  $region12: #{geowhisper_forward.50} parent=0 // pred_region
    _
  $region13: #{geowhisper_forward.50} parent=0 // pred_fallthru
    _
  %v15 = vld [vmem:[%s0] sm:$0xf]
  %v16 = vld [vmem:[%s0 + $0x4] sm:$0xf]
  %v17 = vld [vmem:[%s1] sm:$0xf]
  %v18 = vld [vmem:[%s1 + $0x4] sm:$0xf]
  %v19 = vld [vmem:[%s1 + $0x8] sm:$0xf]
  %v20 = vld [vmem:[%s1 + $0xc] sm:$0xf]
  %v21 = vld [vmem:[%s2] sm:$0x1]
  %v23 = vperm.slane %v21, 0
  %v27 = vunpack.c.l.b16 %v15
  %v28 = vunpack.c.l.b16 %v16
  %v29 = vpack.c.b16 %v28, %v27
  %v34 = vunpack.c.l.b16 %v17
  %v35 = vunpack.c.l.b16 %v18
  %v36 = vunpack.c.l.b16 %v19
  %v37 = vunpack.c.l.b16 %v20
  %v38 = vpack.c.b16 %v35, %v34
  %v39 = vpack.c.b16 %v37, %v36
  %vm42 = vcmask 261120
  %v44 = vsel %vm42, %v29, 0
  %46 = vmatpush.bf16.msra.mxu0 0
  %47 = vmatpush.bf16.msra.mxu0 0
  %48 = vmatpush.bf16.msra.mxu0 0
  %49 = vmatpush.bf16.msra.mxu0 0
  %50 = vmatpush.bf16.msra.mxu0 0
  %51 = vmatpush.bf16.msra.mxu0 0
  %52 = vmatpush.bf16.msra.mxu0 %v39
  %53 = vmatpush.bf16.msra.mxu0 %v38
  %54 = vmatmul.bf16.gmra.mxu0 %v44
  %v55 = vpop.f32.mrf.mxu0
  %v56 = vadd.f32 %v23, %v55
  %v57 = vpop.f32.mrf.mxu0
  %v58 = vadd.f32 %v23, %v57
  %59 = vdwg.mxu0
  %v60 = vpack.c.bf16 %v56, %v56
  %v61 = vpack.c.bf16 %v58, %v58
  %vm62 = vcmask 519168
  %63 = vst.msk [vmem:[%s3] sm:$0xf] %vm62, %v60
  %64 = vst.msk [vmem:[%s3 + $0x4] sm:$0xf] %vm62, %v61
  // Predicated region
  $region14: #{geowhisper_forward.50} parent=0 // pred_check
    _
  $region15: #{geowhisper_forward.50} parent=0 // pred_check_branch
    %66 = sbr.rel (0) target = $region17
  $region16: #{geowhisper_forward.50} parent=0 // pred_region
    _
  $region17: #{geowhisper_forward.50} parent=0 // pred_fallthru
    _
  // Predicated region
  $region18: #{geowhisper_forward.50} parent=0 // pred_check
    _
  $region19: #{geowhisper_forward.50} parent=0 // pred_check_branch
    %68 = sbr.rel (0) target = $region21
  $region20: #{geowhisper_forward.50} parent=0 // pred_region
    _
  $region21: #{geowhisper_forward.50} parent=0 // pred_fallthru
    _

// kernel: geowhisper_forward.49
$region0: #{geowhisper_forward.49}
  #allocation0 [shape = 'u32[]', space=smem, size = 0x4, offset = 0x4, fixed_abs, tag = 'smem constant byte address 0x4 - core index']
  #allocation1 [shape = 'u32[72,128]{1,0:T(1,128)}', space=vmem, size = 0x9000, scoped, tag = 'internal scratch']
  %s0 = inlined_call_operand.vmem [shape: bf16[16,32], index: 0, kind: input, shape index: {}]
  %s1 = inlined_call_operand.vmem [shape: bf16[32,32], index: 1, kind: input, shape index: {}]
  %s2 = inlined_call_operand.vmem [shape: f32[1,32], index: 2, kind: input, shape index: {}]
  %s3 = inlined_call_operand.vmem [shape: bf16[16,32], index: 3, kind: output, shape index: {}]
  %s4 = sld [smem:[#allocation0]]
  $region22: #{geowhisper_forward.49} parent=0
    _
  %s6 = ssub.s32 1, %s4
  %s7 = scalar_select 0, %s6, %s4
  // Predicated region
  $region2: #{geowhisper_forward.49} parent=0 // pred_check
    _
  $region3: #{geowhisper_forward.49} parent=0 // pred_check_branch
    %9 = sbr.rel (0) target = $region5
  $region4: #{geowhisper_forward.49} parent=0 // pred_region
    _
  $region5: #{geowhisper_forward.49} parent=0 // pred_fallthru
    _
  // Predicated region
  $region6: #{geowhisper_forward.49} parent=0 // pred_check
    _
  $region7: #{geowhisper_forward.49} parent=0 // pred_check_branch
    %11 = sbr.rel (0) target = $region9
  $region8: #{geowhisper_forward.49} parent=0 // pred_region
    _
  $region9: #{geowhisper_forward.49} parent=0 // pred_fallthru
    _
  // Predicated region
  $region10: #{geowhisper_forward.49} parent=0 // pred_check
    _
  $region11: #{geowhisper_forward.49} parent=0 // pred_check_branch
    %13 = sbr.rel (0) target = $region13
  $region12: #{geowhisper_forward.49} parent=0 // pred_region
    _
  $region13: #{geowhisper_forward.49} parent=0 // pred_fallthru
    _
  %v15 = vld [vmem:[%s0] sm:$0xf]
  %v16 = vld [vmem:[%s0 + $0x4] sm:$0xf]
  %v17 = vld [vmem:[%s1] sm:$0xf]
  %v18 = vld [vmem:[%s1 + $0x4] sm:$0xf]
  %v19 = vld [vmem:[%s1 + $0x8] sm:$0xf]
  %v20 = vld [vmem:[%s1 + $0xc] sm:$0xf]
  %v21 = vld [vmem:[%s2] sm:$0x1]
  %v23 = vperm.slane %v21, 0
  %v27 = vunpack.c.l.b16 %v15
  %v28 = vunpack.c.l.b16 %v16
  %v29 = vpack.c.b16 %v28, %v27
  %v34 = vunpack.c.l.b16 %v17
  %v35 = vunpack.c.l.b16 %v18
  %v36 = vunpack.c.l.b16 %v19
  %v37 = vunpack.c.l.b16 %v20
  %v38 = vpack.c.b16 %v35, %v34
  %v39 = vpack.c.b16 %v37, %v36
  %vm42 = vcmask 261120
  %v44 = vsel %vm42, %v29, 0
  %46 = vmatpush.bf16.msra.mxu0 0
  %47 = vmatpush.bf16.msra.mxu0 0
  %48 = vmatpush.bf16.msra.mxu0 0
  %49 = vmatpush.bf16.msra.mxu0 0
  %50 = vmatpush.bf16.msra.mxu0 0
  %51 = vmatpush.bf16.msra.mxu0 0
  %52 = vmatpush.bf16.msra.mxu0 %v39
  %53 = vmatpush.bf16.msra.mxu0 %v38
  %54 = vmatmul.bf16.gmra.mxu0 %v44
  %v55 = vpop.f32.mrf.mxu0
  %v56 = vadd.f32 %v23, %v55
  %v57 = vpop.f32.mrf.mxu0
  %v58 = vadd.f32 %v23, %v57
  %59 = vdwg.mxu0
  %v60 = vpack.c.bf16 %v56, %v56
  %v61 = vpack.c.bf16 %v58, %v58
  %vm62 = vcmask 257024
  %63 = vst.msk [vmem:[%s3] sm:$0xf] %vm62, %v60
  %64 = vst.msk [vmem:[%s3 + $0x4] sm:$0xf] %vm62, %v61
  // Predicated region
  $region14: #{geowhisper_forward.49} parent=0 // pred_check
    _
  $region15: #{geowhisper_forward.49} parent=0 // pred_check_branch
    %66 = sbr.rel (0) target = $region17
  $region16: #{geowhisper_forward.49} parent=0 // pred_region
    _
  $region17: #{geowhisper_forward.49} parent=0 // pred_fallthru
    _
  // Predicated region
  $region18: #{geowhisper_forward.49} parent=0 // pred_check
    _
  $region19: #{geowhisper_forward.49} parent=0 // pred_check_branch
    %68 = sbr.rel (0) target = $region21
  $region20: #{geowhisper_forward.49} parent=0 // pred_region
    _
  $region21: #{geowhisper_forward.49} parent=0 // pred_fallthru
    _

// kernel: geowhisper_forward.65
$region0: #{geowhisper_forward.65}
  #allocation0 [shape = 'u32[]', space=smem, size = 0x4, offset = 0x4, fixed_abs, tag = 'smem constant byte address 0x4 - core index']
  #allocation1 [shape = 'u32[72,128]{1,0:T(1,128)}', space=vmem, size = 0x9000, scoped, tag = 'internal scratch']
  %s0 = inlined_call_operand.vmem [shape: bf16[16,32], index: 0, kind: input, shape index: {}]
  %s1 = inlined_call_operand.vmem [shape: bf16[32,50], index: 1, kind: input, shape index: {}]
  %s2 = inlined_call_operand.vmem [shape: f32[1,50], index: 2, kind: input, shape index: {}]
  %s3 = inlined_call_operand.hbm [shape: f32[16,50], index: 3, kind: output, shape index: {}]
  %s4 = sld [smem:[#allocation0]]
  $region22: #{geowhisper_forward.65} parent=0
    _
  %s6 = ssub.s32 1, %s4
  %s7 = scalar_select 0, %s6, %s4
  $region1: #{geowhisper_forward.65} parent=0
    #allocation2 [shape = 'u8[8192]{0}', space=vmem, size = 0x2000, scoped, tag = 'output window, operand 0, single buffered']
    #allocation3 [shape = 's32[1]{0}', space=sflag, size = 0x4, scoped, tag = 'scoped memory for geowhisper_forward.65']
    %8 = vsyncpa [#allocation3], 0
    // Predicated region
    $region2: #{geowhisper_forward.65} parent=1 // pred_check
      _
    $region3: #{geowhisper_forward.65} parent=1 // pred_check_branch
      %10 = sbr.rel (0) target = $region5
    $region4: #{geowhisper_forward.65} parent=1 // pred_region
      _
    $region5: #{geowhisper_forward.65} parent=1 // pred_fallthru
      _
    // Predicated region
    $region6: #{geowhisper_forward.65} parent=1 // pred_check
      _
    $region7: #{geowhisper_forward.65} parent=1 // pred_check_branch
      %12 = sbr.rel (0) target = $region9
    $region8: #{geowhisper_forward.65} parent=1 // pred_region
      _
    $region9: #{geowhisper_forward.65} parent=1 // pred_fallthru
      _
    // Predicated region
    $region10: #{geowhisper_forward.65} parent=1 // pred_check
      _
    $region11: #{geowhisper_forward.65} parent=1 // pred_check_branch
      %14 = sbr.rel (0) target = $region13
    $region12: #{geowhisper_forward.65} parent=1 // pred_region
      _
    $region13: #{geowhisper_forward.65} parent=1 // pred_fallthru
      _
    %v16 = vld [vmem:[%s0] sm:$0xf]
    %v17 = vld [vmem:[%s0 + $0x4] sm:$0xf]
    %v18 = vld [vmem:[%s1] sm:$0xf]
    %v19 = vld [vmem:[%s1 + $0x4] sm:$0xf]
    %v20 = vld [vmem:[%s1 + $0x8] sm:$0xf]
    %v21 = vld [vmem:[%s1 + $0xc] sm:$0xf]
    %v22 = vld [vmem:[%s2] sm:$0x1]
    %v24 = vperm.slane %v22, 0
    %v28 = vunpack.c.l.b16 %v16
    %v29 = vunpack.c.l.b16 %v17
    %v30 = vpack.c.b16 %v29, %v28
    %v35 = vunpack.c.l.b16 %v18
    %v36 = vunpack.c.l.b16 %v19
    %v37 = vunpack.c.l.b16 %v20
    %v38 = vunpack.c.l.b16 %v21
    %v39 = vpack.c.b16 %v36, %v35
    %v40 = vpack.c.b16 %v38, %v37
    %vm43 = vcmask 261120
    %v45 = vsel %vm43, %v30, 0
    %47 = vmatpush.bf16.msra.mxu0 0
    %48 = vmatpush.bf16.msra.mxu0 0
    %49 = vmatpush.bf16.msra.mxu0 0
    %50 = vmatpush.bf16.msra.mxu0 0
    %51 = vmatpush.bf16.msra.mxu0 0
    %52 = vmatpush.bf16.msra.mxu0 0
    %53 = vmatpush.bf16.msra.mxu0 %v40
    %54 = vmatpush.bf16.msra.mxu0 %v39
    %55 = vmatmul.bf16.gmra.mxu0 %v45
    %v56 = vpop.f32.mrf.mxu0
    %v57 = vadd.f32 %v24, %v56
    %v58 = vpop.f32.mrf.mxu0
    %v59 = vadd.f32 %v24, %v58
    %60 = vdwg.mxu0
    %vm61 = vcmask 408576
    %62 = vst.msk [vmem:[#allocation2] sm:$0xff] %vm61, %v57
    %63 = vst.msk [vmem:[#allocation2 + $0x8] sm:$0xff] %vm61, %v59
    // Predicated region
    $region14: #{geowhisper_forward.65} parent=1 // pred_check
      _
    $region15: #{geowhisper_forward.65} parent=1 // pred_check_branch
      %65 = sbr.rel (0) target = $region17
    $region16: #{geowhisper_forward.65} parent=1 // pred_region
      %67 = vsyncadd [#allocation3], 0
      %s68 = sshll.u32 [#allocation2], 4
      %s69 = int_to_ptr.vmem [resolvable:$true] %s68
      %s70 = sshll.u32 %s3, 4
      %s71 = int_to_ptr.hbm [resolvable:$true] %s70
      %76 = dma.vmem_to_hbm [thread:$0]  %s69, 256, %s71, [#allocation3], 128, 128, 8
    $region17: #{geowhisper_forward.65} parent=1 // pred_fallthru
      _
    // Predicated region
    $region18: #{geowhisper_forward.65} parent=1 // pred_check
      _
    $region19: #{geowhisper_forward.65} parent=1 // pred_check_branch
      %78 = sbr.rel (0) target = $region21
    $region20: #{geowhisper_forward.65} parent=1 // pred_region
      %80 = dma.done [#allocation3], 256
    $region21: #{geowhisper_forward.65} parent=1 // pred_fallthru
      _
    %81 = vsyncpa [#allocation3], 1

// kernel: geowhisper_forward.47
$region0: #{geowhisper_forward.47}
  #allocation0 [shape = 'u32[]', space=smem, size = 0x4, offset = 0x4, fixed_abs, tag = 'smem constant byte address 0x4 - core index']
  #allocation1 [shape = 'u32[72,128]{1,0:T(1,128)}', space=vmem, size = 0x9000, scoped, tag = 'internal scratch']
  #allocation2 [shape = 'f32[8,32]{1,0:T(8,128)}', space=vmem, size = 0x1000, scoped, tag = 'scratch operand']
  %s0 = inlined_call_operand.vmem [shape: bf16[2,8,32], index: 0, kind: input, shape index: {}]
  %s1 = inlined_call_operand.vmem [shape: bf16[2,8,32], index: 1, kind: input, shape index: {}]
  %s2 = inlined_call_operand.vmem [shape: bf16[2,8,32], index: 2, kind: input, shape index: {}]
  %s3 = inlined_call_operand.vmem [shape: f32[2,1,8], index: 3, kind: input, shape index: {}]
  %s4 = inlined_call_operand.vmem [shape: bf16[2,8,32], index: 4, kind: output, shape index: {}]
  %s5 = sld [smem:[#allocation0]]
  $region49: #{geowhisper_forward.47} parent=0
    _
  %s7 = ssub.s32 1, %s5
  %s8 = scalar_select 0, %s7, %s5
  loop: start=0, step=1, limit=4
  $region2: #{geowhisper_forward.47} parent=0 // loop_pre_header
    _
  $region3: #{geowhisper_forward.47} parent=0 // loop_header
    %s10 = sphi 0, %s14
    %p11 = scmp.ge.s32.totalorder %s10, 4
    %s17 = sphi 0, %s29
    %s18 = sphi 0, %s25
    %s19 = sphi 0, %s17
    %s20 = sphi 0, %s18
    %s21 = sphi 0, %s19
    %s22 = sphi 0, %s20
    %s34 = sphi 0, %s36
    %s37 = sphi 0, %s34
    %s38 = sphi 0, %s37
    %s54 = sphi 0, %s38
    %s60 = sphi 0, %s62
    %s63 = sphi 0, %s60
    %s64 = sphi 0, %s63
    %s80 = sphi 0, %s64
    %s86 = sphi 0, %s88
    %s89 = sphi 0, %s86
    %s90 = sphi 0, %s89
    %s106 = sphi 0, %s90
    %s112 = sphi 0, %s114
    %s115 = sphi 0, %s112
    %s116 = sphi 0, %s115
    %s132 = sphi 0, %s116
    %s140 = sphi 0, %s142
    %s143 = sphi 0, %s140
    %s144 = sphi 0, %s143
    %s160 = sphi 0, %s144
  $region4: #{geowhisper_forward.47} parent=0 // loop_header_branch
    %13 = sbr.rel (%p11) target = $region8
  $region5: #{geowhisper_forward.47} parent=0 // loop_body
    %s15 = ssub.s32 %s10, 1
    %s16 = ssub.s32 %s10, 2
    %s23 = sadd.s32 1, %s18
    %p24 = scmp.ge.s32.totalorder %s23, 1
    %s25 = scalar_select %p24, 0, %s23
    %s26 = sadd.s32 1, %s17
    %s27 = scalar_select %p24, %s26, %s17
    %p28 = scmp.ge.s32.totalorder %s27, 2
    %s29 = scalar_select %p28, 0, %s27
    %s30 = ssub.s32 %s17, %s29
    %s31 = ssub.s32 %s18, %s25
    %s32 = sor.u32 %s30, %s31
    %p33 = scmp.eq.s32.totalorder %s32, 0
    %s35 = sadd.s32 %s34, 1
    %s36 = scalar_select %p33, %s34, %s35
    %p39 = pneg %p33
    %p40 = scmp.eq.s32.totalorder %s10, 1
    %p41 = por %p39, %p40
    %p42 = scmp.ne.s32.totalorder %s34, %s37
    %p43 = scmp.eq.s32.totalorder %s10, 0
    %p44 = por %p42, %p43
    %p45 = scmp.ne.s32.totalorder %s34, %s37
    %p46 = scmp.eq.s32.totalorder %s15, 1
    %p47 = por %p45, %p46
    %p48 = scmp.ne.s32.totalorder %s37, %s38
    %p49 = scmp.eq.s32.totalorder %s15, 0
    %p50 = por %p48, %p49
    %p51 = scmp.ne.s32.totalorder %s37, %s38
    %p52 = scmp.eq.s32.totalorder %s16, 1
    %p53 = por %p51, %p52
    %p55 = scmp.ne.s32.totalorder %s38, %s54
    %p56 = scmp.eq.s32.totalorder %s16, 0
    %p57 = por %p55, %p56
    %s58 = ssub.s32 %s17, %s29
    %p59 = scmp.eq.s32.totalorder %s58, 0
    %s61 = sadd.s32 %s60, 1
    %s62 = scalar_select %p59, %s60, %s61
    %p65 = pneg %p59
    %p66 = scmp.eq.s32.totalorder %s10, 1
    %p67 = por %p65, %p66
    %p68 = scmp.ne.s32.totalorder %s60, %s63
    %p69 = scmp.eq.s32.totalorder %s10, 0
    %p70 = por %p68, %p69
    %p71 = scmp.ne.s32.totalorder %s60, %s63
    %p72 = scmp.eq.s32.totalorder %s15, 1
    %p73 = por %p71, %p72
    %p74 = scmp.ne.s32.totalorder %s63, %s64
    %p75 = scmp.eq.s32.totalorder %s15, 0
    %p76 = por %p74, %p75
    %p77 = scmp.ne.s32.totalorder %s63, %s64
    %p78 = scmp.eq.s32.totalorder %s16, 1
    %p79 = por %p77, %p78
    %p81 = scmp.ne.s32.totalorder %s64, %s80
    %p82 = scmp.eq.s32.totalorder %s16, 0
    %p83 = por %p81, %p82
    %s84 = ssub.s32 %s17, %s29
    %p85 = scmp.eq.s32.totalorder %s84, 0
    %s87 = sadd.s32 %s86, 1
    %s88 = scalar_select %p85, %s86, %s87
    %p91 = pneg %p85
    %p92 = scmp.eq.s32.totalorder %s10, 1
    %p93 = por %p91, %p92
    %p94 = scmp.ne.s32.totalorder %s86, %s89
    %p95 = scmp.eq.s32.totalorder %s10, 0
    %p96 = por %p94, %p95
    %p97 = scmp.ne.s32.totalorder %s86, %s89
    %p98 = scmp.eq.s32.totalorder %s15, 1
    %p99 = por %p97, %p98
    %p100 = scmp.ne.s32.totalorder %s89, %s90
    %p101 = scmp.eq.s32.totalorder %s15, 0
    %p102 = por %p100, %p101
    %p103 = scmp.ne.s32.totalorder %s89, %s90
    %p104 = scmp.eq.s32.totalorder %s16, 1
    %p105 = por %p103, %p104
    %p107 = scmp.ne.s32.totalorder %s90, %s106
    %p108 = scmp.eq.s32.totalorder %s16, 0
    %p109 = por %p107, %p108
    %s110 = ssub.s32 %s17, %s29
    %p111 = scmp.eq.s32.totalorder %s110, 0
    %s113 = sadd.s32 %s112, 1
    %s114 = scalar_select %p111, %s112, %s113
    %p117 = pneg %p111
    %p118 = scmp.eq.s32.totalorder %s10, 1
    %p119 = por %p117, %p118
    %p120 = scmp.ne.s32.totalorder %s112, %s115
    %p121 = scmp.eq.s32.totalorder %s10, 0
    %p122 = por %p120, %p121
    %p123 = scmp.ne.s32.totalorder %s112, %s115
    %p124 = scmp.eq.s32.totalorder %s15, 1
    %p125 = por %p123, %p124
    %p126 = scmp.ne.s32.totalorder %s115, %s116
    %p127 = scmp.eq.s32.totalorder %s15, 0
    %p128 = por %p126, %p127
    %p129 = scmp.ne.s32.totalorder %s115, %s116
    %p130 = scmp.eq.s32.totalorder %s16, 1
    %p131 = por %p129, %p130
    %p133 = scmp.ne.s32.totalorder %s116, %s132
    %p134 = scmp.eq.s32.totalorder %s16, 0
    %p135 = por %p133, %p134
    %s136 = ssub.s32 %s17, %s29
    %s137 = ssub.s32 %s18, %s25
    %s138 = sor.u32 %s136, %s137
    %p139 = scmp.eq.s32.totalorder %s138, 0
    %s141 = sadd.s32 %s140, 1
    %s142 = scalar_select %p139, %s140, %s141
    %p145 = pneg %p139
    %p146 = scmp.eq.s32.totalorder %s10, 1
    %p147 = por %p145, %p146
    %p148 = scmp.ne.s32.totalorder %s140, %s143
    %p149 = scmp.eq.s32.totalorder %s10, 0
    %p150 = por %p148, %p149
    %p151 = scmp.ne.s32.totalorder %s140, %s143
    %p152 = scmp.eq.s32.totalorder %s15, 1
    %p153 = por %p151, %p152
    %p154 = scmp.ne.s32.totalorder %s143, %s144
    %p155 = scmp.eq.s32.totalorder %s15, 0
    %p156 = por %p154, %p155
    %p157 = scmp.ne.s32.totalorder %s143, %s144
    %p158 = scmp.eq.s32.totalorder %s16, 1
    %p159 = por %p157, %p158
    %p161 = scmp.ne.s32.totalorder %s144, %s160
    %p162 = scmp.eq.s32.totalorder %s16, 0
    %p163 = por %p161, %p162
    %p164 = scmp.le.s32.totalorder 1, %s10
    %p165 = scmp.lt.s32.totalorder %s10, 3
    %p166 = pnand %p164, %p165
    %p167 = pneg %p166
    // Predicated region
    $region9: #{geowhisper_forward.47} parent=5 // pred_check
      _
    $region10: #{geowhisper_forward.47} parent=5 // pred_check_branch
      %169 = sbr.rel (%p166) target = $region12
    $region11: #{geowhisper_forward.47} parent=5 // pred_region
      %s170 = ssub.s32 %s10, 1
    $region12: #{geowhisper_forward.47} parent=5 // pred_fallthru
      _
    %p171 = scmp.lt.s32.totalorder %s10, 2
    // Predicated region
    $region13: #{geowhisper_forward.47} parent=5 // pred_check
      %p172 = pneg %p171
    $region14: #{geowhisper_forward.47} parent=5 // pred_check_branch
      %174 = sbr.rel (%p172) target = $region16
    $region15: #{geowhisper_forward.47} parent=5 // pred_region
      // Predicated region
      $region17: #{geowhisper_forward.47} parent=15 // pred_check
        %p175 = pneg %p44
      $region18: #{geowhisper_forward.47} parent=15 // pred_check_branch
        %177 = sbr.rel (%p175) target = $region20
      $region19: #{geowhisper_forward.47} parent=15 // pred_region
        %p178 = scmp.lt.s32.totalorder %s17, 1
        %s179 = scalar_select %p178, %s17, 1
        %p180 = scmp.lt.s32.totalorder %s18, 0
        %s181 = scalar_select %p180, %s18, 0
        %s182 = sadd.s32 %s181, %s179
        %s183 = smul.addr %s182, 4
        %s184 = scalar_lea.vmem %s0, %s183
      $region20: #{geowhisper_forward.47} parent=15 // pred_fallthru
        _
      // Predicated region
      $region21: #{geowhisper_forward.47} parent=15 // pred_check
        %p185 = pneg %p70
      $region22: #{geowhisper_forward.47} parent=15 // pred_check_branch
        %187 = sbr.rel (%p185) target = $region24
      $region23: #{geowhisper_forward.47} parent=15 // pred_region
        %p188 = scmp.lt.s32.totalorder %s17, 1
        %s189 = scalar_select %p188, %s17, 1
        %s190 = smul.addr %s189, 4
        %s191 = scalar_lea.vmem %s1, %s190
      $region24: #{geowhisper_forward.47} parent=15 // pred_fallthru
        _
      // Predicated region
      $region25: #{geowhisper_forward.47} parent=15 // pred_check
        %p192 = pneg %p96
      $region26: #{geowhisper_forward.47} parent=15 // pred_check_branch
        %194 = sbr.rel (%p192) target = $region28
      $region27: #{geowhisper_forward.47} parent=15 // pred_region
        %p195 = scmp.lt.s32.totalorder %s17, 1
        %s196 = scalar_select %p195, %s17, 1
        %s197 = smul.addr %s196, 4
        %s198 = scalar_lea.vmem %s2, %s197
      $region28: #{geowhisper_forward.47} parent=15 // pred_fallthru
        _
      // Predicated region
      $region29: #{geowhisper_forward.47} parent=15 // pred_check
        %p199 = pneg %p122
      $region30: #{geowhisper_forward.47} parent=15 // pred_check_branch
        %201 = sbr.rel (%p199) target = $region32
      $region31: #{geowhisper_forward.47} parent=15 // pred_region
        %p202 = scmp.lt.s32.totalorder %s17, 1
        %s203 = scalar_select %p202, %s17, 1
        %s204 = scalar_lea.vmem %s3, %s203
      $region32: #{geowhisper_forward.47} parent=15 // pred_fallthru
        _
    $region16: #{geowhisper_forward.47} parent=5 // pred_fallthru
      _
    %p205 = scmp.le.s32.totalorder 1, %s10
    %p206 = scmp.lt.s32.totalorder %s10, 3
    %p207 = pnand %p205, %p206
    %p208 = pneg %p207
    // Predicated region
    $region33: #{geowhisper_forward.47} parent=5 // pred_check
      _
    $region34: #{geowhisper_forward.47} parent=5 // pred_check_branch
      %210 = sbr.rel (%p207) target = $region36
    $region35: #{geowhisper_forward.47} parent=5 // pred_region
      %s211 = ssub.s32 %s10, 1
      %p212 = scmp.lt.s32.totalorder %s19, 1
      %s213 = scalar_select %p212, %s19, 1
      %p214 = scmp.lt.s32.totalorder %s20, 0
      %s215 = scalar_select %p214, %s20, 0
      %s216 = sadd.s32 %s215, %s213
      %s217 = smul.addr %s216, 4
      %s218 = scalar_lea.vmem %s0, %s217
      %p219 = pneg %p50
      %p220 = pneg %p47
      %p221 = scmp.lt.s32.totalorder %s19, 1
      %s222 = scalar_select %p221, %s19, 1
      %s223 = smul.addr %s222, 4
      %s224 = scalar_lea.vmem %s1, %s223
      %p225 = pneg %p76
      %p226 = pneg %p73
      %p227 = scmp.lt.s32.totalorder %s19, 1
      %s228 = scalar_select %p227, %s19, 1
      %s229 = smul.addr %s228, 4
      %s230 = scalar_lea.vmem %s2, %s229
      %p231 = pneg %p102
      %p232 = pneg %p99
      %p233 = scmp.lt.s32.totalorder %s19, 1
      %s234 = scalar_select %p233, %s19, 1
      %s235 = scalar_lea.vmem %s3, %s234
      %p236 = pneg %p128
      %p237 = pneg %p125
      %p238 = pneg %p156
      %p239 = pneg %p153
      %p240 = scmp.lt.s32.totalorder %s19, 1
      %s241 = scalar_select %p240, %s19, 1
      %p242 = scmp.lt.s32.totalorder %s20, 0
      %s243 = scalar_select %p242, %s20, 0
      %s244 = sadd.s32 %s243, %s241
      %s245 = smul.addr %s244, 4
      %s246 = scalar_lea.vmem %s4, %s245
      %p247 = scmp.lt.s32.totalorder %s19, 1
      %s248 = scalar_select %p247, %s19, 1
      %p249 = scmp.lt.s32.totalorder %s20, 0
      %s250 = scalar_select %p249, %s20, 0
      %s251 = sadd.s32 %s250, %s248
      %s252 = smul.addr %s251, 4
      %s253 = scalar_lea.vmem %s0, %s252
      %p254 = scmp.lt.s32.totalorder %s19, 1
      %s255 = scalar_select %p254, %s19, 1
      %s256 = smul.addr %s255, 4
      %s257 = scalar_lea.vmem %s1, %s256
      %p258 = scmp.lt.s32.totalorder %s19, 1
      %s259 = scalar_select %p258, %s19, 1
      %s260 = smul.addr %s259, 4
      %s261 = scalar_lea.vmem %s2, %s260
      %p262 = scmp.lt.s32.totalorder %s19, 1
      %s263 = scalar_select %p262, %s19, 1
      %s264 = scalar_lea.vmem %s3, %s263
      %p265 = scmp.lt.s32.totalorder %s19, 1
      %s266 = scalar_select %p265, %s19, 1
      %p267 = scmp.lt.s32.totalorder %s20, 0
      %s268 = scalar_select %p267, %s20, 0
      %s269 = sadd.s32 %s268, %s266
      %s270 = smul.addr %s269, 4
      %s271 = scalar_lea.vmem %s4, %s270
      %s273 = smul.u32 %s20, 8
      %v274 = vlaneseq
      %v275 = vshrl.u32 %v274, 7
      %v276 = vstv %s273
      %v277 = vadd.s32 %v276, %v275
      %v278 = vlaneseq
      %v279 = vand.u32 %v278, 127
      %vm280 = vcmp.gt.s32.totalorder %v279, %v277
      %v281 = vsel %vm280, -1e+09, 0.0
      %v282 = vld [vmem:[%s264] sm:$0x1]
      %v284 = vperm.slane %v282, 0
      %v286 = vadd.f32 %v281, %v284
      %v287 = vld [vmem:[%s253] sm:$0xf]
      %v288 = vld [vmem:[%s257] sm:$0xf]
      %v289 = vld [vmem:[%s261] sm:$0xf]
      %vm290 = vcmask 64512
      %v292 = vsel %vm290, %v287, 0
      %v295 = vsel %vm290, %v288, 0
      %297 = vmatpush.bf16.xpose.msra.mxu0 0
      %298 = vmatpush.bf16.xpose.msra.mxu0 0
      %299 = vmatpush.bf16.xpose.msra.mxu0 0
      %300 = vmatpush.bf16.xpose.msra.mxu0 0
      %301 = vmatpush.bf16.xpose.msra.mxu0 0
      %302 = vmatpush.bf16.xpose.msra.mxu0 0
      %303 = vmatpush.bf16.xpose.msra.mxu0 0
      %304 = vmatpush.bf16.xpose.msra.mxu0 %v295
      %305 = vmatmul.bf16.gmra.mxu0 %v292
      %v306 = vpop.f32.mrf.mxu0
      %v307 = vadd.f32 %v286, %v306
      %v308 = vpop.f32.mrf.mxu0
      %309 = vdwg.mxu0
      %v310 = vsel %vm290, %v307, -inf
      %311 = vmax.xlane.f32.xlu0 %v310
      %v312 = vpop.xlane.xlu0 %311
      %v313 = vsub.f32 %v307, %v312
      %v314 = vmul.f32 %v313, 1.442695
      %v315 = vpow.pop %v314
      %v316 = vsel %vm290, %v315, 0.0
      %317 = vadd.xlane.f32.xlu0 %v316
      %v318 = vpop.xlane.xlu0 %317
      %v319 = vpack.c.bf16 %v315, %v315
      %v321 = vsel %vm290, %v319, 0
      %vm323 = vcmask 1043456
      %v325 = vsel %vm323, %v289, 0
      %327 = vmatpush.bf16.msra.mxu0 0
      %328 = vmatpush.bf16.msra.mxu0 0
      %329 = vmatpush.bf16.msra.mxu0 0
      %330 = vmatpush.bf16.msra.mxu0 0
      %331 = vmatpush.bf16.msra.mxu0 0
      %332 = vmatpush.bf16.msra.mxu0 0
      %333 = vmatpush.bf16.msra.mxu0 0
      %334 = vmatpush.bf16.msra.mxu0 %v325
      %335 = vmatmul.bf16.gmra.mxu0 %v321
      %v336 = vpop.f32.mrf.mxu0
      %v337 = vadd.f32 0.0, %v336
      %v338 = vpop.f32.mrf.mxu0
      %339 = vdwg.mxu0
      %v340 = vrcp.pop %v318
      %v341 = vmul.f32 %v318, %v340
      %v342 = vsub.f32 1.0, %v341
      %v343 = vmul.f32 %v340, %v342
      %v344 = vadd.f32 %v340, %v343
      %vm345 = vweird.f32 %v318
      %vm346 = vweird.f32 %v340
      %vm347 = vmor %vm345, %vm346
      %v348 = vsel %vm347, %v340, %v344
      %v349 = vand.u32 2147483647, %v318
      %vm350 = vcmp.eq.f32.partialorder %v349, 8.507059e+37
      %v351 = vand.u32 %v318, 2147483648
      %v352 = vor.u32 1.1754944e-38, %v351
      %v353 = vsel %vm350, %v352, %v348
      %v354 = vmul.f32 %v337, %v353
      %355 = vst.msk [vmem:[#allocation2] sm:$0xff] %vm290, %v354
      %v356 = vld [vmem:[%s253] sm:$0xf]
      %v357 = vld [vmem:[%s257] sm:$0xf]
      %v358 = vld [vmem:[%s261] sm:$0xf]
      %v360 = vunpack.c.l.b16 %v356
      %v361 = vpack.c.b16 %v360, %v360
      %362 = vrot.lane.b32.xlu0 %v361, 120
      %v363 = vpop.permute.xlu0 %362
      %v365 = vunpack.c.l.b16 %v357
      %v366 = vpack.c.b16 %v365, %v365
      %367 = vrot.lane.b32.xlu0 %v366, 120
      %v368 = vpop.permute.xlu0 %367
      %v370 = vsel %vm290, %v363, 0
      %v373 = vsel %vm290, %v368, 0
      %375 = vmatpush.bf16.xpose.msra.mxu0 0
      %376 = vmatpush.bf16.xpose.msra.mxu0 0
      %377 = vmatpush.bf16.xpose.msra.mxu0 0
      %378 = vmatpush.bf16.xpose.msra.mxu0 0
      %379 = vmatpush.bf16.xpose.msra.mxu0 0
      %380 = vmatpush.bf16.xpose.msra.mxu0 0
      %381 = vmatpush.bf16.xpose.msra.mxu0 0
      %382 = vmatpush.bf16.xpose.msra.mxu0 %v373
      %383 = vmatmul.bf16.gmra.mxu0 %v370
      %v384 = vpop.f32.mrf.mxu0
      %v385 = vadd.f32 %v286, %v384
      %v386 = vpop.f32.mrf.mxu0
      %387 = vdwg.mxu0
      %v388 = vsel %vm290, %v385, -inf
      %389 = vmax.xlane.f32.xlu0 %v388
      %v390 = vpop.xlane.xlu0 %389
      %v391 = vsub.f32 %v385, %v390
      %v392 = vmul.f32 %v391, 1.442695
      %v393 = vpow.pop %v392
      %v394 = vsel %vm290, %v393, 0.0
      %395 = vadd.xlane.f32.xlu0 %v394
      %v396 = vpop.xlane.xlu0 %395
      %v397 = vpack.c.bf16 %v393, %v393
      %v399 = vunpack.c.l.b16 %v358
      %v400 = vpack.c.b16 %v399, %v399
      %401 = vrot.lane.b32.xlu0 %v400, 120
      %v402 = vpop.permute.xlu0 %401
      %v404 = vsel %vm290, %v397, 0
      %v407 = vsel %vm323, %v402, 0
      %409 = vmatpush.bf16.msra.mxu0 0
      %410 = vmatpush.bf16.msra.mxu0 0
      %411 = vmatpush.bf16.msra.mxu0 0
      %412 = vmatpush.bf16.msra.mxu0 0
      %413 = vmatpush.bf16.msra.mxu0 0
      %414 = vmatpush.bf16.msra.mxu0 0
      %415 = vmatpush.bf16.msra.mxu0 0
      %416 = vmatpush.bf16.msra.mxu0 %v407
      %417 = vmatmul.bf16.gmra.mxu0 %v404
      %v418 = vpop.f32.mrf.mxu0
      %v419 = vadd.f32 0.0, %v418
      %v420 = vpop.f32.mrf.mxu0
      %421 = vdwg.mxu0
      %v422 = vrcp.pop %v396
      %v423 = vmul.f32 %v396, %v422
      %v424 = vsub.f32 1.0, %v423
      %v425 = vmul.f32 %v422, %v424
      %v426 = vadd.f32 %v422, %v425
      %vm427 = vweird.f32 %v396
      %vm428 = vweird.f32 %v422
      %vm429 = vmor %vm427, %vm428
      %v430 = vsel %vm429, %v422, %v426
      %v431 = vand.u32 2147483647, %v396
      %vm432 = vcmp.eq.f32.partialorder %v431, 8.507059e+37
      %v433 = vand.u32 %v396, 2147483648
      %v434 = vor.u32 1.1754944e-38, %v433
      %v435 = vsel %vm432, %v434, %v430
      %v436 = vmul.f32 %v419, %v435
      %438 = vrot.lane.b32.xlu0 %v436, 8
      %v439 = vpop.permute.xlu0 %438
      %vm441 = vcmask 130112
      %442 = vst.msk [vmem:[#allocation2] sm:$0xff] %vm441, %v439
      %v443 = vld [vmem:[%s253] sm:$0xf]
      %v444 = vld [vmem:[%s257] sm:$0xf]
      %v445 = vld [vmem:[%s261] sm:$0xf]
      %v447 = vunpack.c.l.b16 %v443
      %v448 = vpack.c.b16 %v447, %v447
      %449 = vrot.lane.b32.xlu0 %v448, 112
      %v450 = vpop.permute.xlu0 %449
      %v452 = vunpack.c.l.b16 %v444
      %v453 = vpack.c.b16 %v452, %v452
      %454 = vrot.lane.b32.xlu0 %v453, 112
      %v455 = vpop.permute.xlu0 %454
      %v457 = vsel %vm290, %v450, 0
      %v460 = vsel %vm290, %v455, 0
      %462 = vmatpush.bf16.xpose.msra.mxu0 0
      %463 = vmatpush.bf16.xpose.msra.mxu0 0
      %464 = vmatpush.bf16.xpose.msra.mxu0 0
      %465 = vmatpush.bf16.xpose.msra.mxu0 0
      %466 = vmatpush.bf16.xpose.msra.mxu0 0
      %467 = vmatpush.bf16.xpose.msra.mxu0 0
      %468 = vmatpush.bf16.xpose.msra.mxu0 0
      %469 = vmatpush.bf16.xpose.msra.mxu0 %v460
      %470 = vmatmul.bf16.gmra.mxu0 %v457
      %v471 = vpop.f32.mrf.mxu0
      %v472 = vadd.f32 %v286, %v471
      %v473 = vpop.f32.mrf.mxu0
      %474 = vdwg.mxu0
      %v475 = vsel %vm290, %v472, -inf
      %476 = vmax.xlane.f32.xlu0 %v475
      %v477 = vpop.xlane.xlu0 %476
      %v478 = vsub.f32 %v472, %v477
      %v479 = vmul.f32 %v478, 1.442695
      %v480 = vpow.pop %v479
      %v481 = vsel %vm290, %v480, 0.0
      %482 = vadd.xlane.f32.xlu0 %v481
      %v483 = vpop.xlane.xlu0 %482
      %v484 = vpack.c.bf16 %v480, %v480
      %v486 = vunpack.c.l.b16 %v445
      %v487 = vpack.c.b16 %v486, %v486
      %488 = vrot.lane.b32.xlu0 %v487, 112
      %v489 = vpop.permute.xlu0 %488
      %v491 = vsel %vm290, %v484, 0
      %v494 = vsel %vm323, %v489, 0
      %496 = vmatpush.bf16.msra.mxu0 0
      %497 = vmatpush.bf16.msra.mxu0 0
      %498 = vmatpush.bf16.msra.mxu0 0
      %499 = vmatpush.bf16.msra.mxu0 0
      %500 = vmatpush.bf16.msra.mxu0 0
      %501 = vmatpush.bf16.msra.mxu0 0
      %502 = vmatpush.bf16.msra.mxu0 0
      %503 = vmatpush.bf16.msra.mxu0 %v494
      %504 = vmatmul.bf16.gmra.mxu0 %v491
      %v505 = vpop.f32.mrf.mxu0
      %v506 = vadd.f32 0.0, %v505
      %v507 = vpop.f32.mrf.mxu0
      %508 = vdwg.mxu0
      %v509 = vrcp.pop %v483
      %v510 = vmul.f32 %v483, %v509
      %v511 = vsub.f32 1.0, %v510
      %v512 = vmul.f32 %v509, %v511
      %v513 = vadd.f32 %v509, %v512
      %vm514 = vweird.f32 %v483
      %vm515 = vweird.f32 %v509
      %vm516 = vmor %vm514, %vm515
      %v517 = vsel %vm516, %v509, %v513
      %v518 = vand.u32 2147483647, %v483
      %vm519 = vcmp.eq.f32.partialorder %v518, 8.507059e+37
      %v520 = vand.u32 %v483, 2147483648
      %v521 = vor.u32 1.1754944e-38, %v520
      %v522 = vsel %vm519, %v521, %v517
      %v523 = vmul.f32 %v506, %v522
      %525 = vrot.lane.b32.xlu0 %v523, 16
      %v526 = vpop.permute.xlu0 %525
      %vm528 = vcmask 195712
      %529 = vst.msk [vmem:[#allocation2] sm:$0xff] %vm528, %v526
      %v530 = vld [vmem:[%s253] sm:$0xf]
      %v531 = vld [vmem:[%s257] sm:$0xf]
      %v532 = vld [vmem:[%s261] sm:$0xf]
      %v534 = vunpack.c.l.b16 %v530
      %v535 = vpack.c.b16 %v534, %v534
      %536 = vrot.lane.b32.xlu0 %v535, 104
      %v537 = vpop.permute.xlu0 %536
      %v539 = vunpack.c.l.b16 %v531
      %v540 = vpack.c.b16 %v539, %v539
      %541 = vrot.lane.b32.xlu0 %v540, 104
      %v542 = vpop.permute.xlu0 %541
      %v544 = vsel %vm290, %v537, 0
      %v547 = vsel %vm290, %v542, 0
      %549 = vmatpush.bf16.xpose.msra.mxu0 0
      %550 = vmatpush.bf16.xpose.msra.mxu0 0
      %551 = vmatpush.bf16.xpose.msra.mxu0 0
      %552 = vmatpush.bf16.xpose.msra.mxu0 0
      %553 = vmatpush.bf16.xpose.msra.mxu0 0
      %554 = vmatpush.bf16.xpose.msra.mxu0 0
      %555 = vmatpush.bf16.xpose.msra.mxu0 0
      %556 = vmatpush.bf16.xpose.msra.mxu0 %v547
      %557 = vmatmul.bf16.gmra.mxu0 %v544
      %v558 = vpop.f32.mrf.mxu0
      %v559 = vadd.f32 %v286, %v558
      %v560 = vpop.f32.mrf.mxu0
      %561 = vdwg.mxu0
      %v562 = vsel %vm290, %v559, -inf
      %563 = vmax.xlane.f32.xlu0 %v562
      %v564 = vpop.xlane.xlu0 %563
      %v565 = vsub.f32 %v559, %v564
      %v566 = vmul.f32 %v565, 1.442695
      %v567 = vpow.pop %v566
      %v568 = vsel %vm290, %v567, 0.0
      %569 = vadd.xlane.f32.xlu0 %v568
      %v570 = vpop.xlane.xlu0 %569
      %v571 = vpack.c.bf16 %v567, %v567
      %v573 = vunpack.c.l.b16 %v532
      %v574 = vpack.c.b16 %v573, %v573
      %575 = vrot.lane.b32.xlu0 %v574, 104
      %v576 = vpop.permute.xlu0 %575
      %v578 = vsel %vm290, %v571, 0
      %v581 = vsel %vm323, %v576, 0
      %583 = vmatpush.bf16.msra.mxu0 0
      %584 = vmatpush.bf16.msra.mxu0 0
      %585 = vmatpush.bf16.msra.mxu0 0
      %586 = vmatpush.bf16.msra.mxu0 0
      %587 = vmatpush.bf16.msra.mxu0 0
      %588 = vmatpush.bf16.msra.mxu0 0
      %589 = vmatpush.bf16.msra.mxu0 0
      %590 = vmatpush.bf16.msra.mxu0 %v581
      %591 = vmatmul.bf16.gmra.mxu0 %v578
      %v592 = vpop.f32.mrf.mxu0
      %v593 = vadd.f32 0.0, %v592
      %v594 = vpop.f32.mrf.mxu0
      %595 = vdwg.mxu0
      %v596 = vrcp.pop %v570
      %v597 = vmul.f32 %v570, %v596
      %v598 = vsub.f32 1.0, %v597
      %v599 = vmul.f32 %v596, %v598
      %v600 = vadd.f32 %v596, %v599
      %vm601 = vweird.f32 %v570
      %vm602 = vweird.f32 %v596
      %vm603 = vmor %vm601, %vm602
      %v604 = vsel %vm603, %v596, %v600
      %v605 = vand.u32 2147483647, %v570
      %vm606 = vcmp.eq.f32.partialorder %v605, 8.507059e+37
      %v607 = vand.u32 %v570, 2147483648
      %v608 = vor.u32 1.1754944e-38, %v607
      %v609 = vsel %vm606, %v608, %v604
      %v610 = vmul.f32 %v593, %v609
      %612 = vrot.lane.b32.xlu0 %v610, 24
      %v613 = vpop.permute.xlu0 %612
      %vm615 = vcmask 261312
      %616 = vst.msk [vmem:[#allocation2] sm:$0xff] %vm615, %v613
      %v617 = vld [vmem:[#allocation2] sm:$0xff]
      %v618 = vpack.c.bf16 %v617, %v617
      %vm619 = vcmask 257024
      %620 = vst.msk [vmem:[%s271] sm:$0xf] %vm619, %v618
      %p621 = scmp.lt.s32.totalorder %s19, 1
      %s622 = scalar_select %p621, %s19, 1
      %p623 = scmp.lt.s32.totalorder %s20, 0
      %s624 = scalar_select %p623, %s20, 0
      %s625 = sadd.s32 %s624, %s622
      %s626 = smul.addr %s625, 4
      %s627 = scalar_lea.vmem %s4, %s626
      // Predicated region
      $region37: #{geowhisper_forward.47} parent=35 // pred_check
        %p628 = pneg %p153
      $region38: #{geowhisper_forward.47} parent=35 // pred_check_branch
        %630 = sbr.rel (%p628) target = $region40
      $region39: #{geowhisper_forward.47} parent=35 // pred_region
        _
      $region40: #{geowhisper_forward.47} parent=35 // pred_fallthru
        _
    $region36: #{geowhisper_forward.47} parent=5 // pred_fallthru
      _
    %p631 = scmp.le.s32.totalorder 2, %s10
    // Predicated region
    $region41: #{geowhisper_forward.47} parent=5 // pred_check
      %p632 = pneg %p631
    $region42: #{geowhisper_forward.47} parent=5 // pred_check_branch
      %634 = sbr.rel (%p632) target = $region44
    $region43: #{geowhisper_forward.47} parent=5 // pred_region
      %s635 = ssub.s32 %s10, 2
      // Predicated region
      $region45: #{geowhisper_forward.47} parent=43 // pred_check
        %p636 = pneg %p159
      $region46: #{geowhisper_forward.47} parent=43 // pred_check_branch
        %638 = sbr.rel (%p636) target = $region48
      $region47: #{geowhisper_forward.47} parent=43 // pred_region
        %p639 = scmp.lt.s32.totalorder %s21, 1
        %s640 = scalar_select %p639, %s21, 1
        %p641 = scmp.lt.s32.totalorder %s22, 0
        %s642 = scalar_select %p641, %s22, 0
        %s643 = sadd.s32 %s642, %s640
        %s644 = smul.addr %s643, 4
        %s645 = scalar_lea.vmem %s4, %s644
      $region48: #{geowhisper_forward.47} parent=43 // pred_fallthru
        _
    $region44: #{geowhisper_forward.47} parent=5 // pred_fallthru
      _
  $region6: #{geowhisper_forward.47} parent=0 // loop_footer
    %s14 = sadd.s32 1, %s10
  $region7: #{geowhisper_forward.47} parent=0 // loop_footer_branch
    %9 = sbr.rel target = $region3
  $region8: #{geowhisper_forward.47} parent=0 // loop_exit
    _

</llo_original>
